<compile_context>
chip_gen: v7x
topology: tpu7x:2x2x1
jax: 0.10.0
libtpu: 0.0.40
codegen_flags: <defaults>
</compile_context>

<pallas_src>
import functools

import numpy as np
import jax
import jax.numpy as jnp
from jax.experimental import pallas as pl
from jax.experimental.pallas import tpu as pltpu


# ----------------------------------------------------------------------------
# In-kernel helpers (feature-major: activations are (C, L))
# ----------------------------------------------------------------------------
def _layernorm_feat(x, g, b, eps=1e-5):
    """LayerNorm over the feature (sublane) axis of a (C, L) tile."""
    mu = jnp.mean(x, axis=0, keepdims=True)            # (1, L)
    xc = x - mu
    var = jnp.mean(xc * xc, axis=0, keepdims=True)     # (1, L)
    return xc * jax.lax.rsqrt(var + eps) * g + b       # g, b: (C, 1)


def _gelu_tanh(x):
    # TODO(synk): PyTorch nn.GELU() defaults to exact erf-GELU; tanh
    # approximation used here (erf lowering inside Mosaic not guaranteed).
    c = 0.7978845608028654  # sqrt(2/pi)
    return 0.5 * x * (1.0 + jnp.tanh(c * (x + 0.044715 * x * x * x)))


# ----------------------------------------------------------------------------
# Fused SelfAttention kernel (one grid step handles G batch elements)
# ----------------------------------------------------------------------------
def _self_attn_kernel(x_ref, ln_g_ref, ln_b_ref,
                      w_qkv_ref, b_qkv_ref, w_out_ref, b_out_ref,
                      ff_g_ref, ff_b_ref, w1_ref, b1_ref, w2_ref, b2_ref,
                      o_ref, qkv_scr, attn_scr, *, num_heads):
    G, C, L = x_ref.shape
    D = C // num_heads
    f32 = jnp.float32
    bf16 = jnp.bfloat16

    ln_g, ln_b = ln_g_ref[...], ln_b_ref[...]          # (C, 1) f32
    ff_g, ff_b = ff_g_ref[...], ff_b_ref[...]          # (C, 1) f32
    w_qkv, b_qkv = w_qkv_ref[...], b_qkv_ref[...]      # (3C, C) bf16, (3C, 1) f32
    w_out, b_out = w_out_ref[...], b_out_ref[...]      # (C, C)  bf16, (C, 1)  f32
    w1, b1 = w1_ref[...], b1_ref[...]
    w2, b2 = w2_ref[...], b2_ref[...]

    for g in range(G):                                  # static; G is tiny (<=4)
        xs = x_ref[g]                                   # (C, L) f32, feature-major

        # ---- pre-LN + fused QKV projection (scale folded into Q rows) ------
        x_ln = _layernorm_feat(xs, ln_g, ln_b)
        qkv_scr[...] = jnp.dot(w_qkv, x_ln.astype(bf16),
                               preferred_element_type=f32) + b_qkv     # (3C, L)

        # ---- multi-head attention: heads live on the sublane axis ----------
        # fori_loop + scratch: only one head's (L, L) tensors are live at once.
        def head_body(h, carry):
            off = pl.multiple_of(h * D, D)
            qt = qkv_scr[pl.ds(off, D), :]              # (D, L) f32 (pre-scaled)
            kt = qkv_scr[pl.ds(C + off, D), :]          # (D, L)
            vt = qkv_scr[pl.ds(2 * C + off, D), :]      # (D, L)

            q_tok = qt.T.astype(bf16)                   # (L, D) tiny transpose
            s = jnp.dot(q_tok, kt.astype(bf16),
                        preferred_element_type=f32)     # (L, L) scores
            m = jnp.max(s, axis=-1, keepdims=True)
            e = jnp.exp(s - m)
            inv = 1.0 / jnp.sum(e, axis=-1, keepdims=True)   # exact f32 divide
            p = (e * inv).astype(bf16)                  # (L, L) probabilities

            # O_h^T = V_h^T @ P^T   (NT matmul: contract over the key axis)
            ot = jax.lax.dot_general(vt.astype(bf16), p,
                                     (((1,), (1,)), ((), ())),
                                     preferred_element_type=f32)   # (D, L)
            attn_scr[pl.ds(off, D), :] = ot             # sublane rows, no concat
            return carry

        jax.lax.fori_loop(0, num_heads, head_body, 0)

        # ---- output projection + residual 1 ---------------------------------
        av = jnp.dot(w_out, attn_scr[...].astype(bf16),
                     preferred_element_type=f32) + b_out + xs           # (C, L)

        # ---- feed-forward (LN -> Linear -> GELU -> Linear) + residual 2 ------
        h1 = jnp.dot(w1, _layernorm_feat(av, ff_g, ff_b).astype(bf16),
                     preferred_element_type=f32) + b1
        h2 = jnp.dot(w2, _gelu_tanh(h1).astype(bf16),
                     preferred_element_type=f32) + b2
        o_ref[g] = h2 + av                              # (C, L), lane-dense store


# ----------------------------------------------------------------------------
# Batch-grouping heuristic (review: merge batch on single-TC chips)
# ----------------------------------------------------------------------------
def _default_batch_block(batch):
    if batch > 4:                       # keep the in-kernel unroll tiny
        return 1
    try:
        kind = jax.devices()[0].device_kind.lower()
    except Exception:
        return 1
    single_tc = any(t in kind for t in ("v5 lite", "v5e", "v6 lite", "v6e"))
    return batch if single_tc else 1    # multi-core (v7x/v5p/v4): one per step


# ----------------------------------------------------------------------------
# Wrapper (accepts / returns NCHW like the PyTorch module)
# ----------------------------------------------------------------------------
def self_attention(params, x, num_heads=8, batch_block=None):
    B, C, H, W = x.shape
    L = H * W
    assert C % num_heads == 0
    D = C // num_heads
    scale = 1.0 / np.sqrt(D)
    # TODO(synk): flash-style K/V tiling needed before scaling L much further.
    assert L * L * 4 <= 8 * 1024 * 1024, "use flash-style tiling for large L"

    G = _default_batch_block(B) if batch_block is None else batch_block
    if B % G != 0:
        G = 1

    # NCHW -> (B, C, L) is a pure view: the kernel works feature-major.
    xf = x.reshape(B, C, L).astype(jnp.float32)

    bf16 = jnp.bfloat16
    col = lambda v: v.reshape(-1, 1).astype(jnp.float32)

    # Fold 1/sqrt(D) into the Q rows of the fused in-projection (weight + bias).
    q_scale = jnp.concatenate([jnp.full((C,), scale, jnp.float32),
                               jnp.ones((2 * C,), jnp.float32)])
    w_qkv = (params["in_proj_w"] * q_scale[:, None]).astype(bf16)   # (3C, C)
    b_qkv = col(params["in_proj_b"] * q_scale)                      # (3C, 1)

    w_out = params["out_proj_w"].astype(bf16)                       # (C, C)
    w1 = params["lin1_w"].astype(bf16)                              # (C, C)
    w2 = params["lin2_w"].astype(bf16)                              # (C, C)

    in_specs = [
        pl.BlockSpec((G, C, L), lambda b: (b, 0, 0)),        # x (feature-major)
        pl.BlockSpec((C, 1), lambda b: (0, 0)),              # ln gamma
        pl.BlockSpec((C, 1), lambda b: (0, 0)),              # ln beta
        pl.BlockSpec((3 * C, C), lambda b: (0, 0)),          # W_qkv (scaled Q)
        pl.BlockSpec((3 * C, 1), lambda b: (0, 0)),          # b_qkv
        pl.BlockSpec((C, C), lambda b: (0, 0)),              # W_out
        pl.BlockSpec((C, 1), lambda b: (0, 0)),              # b_out
        pl.BlockSpec((C, 1), lambda b: (0, 0)),              # ff ln gamma
        pl.BlockSpec((C, 1), lambda b: (0, 0)),              # ff ln beta
        pl.BlockSpec((C, C), lambda b: (0, 0)),              # W1
        pl.BlockSpec((C, 1), lambda b: (0, 0)),              # b1
        pl.BlockSpec((C, C), lambda b: (0, 0)),              # W2
        pl.BlockSpec((C, 1), lambda b: (0, 0)),              # b2
    ]

    out = pl.pallas_call(
        functools.partial(_self_attn_kernel, num_heads=num_heads),
        out_shape=jax.ShapeDtypeStruct((B, C, L), jnp.float32),
        grid=(B // G,),
        in_specs=in_specs,
        out_specs=pl.BlockSpec((G, C, L), lambda b: (b, 0, 0)),
        scratch_shapes=[
            pltpu.VMEM((3 * C, L), jnp.float32),   # fused QKV (feature-major)
            pltpu.VMEM((C, L), jnp.float32),       # per-head attention outputs
        ],
        compiler_params=pltpu.CompilerParams(
            dimension_semantics=("parallel",),
            vmem_limit_bytes=32 * 1024 * 1024),
    )(xf,
      col(params["ln_g"]), col(params["ln_b"]),
      w_qkv, b_qkv,
      w_out, col(params["out_proj_b"]),
      col(params["ff_ln_g"]), col(params["ff_ln_b"]),
      w1, col(params["lin1_b"]),
      w2, col(params["lin2_b"]))

    return out.reshape(B, C, H, W)


# ----------------------------------------------------------------------------
# Deterministic synthetic parameters (shapes follow nn.MultiheadAttention /
# nn.LayerNorm / nn.Linear in the PyTorch module)
# ----------------------------------------------------------------------------
def init_params(key, C):
    ks = iter(jax.random.split(key, 16))
    nrm = lambda shape: jax.random.normal(next(ks), shape, jnp.float32)
    lin_w = lambda co, ci: nrm((co, ci)) / np.sqrt(ci)
    return dict(
        ln_g=1.0 + 0.05 * nrm((C,)), ln_b=0.05 * nrm((C,)),
        in_proj_w=lin_w(3 * C, C), in_proj_b=0.02 * nrm((3 * C,)),
        out_proj_w=lin_w(C, C), out_proj_b=0.02 * nrm((C,)),
        ff_ln_g=1.0 + 0.05 * nrm((C,)), ff_ln_b=0.05 * nrm((C,)),
        lin1_w=lin_w(C, C), lin1_b=0.02 * nrm((C,)),
        lin2_w=lin_w(C, C), lin2_b=0.02 * nrm((C,)),
    )


# ----------------------------------------------------------------------------
if __name__ == "__main__":
    # SelfAttention(channels=128) with 8 heads on a 16x16 feature map, batch 2.
    B, C, H, W = 2, 128, 16, 16

    key = jax.random.PRNGKey(0)
    kx, kp = jax.random.split(key)
    x = jax.random.normal(kx, (B, C, H, W), jnp.float32)
    params = init_params(kp, C)

    out = jax.jit(self_attention)(params, x)
    out = jax.block_until_ready(out)

    assert out.shape == (B, C, H, W), out.shape
    assert bool(jnp.all(jnp.isfinite(out)))
    print("KERNEL_OK")
</pallas_src>

<mosaic_0001>
module attributes {stable_mosaic.version = 11 : i64} {
  func.func @_self_attn_kernel(%arg0: i32, %arg1: memref<1x128x256xf32, #tpu.memory_space<vmem>>, %arg2: memref<128x1xf32, #tpu.memory_space<vmem>>, %arg3: memref<128x1xf32, #tpu.memory_space<vmem>>, %arg4: memref<384x128xbf16, #tpu.memory_space<vmem>>, %arg5: memref<384x1xf32, #tpu.memory_space<vmem>>, %arg6: memref<128x128xbf16, #tpu.memory_space<vmem>>, %arg7: memref<128x1xf32, #tpu.memory_space<vmem>>, %arg8: memref<128x1xf32, #tpu.memory_space<vmem>>, %arg9: memref<128x1xf32, #tpu.memory_space<vmem>>, %arg10: memref<128x128xbf16, #tpu.memory_space<vmem>>, %arg11: memref<128x1xf32, #tpu.memory_space<vmem>>, %arg12: memref<128x128xbf16, #tpu.memory_space<vmem>>, %arg13: memref<128x1xf32, #tpu.memory_space<vmem>>, %arg14: memref<1x128x256xf32, #tpu.memory_space<vmem>>, %arg15: memref<384x256xf32, #tpu.memory_space<vmem>>, %arg16: memref<128x256xf32, #tpu.memory_space<vmem>>) attributes {dimension_semantics = [#tpu.dimension_semantics<parallel>], iteration_bounds = array<i64: 2>, scalar_prefetch = 0 : i64, scratch_operands = 2 : i64, tpu.core_type = #tpu.core_type<tc>, window_params = [{transform_indices = @transform_0, window_bounds = array<i64: 1, 128, 256>}, {pipeline_mode = #tpu.pipeline_mode<synchronous>, transform_indices = @transform_1, window_bounds = array<i64: 128, 1>}, {pipeline_mode = #tpu.pipeline_mode<synchronous>, transform_indices = @transform_2, window_bounds = array<i64: 128, 1>}, {pipeline_mode = #tpu.pipeline_mode<synchronous>, transform_indices = @transform_3, window_bounds = array<i64: 384, 128>}, {pipeline_mode = #tpu.pipeline_mode<synchronous>, transform_indices = @transform_4, window_bounds = array<i64: 384, 1>}, {pipeline_mode = #tpu.pipeline_mode<synchronous>, transform_indices = @transform_5, window_bounds = array<i64: 128, 128>}, {pipeline_mode = #tpu.pipeline_mode<synchronous>, transform_indices = @transform_6, window_bounds = array<i64: 128, 1>}, {pipeline_mode = #tpu.pipeline_mode<synchronous>, transform_indices = @transform_7, window_bounds = array<i64: 128, 1>}, {pipeline_mode = #tpu.pipeline_mode<synchronous>, transform_indices = @transform_8, window_bounds = array<i64: 128, 1>}, {pipeline_mode = #tpu.pipeline_mode<synchronous>, transform_indices = @transform_9, window_bounds = array<i64: 128, 128>}, {pipeline_mode = #tpu.pipeline_mode<synchronous>, transform_indices = @transform_10, window_bounds = array<i64: 128, 1>}, {pipeline_mode = #tpu.pipeline_mode<synchronous>, transform_indices = @transform_11, window_bounds = array<i64: 128, 128>}, {pipeline_mode = #tpu.pipeline_mode<synchronous>, transform_indices = @transform_12, window_bounds = array<i64: 128, 1>}, {transform_indices = @transform_13, window_bounds = array<i64: 1, 128, 256>}]} {
    %c0 = arith.constant 0 : index
    %c0_0 = arith.constant 0 : index
    %0 = vector.load %arg2[%c0, %c0_0] : memref<128x1xf32, #tpu.memory_space<vmem>>, vector<128x1xf32>
    %c0_1 = arith.constant 0 : index
    %c0_2 = arith.constant 0 : index
    %1 = vector.load %arg3[%c0_1, %c0_2] : memref<128x1xf32, #tpu.memory_space<vmem>>, vector<128x1xf32>
    %c0_3 = arith.constant 0 : index
    %c0_4 = arith.constant 0 : index
    %2 = vector.load %arg8[%c0_3, %c0_4] : memref<128x1xf32, #tpu.memory_space<vmem>>, vector<128x1xf32>
    %c0_5 = arith.constant 0 : index
    %c0_6 = arith.constant 0 : index
    %3 = vector.load %arg9[%c0_5, %c0_6] : memref<128x1xf32, #tpu.memory_space<vmem>>, vector<128x1xf32>
    %c0_7 = arith.constant 0 : index
    %c0_8 = arith.constant 0 : index
    %4 = vector.load %arg4[%c0_7, %c0_8] : memref<384x128xbf16, #tpu.memory_space<vmem>>, vector<384x128xbf16>
    %c0_9 = arith.constant 0 : index
    %c0_10 = arith.constant 0 : index
    %5 = vector.load %arg5[%c0_9, %c0_10] : memref<384x1xf32, #tpu.memory_space<vmem>>, vector<384x1xf32>
    %c0_11 = arith.constant 0 : index
    %c0_12 = arith.constant 0 : index
    %6 = vector.load %arg6[%c0_11, %c0_12] : memref<128x128xbf16, #tpu.memory_space<vmem>>, vector<128x128xbf16>
    %c0_13 = arith.constant 0 : index
    %c0_14 = arith.constant 0 : index
    %7 = vector.load %arg7[%c0_13, %c0_14] : memref<128x1xf32, #tpu.memory_space<vmem>>, vector<128x1xf32>
    %c0_15 = arith.constant 0 : index
    %c0_16 = arith.constant 0 : index
    %8 = vector.load %arg10[%c0_15, %c0_16] : memref<128x128xbf16, #tpu.memory_space<vmem>>, vector<128x128xbf16>
    %c0_17 = arith.constant 0 : index
    %c0_18 = arith.constant 0 : index
    %9 = vector.load %arg11[%c0_17, %c0_18] : memref<128x1xf32, #tpu.memory_space<vmem>>, vector<128x1xf32>
    %c0_19 = arith.constant 0 : index
    %c0_20 = arith.constant 0 : index
    %10 = vector.load %arg12[%c0_19, %c0_20] : memref<128x128xbf16, #tpu.memory_space<vmem>>, vector<128x128xbf16>
    %c0_21 = arith.constant 0 : index
    %c0_22 = arith.constant 0 : index
    %11 = vector.load %arg13[%c0_21, %c0_22] : memref<128x1xf32, #tpu.memory_space<vmem>>, vector<128x1xf32>
    %c0_23 = arith.constant 0 : index
    %c0_24 = arith.constant 0 : index
    %c0_25 = arith.constant 0 : index
    %12 = vector.load %arg1[%c0_23, %c0_24, %c0_25] : memref<1x128x256xf32, #tpu.memory_space<vmem>>, vector<1x128x256xf32>
    %13 = vector.shape_cast %12 : vector<1x128x256xf32> to vector<128x256xf32>
    %cst = arith.constant dense<0.000000e+00> : vector<256xf32>
    %14 = vector.multi_reduction <add>, %13, %cst [0] : vector<128x256xf32> to vector<256xf32>
    %15 = vector.shape_cast %14 : vector<256xf32> to vector<1x256xf32>
    %cst_26 = arith.constant 1.280000e+02 : f32
    %16 = vector.broadcast %cst_26 : f32 to vector<1x256xf32>
    %17 = arith.divf %15, %16 : vector<1x256xf32>
    %18 = vector.broadcast %17 : vector<1x256xf32> to vector<128x256xf32>
    %19 = arith.subf %13, %18 : vector<128x256xf32>
    %20 = arith.mulf %19, %19 : vector<128x256xf32>
    %cst_27 = arith.constant dense<0.000000e+00> : vector<256xf32>
    %21 = vector.multi_reduction <add>, %20, %cst_27 [0] : vector<128x256xf32> to vector<256xf32>
    %22 = vector.shape_cast %21 : vector<256xf32> to vector<1x256xf32>
    %cst_28 = arith.constant 1.280000e+02 : f32
    %23 = vector.broadcast %cst_28 : f32 to vector<1x256xf32>
    %24 = arith.divf %22, %23 : vector<1x256xf32>
    %cst_29 = arith.constant 9.99999974E-6 : f32
    %25 = vector.broadcast %cst_29 : f32 to vector<1x256xf32>
    %26 = arith.addf %24, %25 : vector<1x256xf32>
    %27 = math.rsqrt %26 : vector<1x256xf32>
    %28 = vector.broadcast %27 : vector<1x256xf32> to vector<128x256xf32>
    %29 = arith.mulf %19, %28 : vector<128x256xf32>
    %30 = vector.broadcast %0 : vector<128x1xf32> to vector<128x256xf32>
    %31 = arith.mulf %29, %30 : vector<128x256xf32>
    %32 = vector.broadcast %1 : vector<128x1xf32> to vector<128x256xf32>
    %33 = arith.addf %31, %32 : vector<128x256xf32>
    %34 = arith.truncf %33 : vector<128x256xf32> to vector<128x256xbf16>
    %cst_30 = arith.constant dense<0.000000e+00> : vector<384x256xf32>
    %35 = tpu.matmul %4, %34, %cst_30 {dimension_numbers = #tpu.dot_dimension_numbers<[1], [0], [0], [1], [0, 0, 1, 1], [], []>} : vector<384x128xbf16>, vector<128x256xbf16>, vector<384x256xf32> -> vector<384x256xf32>
    %36 = vector.broadcast %5 : vector<384x1xf32> to vector<384x256xf32>
    %37 = arith.addf %35, %36 : vector<384x256xf32>
    %c0_31 = arith.constant 0 : index
    %c0_32 = arith.constant 0 : index
    %38 = vector.load %arg15[%c0_31, %c0_32] : memref<384x256xf32, #tpu.memory_space<vmem>>, vector<384x256xf32>
    tpu.vector_store %arg15[%c0_31, %c0_32], %37 {strides = array<i32>} : memref<384x256xf32, #tpu.memory_space<vmem>>, vector<384x256xf32>,
    %c0_i32 = arith.constant 0 : i32
    %c8_i32 = arith.constant 8 : i32
    %39 = arith.addi %c0_i32, %c8_i32 : i32
    %c1_i32 = arith.constant 1 : i32
    scf.for %arg17 = %c0_i32 to %39 step %c1_i32  : i32 {
      %c16_i32 = arith.constant 16 : i32
      %91 = arith.muli %arg17, %c16_i32 : i32
      %92 = tpu.assume_multiple %91, 16 : i32
      %93 = arith.index_cast %92 : i32 to index
      %c0_51 = arith.constant 0 : index
      %94 = vector.load %arg15[%93, %c0_51] : memref<384x256xf32, #tpu.memory_space<vmem>>, vector<16x256xf32>
      %c128_i32 = arith.constant 128 : i32
      %95 = arith.addi %c128_i32, %92 : i32
      %96 = arith.index_cast %95 : i32 to index
      %c0_52 = arith.constant 0 : index
      %97 = vector.load %arg15[%96, %c0_52] : memref<384x256xf32, #tpu.memory_space<vmem>>, vector<16x256xf32>
      %c256_i32 = arith.constant 256 : i32
      %98 = arith.addi %c256_i32, %92 : i32
      %99 = arith.index_cast %98 : i32 to index
      %c0_53 = arith.constant 0 : index
      %100 = vector.load %arg15[%99, %c0_53] : memref<384x256xf32, #tpu.memory_space<vmem>>, vector<16x256xf32>
      %101 = tpu.transpose %94, [1, 0] : vector<16x256xf32> -> vector<256x16xf32>
      %102 = arith.truncf %101 : vector<256x16xf32> to vector<256x16xbf16>
      %103 = arith.truncf %97 : vector<16x256xf32> to vector<16x256xbf16>
      %cst_54 = arith.constant dense<0.000000e+00> : vector<256x256xf32>
      %104 = tpu.matmul %102, %103, %cst_54 {dimension_numbers = #tpu.dot_dimension_numbers<[1], [0], [0], [1], [0, 0, 1, 1], [], []>} : vector<256x16xbf16>, vector<16x256xbf16>, vector<256x256xf32> -> vector<256x256xf32>
      %cst_55 = arith.constant dense<0xFF800000> : vector<256xf32>
      %105 = vector.multi_reduction <maximumf>, %104, %cst_55 [1] : vector<256x256xf32> to vector<256xf32>
      %106 = vector.shape_cast %105 : vector<256xf32> to vector<256x1xf32>
      %107 = vector.broadcast %106 : vector<256x1xf32> to vector<256x256xf32>
      %108 = arith.subf %104, %107 : vector<256x256xf32>
      %109 = math.exp %108 : vector<256x256xf32>
      %cst_56 = arith.constant dense<0.000000e+00> : vector<256xf32>
      %110 = vector.multi_reduction <add>, %109, %cst_56 [1] : vector<256x256xf32> to vector<256xf32>
      %111 = vector.shape_cast %110 : vector<256xf32> to vector<256x1xf32>
      %cst_57 = arith.constant 1.000000e+00 : f32
      %112 = vector.broadcast %cst_57 : f32 to vector<256x1xf32>
      %113 = arith.divf %112, %111 : vector<256x1xf32>
      %114 = vector.broadcast %113 : vector<256x1xf32> to vector<256x256xf32>
      %115 = arith.mulf %109, %114 : vector<256x256xf32>
      %116 = arith.truncf %115 : vector<256x256xf32> to vector<256x256xbf16>
      %117 = arith.truncf %100 : vector<16x256xf32> to vector<16x256xbf16>
      %cst_58 = arith.constant dense<0.000000e+00> : vector<16x256xf32>
      %118 = tpu.matmul %117, %116, %cst_58 {dimension_numbers = #tpu.dot_dimension_numbers<[1], [1], [0], [0], [0, 0, 1, 0], [], []>} : vector<16x256xbf16>, vector<256x256xbf16>, vector<16x256xf32> -> vector<16x256xf32>
      %119 = arith.index_cast %92 : i32 to index
      %c0_59 = arith.constant 0 : index
      %120 = vector.load %arg16[%119, %c0_59] : memref<128x256xf32, #tpu.memory_space<vmem>>, vector<16x256xf32>
      tpu.vector_store %arg16[%119, %c0_59], %118 {strides = array<i32>} : memref<128x256xf32, #tpu.memory_space<vmem>>, vector<16x256xf32>,
    }
    %c8_i32_33 = arith.constant 8 : i32
    %c0_34 = arith.constant 0 : index
    %c0_35 = arith.constant 0 : index
    %40 = vector.load %arg16[%c0_34, %c0_35] : memref<128x256xf32, #tpu.memory_space<vmem>>, vector<128x256xf32>
    %41 = arith.truncf %40 : vector<128x256xf32> to vector<128x256xbf16>
    %cst_36 = arith.constant dense<0.000000e+00> : vector<128x256xf32>
    %42 = tpu.matmul %6, %41, %cst_36 {dimension_numbers = #tpu.dot_dimension_numbers<[1], [0], [0], [1], [0, 0, 1, 1], [], []>} : vector<128x128xbf16>, vector<128x256xbf16>, vector<128x256xf32> -> vector<128x256xf32>
    %43 = vector.broadcast %7 : vector<128x1xf32> to vector<128x256xf32>
    %44 = arith.addf %42, %43 : vector<128x256xf32>
    %45 = arith.addf %44, %13 : vector<128x256xf32>
    %cst_37 = arith.constant dense<0.000000e+00> : vector<256xf32>
    %46 = vector.multi_reduction <add>, %45, %cst_37 [0] : vector<128x256xf32> to vector<256xf32>
    %47 = vector.shape_cast %46 : vector<256xf32> to vector<1x256xf32>
    %cst_38 = arith.constant 1.280000e+02 : f32
    %48 = vector.broadcast %cst_38 : f32 to vector<1x256xf32>
    %49 = arith.divf %47, %48 : vector<1x256xf32>
    %50 = vector.broadcast %49 : vector<1x256xf32> to vector<128x256xf32>
    %51 = arith.subf %45, %50 : vector<128x256xf32>
    %52 = arith.mulf %51, %51 : vector<128x256xf32>
    %cst_39 = arith.constant dense<0.000000e+00> : vector<256xf32>
    %53 = vector.multi_reduction <add>, %52, %cst_39 [0] : vector<128x256xf32> to vector<256xf32>
    %54 = vector.shape_cast %53 : vector<256xf32> to vector<1x256xf32>
    %cst_40 = arith.constant 1.280000e+02 : f32
    %55 = vector.broadcast %cst_40 : f32 to vector<1x256xf32>
    %56 = arith.divf %54, %55 : vector<1x256xf32>
    %cst_41 = arith.constant 9.99999974E-6 : f32
    %57 = vector.broadcast %cst_41 : f32 to vector<1x256xf32>
    %58 = arith.addf %56, %57 : vector<1x256xf32>
    %59 = math.rsqrt %58 : vector<1x256xf32>
    %60 = vector.broadcast %59 : vector<1x256xf32> to vector<128x256xf32>
    %61 = arith.mulf %51, %60 : vector<128x256xf32>
    %62 = vector.broadcast %2 : vector<128x1xf32> to vector<128x256xf32>
    %63 = arith.mulf %61, %62 : vector<128x256xf32>
    %64 = vector.broadcast %3 : vector<128x1xf32> to vector<128x256xf32>
    %65 = arith.addf %63, %64 : vector<128x256xf32>
    %66 = arith.truncf %65 : vector<128x256xf32> to vector<128x256xbf16>
    %cst_42 = arith.constant dense<0.000000e+00> : vector<128x256xf32>
    %67 = tpu.matmul %8, %66, %cst_42 {dimension_numbers = #tpu.dot_dimension_numbers<[1], [0], [0], [1], [0, 0, 1, 1], [], []>} : vector<128x128xbf16>, vector<128x256xbf16>, vector<128x256xf32> -> vector<128x256xf32>
    %68 = vector.broadcast %9 : vector<128x1xf32> to vector<128x256xf32>
    %69 = arith.addf %67, %68 : vector<128x256xf32>
    %cst_43 = arith.constant 5.000000e-01 : f32
    %70 = vector.broadcast %cst_43 : f32 to vector<128x256xf32>
    %71 = arith.mulf %70, %69 : vector<128x256xf32>
    %cst_44 = arith.constant 4.471500e-02 : f32
    %72 = vector.broadcast %cst_44 : f32 to vector<128x256xf32>
    %73 = arith.mulf %72, %69 : vector<128x256xf32>
    %74 = arith.mulf %73, %69 : vector<128x256xf32>
    %75 = arith.mulf %74, %69 : vector<128x256xf32>
    %76 = arith.addf %69, %75 : vector<128x256xf32>
    %cst_45 = arith.constant 0.797884583 : f32
    %77 = vector.broadcast %cst_45 : f32 to vector<128x256xf32>
    %78 = arith.mulf %77, %76 : vector<128x256xf32>
    %79 = math.tanh %78 : vector<128x256xf32>
    %cst_46 = arith.constant 1.000000e+00 : f32
    %80 = vector.broadcast %cst_46 : f32 to vector<128x256xf32>
    %81 = arith.addf %80, %79 : vector<128x256xf32>
    %82 = arith.mulf %71, %81 : vector<128x256xf32>
    %83 = arith.truncf %82 : vector<128x256xf32> to vector<128x256xbf16>
    %cst_47 = arith.constant dense<0.000000e+00> : vector<128x256xf32>
    %84 = tpu.matmul %10, %83, %cst_47 {dimension_numbers = #tpu.dot_dimension_numbers<[1], [0], [0], [1], [0, 0, 1, 1], [], []>} : vector<128x128xbf16>, vector<128x256xbf16>, vector<128x256xf32> -> vector<128x256xf32>
    %85 = vector.broadcast %11 : vector<128x1xf32> to vector<128x256xf32>
    %86 = arith.addf %84, %85 : vector<128x256xf32>
    %87 = arith.addf %86, %45 : vector<128x256xf32>
    %c0_48 = arith.constant 0 : index
    %c0_49 = arith.constant 0 : index
    %c0_50 = arith.constant 0 : index
    %88 = vector.load %arg14[%c0_48, %c0_49, %c0_50] : memref<1x128x256xf32, #tpu.memory_space<vmem>>, vector<1x128x256xf32>
    %89 = vector.shape_cast %88 : vector<1x128x256xf32> to vector<128x256xf32>
    %90 = vector.shape_cast %87 : vector<128x256xf32> to vector<1x128x256xf32>
    tpu.vector_store %arg14[%c0_48, %c0_49, %c0_50], %90 {strides = array<i32>} : memref<1x128x256xf32, #tpu.memory_space<vmem>>, vector<1x128x256xf32>,
    return
  }
  func.func @transform_0(%arg0: i32) -> (i32, i32, i32) {
    %c0_i32 = arith.constant 0 : i32
    %c0_i32_0 = arith.constant 0 : i32
    %c0_i32_1 = arith.constant 0 : i32
    return %arg0, %c0_i32, %c0_i32_0 : i32, i32, i32
  }
  func.func @transform_1(%arg0: i32) -> (i32, i32) {
    %c0_i32 = arith.constant 0 : i32
    %c0_i32_0 = arith.constant 0 : i32
    %c0_i32_1 = arith.constant 0 : i32
    return %c0_i32, %c0_i32_0 : i32, i32
  }
  func.func @transform_2(%arg0: i32) -> (i32, i32) {
    %c0_i32 = arith.constant 0 : i32
    %c0_i32_0 = arith.constant 0 : i32
    %c0_i32_1 = arith.constant 0 : i32
    return %c0_i32, %c0_i32_0 : i32, i32
  }
  func.func @transform_3(%arg0: i32) -> (i32, i32) {
    %c0_i32 = arith.constant 0 : i32
    %c0_i32_0 = arith.constant 0 : i32
    %c0_i32_1 = arith.constant 0 : i32
    return %c0_i32, %c0_i32_0 : i32, i32
  }
  func.func @transform_4(%arg0: i32) -> (i32, i32) {
    %c0_i32 = arith.constant 0 : i32
    %c0_i32_0 = arith.constant 0 : i32
    %c0_i32_1 = arith.constant 0 : i32
    return %c0_i32, %c0_i32_0 : i32, i32
  }
  func.func @transform_5(%arg0: i32) -> (i32, i32) {
    %c0_i32 = arith.constant 0 : i32
    %c0_i32_0 = arith.constant 0 : i32
    %c0_i32_1 = arith.constant 0 : i32
    return %c0_i32, %c0_i32_0 : i32, i32
  }
  func.func @transform_6(%arg0: i32) -> (i32, i32) {
    %c0_i32 = arith.constant 0 : i32
    %c0_i32_0 = arith.constant 0 : i32
    %c0_i32_1 = arith.constant 0 : i32
    return %c0_i32, %c0_i32_0 : i32, i32
  }
  func.func @transform_7(%arg0: i32) -> (i32, i32) {
    %c0_i32 = arith.constant 0 : i32
    %c0_i32_0 = arith.constant 0 : i32
    %c0_i32_1 = arith.constant 0 : i32
    return %c0_i32, %c0_i32_0 : i32, i32
  }
  func.func @transform_8(%arg0: i32) -> (i32, i32) {
    %c0_i32 = arith.constant 0 : i32
    %c0_i32_0 = arith.constant 0 : i32
    %c0_i32_1 = arith.constant 0 : i32
    return %c0_i32, %c0_i32_0 : i32, i32
  }
  func.func @transform_9(%arg0: i32) -> (i32, i32) {
    %c0_i32 = arith.constant 0 : i32
    %c0_i32_0 = arith.constant 0 : i32
    %c0_i32_1 = arith.constant 0 : i32
    return %c0_i32, %c0_i32_0 : i32, i32
  }
  func.func @transform_10(%arg0: i32) -> (i32, i32) {
    %c0_i32 = arith.constant 0 : i32
    %c0_i32_0 = arith.constant 0 : i32
    %c0_i32_1 = arith.constant 0 : i32
    return %c0_i32, %c0_i32_0 : i32, i32
  }
  func.func @transform_11(%arg0: i32) -> (i32, i32) {
    %c0_i32 = arith.constant 0 : i32
    %c0_i32_0 = arith.constant 0 : i32
    %c0_i32_1 = arith.constant 0 : i32
    return %c0_i32, %c0_i32_0 : i32, i32
  }
  func.func @transform_12(%arg0: i32) -> (i32, i32) {
    %c0_i32 = arith.constant 0 : i32
    %c0_i32_0 = arith.constant 0 : i32
    %c0_i32_1 = arith.constant 0 : i32
    return %c0_i32, %c0_i32_0 : i32, i32
  }
  func.func @transform_13(%arg0: i32) -> (i32, i32, i32) {
    %c0_i32 = arith.constant 0 : i32
    %c0_i32_0 = arith.constant 0 : i32
    %c0_i32_1 = arith.constant 0 : i32
    return %arg0, %c0_i32, %c0_i32_0 : i32, i32, i32
  }
}

</mosaic_0001>

<llo_original>
// kernel: mul.9
$region0: #{mul.9}
  #allocation2 [shape = 's32[1]{0}', space=sflag, size = 0x4, scoped, tag = 'scoped memory for mul.9']
  %s0 = inlined_call_operand.hbm [shape: f32[384], index: 0, kind: input, shape index: {}]
  %s1 = inlined_call_operand.vmem [shape: f32[384], index: 1, kind: input, shape index: {}]
  %s2 = inlined_call_operand.vmem [shape: f32[384], index: 2, kind: output, shape index: {}]
  $region1: #{mul.9} parent=0
    #allocation0 [shape = 'u8[2048]{0}', space=vmem, size = 0x800, scoped, tag = 'operand span for operand 0']
    #allocation1 [shape = 's32[1]{0}', space=sflag, size = 0x4, scoped, tag = 'scoped memory for mul.9']
    %3 = vsyncpa [#allocation1], 0
    %s5 = ssub.s32 64, 64
    %6 = vsyncadd [#allocation1], %s5
    %s8 = sshll.u32 [#allocation0], 4
    %s9 = int_to_ptr.vmem [resolvable:$true] %s8
    %11 = dma.hbm_to_vmem [thread:$0]  %s0, 64, %s9, [#allocation1]
    %12 = dma.done [#allocation1], 64
    %v13 = vld [vmem:[#allocation0] sm:$0x7]
    %v14 = vld [vmem:[%s1] sm:$0x7]
    %15 = xla_tuple %v13, %v14
    %16 = xla_tuple %15
    %v17 = vmul.f32 %v13, %v14
    %18 = xla_tuple %v17
    %19 = vst [vmem:[%s2] sm:$0xf] %v17
    %20 = vsyncpa [#allocation1], 1

// kernel: self_attention.1
$region0: #{self_attention.1}
  #allocation0 [shape = 'u32[]', space=smem, size = 0x4, offset = 0x4, fixed_abs, tag = 'smem constant byte address 0x4 - core index']
  #allocation1 [shape = 'u32[144,128]{1,0:T(1,128)}', space=vmem, size = 0x12000, scoped, tag = 'internal scratch']
  #allocation2 [shape = 'f32[384,256]{1,0:T(8,128)}', space=vmem, size = 0x60000, scoped, tag = 'scratch operand']
  #allocation3 [shape = 'f32[128,256]{1,0:T(8,128)}', space=vmem, size = 0x20000, scoped, tag = 'scratch operand']
  %s0 = inlined_call_operand.vmem [shape: f32[2,128,256], index: 0, kind: input, shape index: {}]
  %s1 = inlined_call_operand.vmem [shape: f32[128,1], index: 1, kind: input, shape index: {}]
  %s2 = inlined_call_operand.vmem [shape: f32[128,1], index: 2, kind: input, shape index: {}]
  %s3 = inlined_call_operand.vmem [shape: bf16[384,128], index: 3, kind: input, shape index: {}]
  %s4 = inlined_call_operand.vmem [shape: f32[384,1], index: 4, kind: input, shape index: {}]
  %s5 = inlined_call_operand.vmem [shape: bf16[128,128], index: 5, kind: input, shape index: {}]
  %s6 = inlined_call_operand.vmem [shape: f32[128,1], index: 6, kind: input, shape index: {}]
  %s7 = inlined_call_operand.vmem [shape: f32[128,1], index: 7, kind: input, shape index: {}]
  %s8 = inlined_call_operand.vmem [shape: f32[128,1], index: 8, kind: input, shape index: {}]
  %s9 = inlined_call_operand.vmem [shape: bf16[128,128], index: 9, kind: input, shape index: {}]
  %s10 = inlined_call_operand.vmem [shape: f32[128,1], index: 10, kind: input, shape index: {}]
  %s11 = inlined_call_operand.vmem [shape: bf16[128,128], index: 11, kind: input, shape index: {}]
  %s12 = inlined_call_operand.vmem [shape: f32[128,1], index: 12, kind: input, shape index: {}]
  %s13 = inlined_call_operand.vmem [shape: f32[2,128,256], index: 13, kind: output, shape index: {}]
  %s14 = sld [smem:[#allocation0]]
  $region92: #{self_attention.1} parent=0
    _
  %s16 = ssub.s32 1, %s14
  %s17 = scalar_select 0, %s16, %s14
  loop: start=0, step=1, limit=4
  $region2: #{self_attention.1} parent=0 // loop_pre_header
    _
  $region3: #{self_attention.1} parent=0 // loop_header
    %s19 = sphi 0, %s23
    %p20 = scmp.ge.s32.totalorder %s19, 4
    %s29 = sphi 0, %s31
    %s32 = sphi 0, %s29
    %s33 = sphi 0, %s32
    %s49 = sphi 0, %s33
    %s53 = sphi 0, %s53
    %s55 = sphi 0, %s53
    %s56 = sphi 0, %s55
    %s70 = sphi 0, %s56
    %s74 = sphi 0, %s74
    %s76 = sphi 0, %s74
    %s77 = sphi 0, %s76
    %s91 = sphi 0, %s77
    %s95 = sphi 0, %s95
    %s97 = sphi 0, %s95
    %s98 = sphi 0, %s97
    %s112 = sphi 0, %s98
    %s116 = sphi 0, %s116
    %s118 = sphi 0, %s116
    %s119 = sphi 0, %s118
    %s133 = sphi 0, %s119
    %s137 = sphi 0, %s137
    %s139 = sphi 0, %s137
    %s140 = sphi 0, %s139
    %s154 = sphi 0, %s140
    %s158 = sphi 0, %s158
    %s160 = sphi 0, %s158
    %s161 = sphi 0, %s160
    %s175 = sphi 0, %s161
    %s179 = sphi 0, %s179
    %s181 = sphi 0, %s179
    %s182 = sphi 0, %s181
    %s196 = sphi 0, %s182
    %s200 = sphi 0, %s200
    %s202 = sphi 0, %s200
    %s203 = sphi 0, %s202
    %s217 = sphi 0, %s203
    %s221 = sphi 0, %s221
    %s223 = sphi 0, %s221
    %s224 = sphi 0, %s223
    %s238 = sphi 0, %s224
    %s242 = sphi 0, %s242
    %s244 = sphi 0, %s242
    %s245 = sphi 0, %s244
    %s259 = sphi 0, %s245
    %s263 = sphi 0, %s263
    %s265 = sphi 0, %s263
    %s266 = sphi 0, %s265
    %s280 = sphi 0, %s266
    %s284 = sphi 0, %s284
    %s286 = sphi 0, %s284
    %s287 = sphi 0, %s286
    %s301 = sphi 0, %s287
    %s307 = sphi 0, %s309
    %s310 = sphi 0, %s307
    %s311 = sphi 0, %s310
    %s327 = sphi 0, %s311
  $region4: #{self_attention.1} parent=0 // loop_header_branch
    %22 = sbr.rel (%p20) target = $region8
  $region5: #{self_attention.1} parent=0 // loop_body
    %s24 = ssub.s32 %s19, 1
    %s25 = ssub.s32 %s19, 2
    %s26 = sadd.s32 %s19, 1
    %s27 = ssub.s32 %s19, %s26
    %p28 = scmp.eq.s32.totalorder %s27, 0
    %s30 = sadd.s32 %s29, 1
    %s31 = scalar_select %p28, %s29, %s30
    %p34 = pneg %p28
    %p35 = scmp.eq.s32.totalorder %s19, 1
    %p36 = por %p34, %p35
    %p37 = scmp.ne.s32.totalorder %s29, %s32
    %p38 = scmp.eq.s32.totalorder %s19, 0
    %p39 = por %p37, %p38
    %p40 = scmp.ne.s32.totalorder %s29, %s32
    %p41 = scmp.eq.s32.totalorder %s24, 1
    %p42 = por %p40, %p41
    %p43 = scmp.ne.s32.totalorder %s32, %s33
    %p44 = scmp.eq.s32.totalorder %s24, 0
    %p45 = por %p43, %p44
    %p46 = scmp.ne.s32.totalorder %s32, %s33
    %p47 = scmp.eq.s32.totalorder %s25, 1
    %p48 = por %p46, %p47
    %p50 = scmp.ne.s32.totalorder %s33, %s49
    %p51 = scmp.eq.s32.totalorder %s25, 0
    %p52 = por %p50, %p51
    %s54 = sadd.s32 %s53, 1
    %p57 = scmp.eq.s32.totalorder %s19, 1
    %p58 = scmp.ne.s32.totalorder %s53, %s55
    %p59 = scmp.eq.s32.totalorder %s19, 0
    %p60 = por %p58, %p59
    %p61 = scmp.ne.s32.totalorder %s53, %s55
    %p62 = scmp.eq.s32.totalorder %s24, 1
    %p63 = por %p61, %p62
    %p64 = scmp.ne.s32.totalorder %s55, %s56
    %p65 = scmp.eq.s32.totalorder %s24, 0
    %p66 = por %p64, %p65
    %p67 = scmp.ne.s32.totalorder %s55, %s56
    %p68 = scmp.eq.s32.totalorder %s25, 1
    %p69 = por %p67, %p68
    %p71 = scmp.ne.s32.totalorder %s56, %s70
    %p72 = scmp.eq.s32.totalorder %s25, 0
    %p73 = por %p71, %p72
    %s75 = sadd.s32 %s74, 1
    %p78 = scmp.eq.s32.totalorder %s19, 1
    %p79 = scmp.ne.s32.totalorder %s74, %s76
    %p80 = scmp.eq.s32.totalorder %s19, 0
    %p81 = por %p79, %p80
    %p82 = scmp.ne.s32.totalorder %s74, %s76
    %p83 = scmp.eq.s32.totalorder %s24, 1
    %p84 = por %p82, %p83
    %p85 = scmp.ne.s32.totalorder %s76, %s77
    %p86 = scmp.eq.s32.totalorder %s24, 0
    %p87 = por %p85, %p86
    %p88 = scmp.ne.s32.totalorder %s76, %s77
    %p89 = scmp.eq.s32.totalorder %s25, 1
    %p90 = por %p88, %p89
    %p92 = scmp.ne.s32.totalorder %s77, %s91
    %p93 = scmp.eq.s32.totalorder %s25, 0
    %p94 = por %p92, %p93
    %s96 = sadd.s32 %s95, 1
    %p99 = scmp.eq.s32.totalorder %s19, 1
    %p100 = scmp.ne.s32.totalorder %s95, %s97
    %p101 = scmp.eq.s32.totalorder %s19, 0
    %p102 = por %p100, %p101
    %p103 = scmp.ne.s32.totalorder %s95, %s97
    %p104 = scmp.eq.s32.totalorder %s24, 1
    %p105 = por %p103, %p104
    %p106 = scmp.ne.s32.totalorder %s97, %s98
    %p107 = scmp.eq.s32.totalorder %s24, 0
    %p108 = por %p106, %p107
    %p109 = scmp.ne.s32.totalorder %s97, %s98
    %p110 = scmp.eq.s32.totalorder %s25, 1
    %p111 = por %p109, %p110
    %p113 = scmp.ne.s32.totalorder %s98, %s112
    %p114 = scmp.eq.s32.totalorder %s25, 0
    %p115 = por %p113, %p114
    %s117 = sadd.s32 %s116, 1
    %p120 = scmp.eq.s32.totalorder %s19, 1
    %p121 = scmp.ne.s32.totalorder %s116, %s118
    %p122 = scmp.eq.s32.totalorder %s19, 0
    %p123 = por %p121, %p122
    %p124 = scmp.ne.s32.totalorder %s116, %s118
    %p125 = scmp.eq.s32.totalorder %s24, 1
    %p126 = por %p124, %p125
    %p127 = scmp.ne.s32.totalorder %s118, %s119
    %p128 = scmp.eq.s32.totalorder %s24, 0
    %p129 = por %p127, %p128
    %p130 = scmp.ne.s32.totalorder %s118, %s119
    %p131 = scmp.eq.s32.totalorder %s25, 1
    %p132 = por %p130, %p131
    %p134 = scmp.ne.s32.totalorder %s119, %s133
    %p135 = scmp.eq.s32.totalorder %s25, 0
    %p136 = por %p134, %p135
    %s138 = sadd.s32 %s137, 1
    %p141 = scmp.eq.s32.totalorder %s19, 1
    %p142 = scmp.ne.s32.totalorder %s137, %s139
    %p143 = scmp.eq.s32.totalorder %s19, 0
    %p144 = por %p142, %p143
    %p145 = scmp.ne.s32.totalorder %s137, %s139
    %p146 = scmp.eq.s32.totalorder %s24, 1
    %p147 = por %p145, %p146
    %p148 = scmp.ne.s32.totalorder %s139, %s140
    %p149 = scmp.eq.s32.totalorder %s24, 0
    %p150 = por %p148, %p149
    %p151 = scmp.ne.s32.totalorder %s139, %s140
    %p152 = scmp.eq.s32.totalorder %s25, 1
    %p153 = por %p151, %p152
    %p155 = scmp.ne.s32.totalorder %s140, %s154
    %p156 = scmp.eq.s32.totalorder %s25, 0
    %p157 = por %p155, %p156
    %s159 = sadd.s32 %s158, 1
    %p162 = scmp.eq.s32.totalorder %s19, 1
    %p163 = scmp.ne.s32.totalorder %s158, %s160
    %p164 = scmp.eq.s32.totalorder %s19, 0
    %p165 = por %p163, %p164
    %p166 = scmp.ne.s32.totalorder %s158, %s160
    %p167 = scmp.eq.s32.totalorder %s24, 1
    %p168 = por %p166, %p167
    %p169 = scmp.ne.s32.totalorder %s160, %s161
    %p170 = scmp.eq.s32.totalorder %s24, 0
    %p171 = por %p169, %p170
    %p172 = scmp.ne.s32.totalorder %s160, %s161
    %p173 = scmp.eq.s32.totalorder %s25, 1
    %p174 = por %p172, %p173
    %p176 = scmp.ne.s32.totalorder %s161, %s175
    %p177 = scmp.eq.s32.totalorder %s25, 0
    %p178 = por %p176, %p177
    %s180 = sadd.s32 %s179, 1
    %p183 = scmp.eq.s32.totalorder %s19, 1
    %p184 = scmp.ne.s32.totalorder %s179, %s181
    %p185 = scmp.eq.s32.totalorder %s19, 0
    %p186 = por %p184, %p185
    %p187 = scmp.ne.s32.totalorder %s179, %s181
    %p188 = scmp.eq.s32.totalorder %s24, 1
    %p189 = por %p187, %p188
    %p190 = scmp.ne.s32.totalorder %s181, %s182
    %p191 = scmp.eq.s32.totalorder %s24, 0
    %p192 = por %p190, %p191
    %p193 = scmp.ne.s32.totalorder %s181, %s182
    %p194 = scmp.eq.s32.totalorder %s25, 1
    %p195 = por %p193, %p194
    %p197 = scmp.ne.s32.totalorder %s182, %s196
    %p198 = scmp.eq.s32.totalorder %s25, 0
    %p199 = por %p197, %p198
    %s201 = sadd.s32 %s200, 1
    %p204 = scmp.eq.s32.totalorder %s19, 1
    %p205 = scmp.ne.s32.totalorder %s200, %s202
    %p206 = scmp.eq.s32.totalorder %s19, 0
    %p207 = por %p205, %p206
    %p208 = scmp.ne.s32.totalorder %s200, %s202
    %p209 = scmp.eq.s32.totalorder %s24, 1
    %p210 = por %p208, %p209
    %p211 = scmp.ne.s32.totalorder %s202, %s203
    %p212 = scmp.eq.s32.totalorder %s24, 0
    %p213 = por %p211, %p212
    %p214 = scmp.ne.s32.totalorder %s202, %s203
    %p215 = scmp.eq.s32.totalorder %s25, 1
    %p216 = por %p214, %p215
    %p218 = scmp.ne.s32.totalorder %s203, %s217
    %p219 = scmp.eq.s32.totalorder %s25, 0
    %p220 = por %p218, %p219
    %s222 = sadd.s32 %s221, 1
    %p225 = scmp.eq.s32.totalorder %s19, 1
    %p226 = scmp.ne.s32.totalorder %s221, %s223
    %p227 = scmp.eq.s32.totalorder %s19, 0
    %p228 = por %p226, %p227
    %p229 = scmp.ne.s32.totalorder %s221, %s223
    %p230 = scmp.eq.s32.totalorder %s24, 1
    %p231 = por %p229, %p230
    %p232 = scmp.ne.s32.totalorder %s223, %s224
    %p233 = scmp.eq.s32.totalorder %s24, 0
    %p234 = por %p232, %p233
    %p235 = scmp.ne.s32.totalorder %s223, %s224
    %p236 = scmp.eq.s32.totalorder %s25, 1
    %p237 = por %p235, %p236
    %p239 = scmp.ne.s32.totalorder %s224, %s238
    %p240 = scmp.eq.s32.totalorder %s25, 0
    %p241 = por %p239, %p240
    %s243 = sadd.s32 %s242, 1
    %p246 = scmp.eq.s32.totalorder %s19, 1
    %p247 = scmp.ne.s32.totalorder %s242, %s244
    %p248 = scmp.eq.s32.totalorder %s19, 0
    %p249 = por %p247, %p248
    %p250 = scmp.ne.s32.totalorder %s242, %s244
    %p251 = scmp.eq.s32.totalorder %s24, 1
    %p252 = por %p250, %p251
    %p253 = scmp.ne.s32.totalorder %s244, %s245
    %p254 = scmp.eq.s32.totalorder %s24, 0
    %p255 = por %p253, %p254
    %p256 = scmp.ne.s32.totalorder %s244, %s245
    %p257 = scmp.eq.s32.totalorder %s25, 1
    %p258 = por %p256, %p257
    %p260 = scmp.ne.s32.totalorder %s245, %s259
    %p261 = scmp.eq.s32.totalorder %s25, 0
    %p262 = por %p260, %p261
    %s264 = sadd.s32 %s263, 1
    %p267 = scmp.eq.s32.totalorder %s19, 1
    %p268 = scmp.ne.s32.totalorder %s263, %s265
    %p269 = scmp.eq.s32.totalorder %s19, 0
    %p270 = por %p268, %p269
    %p271 = scmp.ne.s32.totalorder %s263, %s265
    %p272 = scmp.eq.s32.totalorder %s24, 1
    %p273 = por %p271, %p272
    %p274 = scmp.ne.s32.totalorder %s265, %s266
    %p275 = scmp.eq.s32.totalorder %s24, 0
    %p276 = por %p274, %p275
    %p277 = scmp.ne.s32.totalorder %s265, %s266
    %p278 = scmp.eq.s32.totalorder %s25, 1
    %p279 = por %p277, %p278
    %p281 = scmp.ne.s32.totalorder %s266, %s280
    %p282 = scmp.eq.s32.totalorder %s25, 0
    %p283 = por %p281, %p282
    %s285 = sadd.s32 %s284, 1
    %p288 = scmp.eq.s32.totalorder %s19, 1
    %p289 = scmp.ne.s32.totalorder %s284, %s286
    %p290 = scmp.eq.s32.totalorder %s19, 0
    %p291 = por %p289, %p290
    %p292 = scmp.ne.s32.totalorder %s284, %s286
    %p293 = scmp.eq.s32.totalorder %s24, 1
    %p294 = por %p292, %p293
    %p295 = scmp.ne.s32.totalorder %s286, %s287
    %p296 = scmp.eq.s32.totalorder %s24, 0
    %p297 = por %p295, %p296
    %p298 = scmp.ne.s32.totalorder %s286, %s287
    %p299 = scmp.eq.s32.totalorder %s25, 1
    %p300 = por %p298, %p299
    %p302 = scmp.ne.s32.totalorder %s287, %s301
    %p303 = scmp.eq.s32.totalorder %s25, 0
    %p304 = por %p302, %p303
    %s305 = ssub.s32 %s19, %s26
    %p306 = scmp.eq.s32.totalorder %s305, 0
    %s308 = sadd.s32 %s307, 1
    %s309 = scalar_select %p306, %s307, %s308
    %p312 = pneg %p306
    %p313 = scmp.eq.s32.totalorder %s19, 1
    %p314 = por %p312, %p313
    %p315 = scmp.ne.s32.totalorder %s307, %s310
    %p316 = scmp.eq.s32.totalorder %s19, 0
    %p317 = por %p315, %p316
    %p318 = scmp.ne.s32.totalorder %s307, %s310
    %p319 = scmp.eq.s32.totalorder %s24, 1
    %p320 = por %p318, %p319
    %p321 = scmp.ne.s32.totalorder %s310, %s311
    %p322 = scmp.eq.s32.totalorder %s24, 0
    %p323 = por %p321, %p322
    %p324 = scmp.ne.s32.totalorder %s310, %s311
    %p325 = scmp.eq.s32.totalorder %s25, 1
    %p326 = por %p324, %p325
    %p328 = scmp.ne.s32.totalorder %s311, %s327
    %p329 = scmp.eq.s32.totalorder %s25, 0
    %p330 = por %p328, %p329
    %p331 = scmp.le.s32.totalorder 1, %s19
    %p332 = scmp.lt.s32.totalorder %s19, 3
    %p333 = pnand %p331, %p332
    %p334 = pneg %p333
    // Predicated region
    $region9: #{self_attention.1} parent=5 // pred_check
      _
    $region10: #{self_attention.1} parent=5 // pred_check_branch
      %336 = sbr.rel (%p333) target = $region12
    $region11: #{self_attention.1} parent=5 // pred_region
      %s337 = ssub.s32 %s19, 1
      // Predicated region
      $region13: #{self_attention.1} parent=11 // pred_check
        %p338 = pneg %p66
      $region14: #{self_attention.1} parent=11 // pred_check_branch
        %340 = sbr.rel (%p338) target = $region16
      $region15: #{self_attention.1} parent=11 // pred_region
        _
      $region16: #{self_attention.1} parent=11 // pred_fallthru
        _
      // Predicated region
      $region17: #{self_attention.1} parent=11 // pred_check
        %p341 = pneg %p87
      $region18: #{self_attention.1} parent=11 // pred_check_branch
        %343 = sbr.rel (%p341) target = $region20
      $region19: #{self_attention.1} parent=11 // pred_region
        _
      $region20: #{self_attention.1} parent=11 // pred_fallthru
        _
      // Predicated region
      $region21: #{self_attention.1} parent=11 // pred_check
        %p344 = pneg %p108
      $region22: #{self_attention.1} parent=11 // pred_check_branch
        %346 = sbr.rel (%p344) target = $region24
      $region23: #{self_attention.1} parent=11 // pred_region
        _
      $region24: #{self_attention.1} parent=11 // pred_fallthru
        _
      // Predicated region
      $region25: #{self_attention.1} parent=11 // pred_check
        %p347 = pneg %p129
      $region26: #{self_attention.1} parent=11 // pred_check_branch
        %349 = sbr.rel (%p347) target = $region28
      $region27: #{self_attention.1} parent=11 // pred_region
        _
      $region28: #{self_attention.1} parent=11 // pred_fallthru
        _
      // Predicated region
      $region29: #{self_attention.1} parent=11 // pred_check
        %p350 = pneg %p150
      $region30: #{self_attention.1} parent=11 // pred_check_branch
        %352 = sbr.rel (%p350) target = $region32
      $region31: #{self_attention.1} parent=11 // pred_region
        _
      $region32: #{self_attention.1} parent=11 // pred_fallthru
        _
      // Predicated region
      $region33: #{self_attention.1} parent=11 // pred_check
        %p353 = pneg %p171
      $region34: #{self_attention.1} parent=11 // pred_check_branch
        %355 = sbr.rel (%p353) target = $region36
      $region35: #{self_attention.1} parent=11 // pred_region
        _
      $region36: #{self_attention.1} parent=11 // pred_fallthru
        _
      // Predicated region
      $region37: #{self_attention.1} parent=11 // pred_check
        %p356 = pneg %p192
      $region38: #{self_attention.1} parent=11 // pred_check_branch
        %358 = sbr.rel (%p356) target = $region40
      $region39: #{self_attention.1} parent=11 // pred_region
        _
      $region40: #{self_attention.1} parent=11 // pred_fallthru
        _
      // Predicated region
      $region41: #{self_attention.1} parent=11 // pred_check
        %p359 = pneg %p213
      $region42: #{self_attention.1} parent=11 // pred_check_branch
        %361 = sbr.rel (%p359) target = $region44
      $region43: #{self_attention.1} parent=11 // pred_region
        _
      $region44: #{self_attention.1} parent=11 // pred_fallthru
        _
      // Predicated region
      $region45: #{self_attention.1} parent=11 // pred_check
        %p362 = pneg %p234
      $region46: #{self_attention.1} parent=11 // pred_check_branch
        %364 = sbr.rel (%p362) target = $region48
      $region47: #{self_attention.1} parent=11 // pred_region
        _
      $region48: #{self_attention.1} parent=11 // pred_fallthru
        _
      // Predicated region
      $region49: #{self_attention.1} parent=11 // pred_check
        %p365 = pneg %p255
      $region50: #{self_attention.1} parent=11 // pred_check_branch
        %367 = sbr.rel (%p365) target = $region52
      $region51: #{self_attention.1} parent=11 // pred_region
        _
      $region52: #{self_attention.1} parent=11 // pred_fallthru
        _
      // Predicated region
      $region53: #{self_attention.1} parent=11 // pred_check
        %p368 = pneg %p276
      $region54: #{self_attention.1} parent=11 // pred_check_branch
        %370 = sbr.rel (%p368) target = $region56
      $region55: #{self_attention.1} parent=11 // pred_region
        _
      $region56: #{self_attention.1} parent=11 // pred_fallthru
        _
      // Predicated region
      $region57: #{self_attention.1} parent=11 // pred_check
        %p371 = pneg %p297
      $region58: #{self_attention.1} parent=11 // pred_check_branch
        %373 = sbr.rel (%p371) target = $region60
      $region59: #{self_attention.1} parent=11 // pred_region
        _
      $region60: #{self_attention.1} parent=11 // pred_fallthru
        _
    $region12: #{self_attention.1} parent=5 // pred_fallthru
      _
    %p374 = scmp.lt.s32.totalorder %s19, 2
    // Predicated region
    $region61: #{self_attention.1} parent=5 // pred_check
      %p375 = pneg %p374
    $region62: #{self_attention.1} parent=5 // pred_check_branch
      %377 = sbr.rel (%p375) target = $region64
    $region63: #{self_attention.1} parent=5 // pred_region
      // Predicated region
      $region65: #{self_attention.1} parent=63 // pred_check
        %p378 = pneg %p39
      $region66: #{self_attention.1} parent=63 // pred_check_branch
        %380 = sbr.rel (%p378) target = $region68
      $region67: #{self_attention.1} parent=63 // pred_region
        %p381 = scmp.lt.s32.totalorder %s19, 1
        %s382 = scalar_select %p381, %s19, 1
        %s383 = smul.addr %s382, 32
        %s384 = smul.addr %s383, 8
        %s385 = scalar_lea.vmem %s0, %s384
      $region68: #{self_attention.1} parent=63 // pred_fallthru
        _
    $region64: #{self_attention.1} parent=5 // pred_fallthru
      _
    %p386 = scmp.le.s32.totalorder 1, %s19
    %p387 = scmp.lt.s32.totalorder %s19, 3
    %p388 = pnand %p386, %p387
    %p389 = pneg %p388
    // Predicated region
    $region69: #{self_attention.1} parent=5 // pred_check
      _
    $region70: #{self_attention.1} parent=5 // pred_check_branch
      %391 = sbr.rel (%p388) target = $region72
    $region71: #{self_attention.1} parent=5 // pred_region
      %s392 = ssub.s32 %s19, 1
      %p393 = scmp.lt.s32.totalorder %s24, 1
      %s394 = scalar_select %p393, %s24, 1
      %s395 = smul.addr %s394, 32
      %s396 = smul.addr %s395, 8
      %s397 = scalar_lea.vmem %s0, %s396
      %p398 = pneg %p45
      %p399 = pneg %p42
      %p400 = pneg %p66
      %p401 = pneg %p63
      %p402 = pneg %p87
      %p403 = pneg %p84
      %p404 = pneg %p108
      %p405 = pneg %p105
      %p406 = pneg %p129
      %p407 = pneg %p126
      %p408 = pneg %p150
      %p409 = pneg %p147
      %p410 = pneg %p171
      %p411 = pneg %p168
      %p412 = pneg %p192
      %p413 = pneg %p189
      %p414 = pneg %p213
      %p415 = pneg %p210
      %p416 = pneg %p234
      %p417 = pneg %p231
      %p418 = pneg %p255
      %p419 = pneg %p252
      %p420 = pneg %p276
      %p421 = pneg %p273
      %p422 = pneg %p297
      %p423 = pneg %p294
      %p424 = pneg %p323
      %p425 = pneg %p320
      %p426 = scmp.lt.s32.totalorder %s24, 1
      %s427 = scalar_select %p426, %s24, 1
      %s428 = smul.addr %s427, 32
      %s429 = smul.addr %s428, 8
      %s430 = scalar_lea.vmem %s13, %s429
      %p431 = scmp.lt.s32.totalorder %s24, 1
      %s432 = scalar_select %p431, %s24, 1
      %s433 = smul.addr %s432, 32
      %s434 = smul.addr %s433, 8
      %s435 = scalar_lea.vmem %s0, %s434
      %p436 = scmp.lt.s32.totalorder %s24, 1
      %s437 = scalar_select %p436, %s24, 1
      %s438 = smul.addr %s437, 32
      %s439 = smul.addr %s438, 8
      %s440 = scalar_lea.vmem %s13, %s439
      %v442 = vld [vmem:[%s1] sm:$0xff]
      %v443 = vld [vmem:[%s1 + $0x8] sm:$0xff]
      %v444 = vld [vmem:[%s1 + $0x10] sm:$0xff]
      %v445 = vld [vmem:[%s1 + $0x18] sm:$0xff]
      %v446 = vld [vmem:[%s1 + $0x20] sm:$0xff]
      %v447 = vld [vmem:[%s1 + $0x28] sm:$0xff]
      %v448 = vld [vmem:[%s1 + $0x30] sm:$0xff]
      %v449 = vld [vmem:[%s1 + $0x38] sm:$0xff]
      %v450 = vld [vmem:[%s1 + $0x40] sm:$0xff]
      %v451 = vld [vmem:[%s1 + $0x48] sm:$0xff]
      %v452 = vld [vmem:[%s1 + $0x50] sm:$0xff]
      %v453 = vld [vmem:[%s1 + $0x58] sm:$0xff]
      %v454 = vld [vmem:[%s1 + $0x60] sm:$0xff]
      %v455 = vld [vmem:[%s1 + $0x68] sm:$0xff]
      %v456 = vld [vmem:[%s1 + $0x70] sm:$0xff]
      %v457 = vld [vmem:[%s1 + $0x78] sm:$0xff]
      %v458 = vld [vmem:[%s2] sm:$0xff]
      %v459 = vld [vmem:[%s2 + $0x8] sm:$0xff]
      %v460 = vld [vmem:[%s2 + $0x10] sm:$0xff]
      %v461 = vld [vmem:[%s2 + $0x18] sm:$0xff]
      %v462 = vld [vmem:[%s2 + $0x20] sm:$0xff]
      %v463 = vld [vmem:[%s2 + $0x28] sm:$0xff]
      %v464 = vld [vmem:[%s2 + $0x30] sm:$0xff]
      %v465 = vld [vmem:[%s2 + $0x38] sm:$0xff]
      %v466 = vld [vmem:[%s2 + $0x40] sm:$0xff]
      %v467 = vld [vmem:[%s2 + $0x48] sm:$0xff]
      %v468 = vld [vmem:[%s2 + $0x50] sm:$0xff]
      %v469 = vld [vmem:[%s2 + $0x58] sm:$0xff]
      %v470 = vld [vmem:[%s2 + $0x60] sm:$0xff]
      %v471 = vld [vmem:[%s2 + $0x68] sm:$0xff]
      %v472 = vld [vmem:[%s2 + $0x70] sm:$0xff]
      %v473 = vld [vmem:[%s2 + $0x78] sm:$0xff]
      %v474 = vld [vmem:[%s7] sm:$0xff]
      %v475 = vld [vmem:[%s7 + $0x8] sm:$0xff]
      %v476 = vld [vmem:[%s7 + $0x10] sm:$0xff]
      %v477 = vld [vmem:[%s7 + $0x18] sm:$0xff]
      %v478 = vld [vmem:[%s7 + $0x20] sm:$0xff]
      %v479 = vld [vmem:[%s7 + $0x28] sm:$0xff]
      %v480 = vld [vmem:[%s7 + $0x30] sm:$0xff]
      %v481 = vld [vmem:[%s7 + $0x38] sm:$0xff]
      %v482 = vld [vmem:[%s7 + $0x40] sm:$0xff]
      %v483 = vld [vmem:[%s7 + $0x48] sm:$0xff]
      %v484 = vld [vmem:[%s7 + $0x50] sm:$0xff]
      %v485 = vld [vmem:[%s7 + $0x58] sm:$0xff]
      %v486 = vld [vmem:[%s7 + $0x60] sm:$0xff]
      %v487 = vld [vmem:[%s7 + $0x68] sm:$0xff]
      %v488 = vld [vmem:[%s7 + $0x70] sm:$0xff]
      %v489 = vld [vmem:[%s7 + $0x78] sm:$0xff]
      %v490 = vld [vmem:[%s8] sm:$0xff]
      %v491 = vld [vmem:[%s8 + $0x8] sm:$0xff]
      %v492 = vld [vmem:[%s8 + $0x10] sm:$0xff]
      %v493 = vld [vmem:[%s8 + $0x18] sm:$0xff]
      %v494 = vld [vmem:[%s8 + $0x20] sm:$0xff]
      %v495 = vld [vmem:[%s8 + $0x28] sm:$0xff]
      %v496 = vld [vmem:[%s8 + $0x30] sm:$0xff]
      %v497 = vld [vmem:[%s8 + $0x38] sm:$0xff]
      %v498 = vld [vmem:[%s8 + $0x40] sm:$0xff]
      %v499 = vld [vmem:[%s8 + $0x48] sm:$0xff]
      %v500 = vld [vmem:[%s8 + $0x50] sm:$0xff]
      %v501 = vld [vmem:[%s8 + $0x58] sm:$0xff]
      %v502 = vld [vmem:[%s8 + $0x60] sm:$0xff]
      %v503 = vld [vmem:[%s8 + $0x68] sm:$0xff]
      %v504 = vld [vmem:[%s8 + $0x70] sm:$0xff]
      %v505 = vld [vmem:[%s8 + $0x78] sm:$0xff]
      %v506 = vld [vmem:[%s3] sm:$0xf]
      %v507 = vld [vmem:[%s3 + $0x4] sm:$0xf]
      %v508 = vld [vmem:[%s3 + $0x8] sm:$0xf]
      %v509 = vld [vmem:[%s3 + $0xc] sm:$0xf]
      %v510 = vld [vmem:[%s3 + $0x10] sm:$0xf]
      %v511 = vld [vmem:[%s3 + $0x14] sm:$0xf]
      %v512 = vld [vmem:[%s3 + $0x18] sm:$0xf]
      %v513 = vld [vmem:[%s3 + $0x1c] sm:$0xf]
      %v514 = vld [vmem:[%s3 + $0x20] sm:$0xf]
      %v515 = vld [vmem:[%s3 + $0x24] sm:$0xf]
      %v516 = vld [vmem:[%s3 + $0x28] sm:$0xf]
      %v517 = vld [vmem:[%s3 + $0x2c] sm:$0xf]
      %v518 = vld [vmem:[%s3 + $0x30] sm:$0xf]
      %v519 = vld [vmem:[%s3 + $0x34] sm:$0xf]
      %v520 = vld [vmem:[%s3 + $0x38] sm:$0xf]
      %v521 = vld [vmem:[%s3 + $0x3c] sm:$0xf]
      %v522 = vld [vmem:[%s3 + $0x40] sm:$0xf]
      %v523 = vld [vmem:[%s3 + $0x44] sm:$0xf]
      %v524 = vld [vmem:[%s3 + $0x48] sm:$0xf]
      %v525 = vld [vmem:[%s3 + $0x4c] sm:$0xf]
      %v526 = vld [vmem:[%s3 + $0x50] sm:$0xf]
      %v527 = vld [vmem:[%s3 + $0x54] sm:$0xf]
      %v528 = vld [vmem:[%s3 + $0x58] sm:$0xf]
      %v529 = vld [vmem:[%s3 + $0x5c] sm:$0xf]
      %v530 = vld [vmem:[%s3 + $0x60] sm:$0xf]
      %v531 = vld [vmem:[%s3 + $0x64] sm:$0xf]
      %v532 = vld [vmem:[%s3 + $0x68] sm:$0xf]
      %v533 = vld [vmem:[%s3 + $0x6c] sm:$0xf]
      %v534 = vld [vmem:[%s3 + $0x70] sm:$0xf]
      %v535 = vld [vmem:[%s3 + $0x74] sm:$0xf]
      %v536 = vld [vmem:[%s3 + $0x78] sm:$0xf]
      %v537 = vld [vmem:[%s3 + $0x7c] sm:$0xf]
      %v538 = vld [vmem:[%s3 + $0x80] sm:$0xf]
      %v539 = vld [vmem:[%s3 + $0x84] sm:$0xf]
      %v540 = vld [vmem:[%s3 + $0x88] sm:$0xf]
      %v541 = vld [vmem:[%s3 + $0x8c] sm:$0xf]
      %v542 = vld [vmem:[%s3 + $0x90] sm:$0xf]
      %v543 = vld [vmem:[%s3 + $0x94] sm:$0xf]
      %v544 = vld [vmem:[%s3 + $0x98] sm:$0xf]
      %v545 = vld [vmem:[%s3 + $0x9c] sm:$0xf]
      %v546 = vld [vmem:[%s3 + $0xa0] sm:$0xf]
      %v547 = vld [vmem:[%s3 + $0xa4] sm:$0xf]
      %v548 = vld [vmem:[%s3 + $0xa8] sm:$0xf]
      %v549 = vld [vmem:[%s3 + $0xac] sm:$0xf]
      %v550 = vld [vmem:[%s3 + $0xb0] sm:$0xf]
      %v551 = vld [vmem:[%s3 + $0xb4] sm:$0xf]
      %v552 = vld [vmem:[%s3 + $0xb8] sm:$0xf]
      %v553 = vld [vmem:[%s3 + $0xbc] sm:$0xf]
      %v554 = vld [vmem:[%s4] sm:$0xff]
      %v555 = vld [vmem:[%s4 + $0x8] sm:$0xff]
      %v556 = vld [vmem:[%s4 + $0x10] sm:$0xff]
      %v557 = vld [vmem:[%s4 + $0x18] sm:$0xff]
      %v558 = vld [vmem:[%s4 + $0x20] sm:$0xff]
      %v559 = vld [vmem:[%s4 + $0x28] sm:$0xff]
      %v560 = vld [vmem:[%s4 + $0x30] sm:$0xff]
      %v561 = vld [vmem:[%s4 + $0x38] sm:$0xff]
      %v562 = vld [vmem:[%s4 + $0x40] sm:$0xff]
      %v563 = vld [vmem:[%s4 + $0x48] sm:$0xff]
      %v564 = vld [vmem:[%s4 + $0x50] sm:$0xff]
      %v565 = vld [vmem:[%s4 + $0x58] sm:$0xff]
      %v566 = vld [vmem:[%s4 + $0x60] sm:$0xff]
      %v567 = vld [vmem:[%s4 + $0x68] sm:$0xff]
      %v568 = vld [vmem:[%s4 + $0x70] sm:$0xff]
      %v569 = vld [vmem:[%s4 + $0x78] sm:$0xff]
      %v570 = vld [vmem:[%s4 + $0x80] sm:$0xff]
      %v571 = vld [vmem:[%s4 + $0x88] sm:$0xff]
      %v572 = vld [vmem:[%s4 + $0x90] sm:$0xff]
      %v573 = vld [vmem:[%s4 + $0x98] sm:$0xff]
      %v574 = vld [vmem:[%s4 + $0xa0] sm:$0xff]
      %v575 = vld [vmem:[%s4 + $0xa8] sm:$0xff]
      %v576 = vld [vmem:[%s4 + $0xb0] sm:$0xff]
      %v577 = vld [vmem:[%s4 + $0xb8] sm:$0xff]
      %v578 = vld [vmem:[%s4 + $0xc0] sm:$0xff]
      %v579 = vld [vmem:[%s4 + $0xc8] sm:$0xff]
      %v580 = vld [vmem:[%s4 + $0xd0] sm:$0xff]
      %v581 = vld [vmem:[%s4 + $0xd8] sm:$0xff]
      %v582 = vld [vmem:[%s4 + $0xe0] sm:$0xff]
      %v583 = vld [vmem:[%s4 + $0xe8] sm:$0xff]
      %v584 = vld [vmem:[%s4 + $0xf0] sm:$0xff]
      %v585 = vld [vmem:[%s4 + $0xf8] sm:$0xff]
      %v586 = vld [vmem:[%s4 + $0x100] sm:$0xff]
      %v587 = vld [vmem:[%s4 + $0x108] sm:$0xff]
      %v588 = vld [vmem:[%s4 + $0x110] sm:$0xff]
      %v589 = vld [vmem:[%s4 + $0x118] sm:$0xff]
      %v590 = vld [vmem:[%s4 + $0x120] sm:$0xff]
      %v591 = vld [vmem:[%s4 + $0x128] sm:$0xff]
      %v592 = vld [vmem:[%s4 + $0x130] sm:$0xff]
      %v593 = vld [vmem:[%s4 + $0x138] sm:$0xff]
      %v594 = vld [vmem:[%s4 + $0x140] sm:$0xff]
      %v595 = vld [vmem:[%s4 + $0x148] sm:$0xff]
      %v596 = vld [vmem:[%s4 + $0x150] sm:$0xff]
      %v597 = vld [vmem:[%s4 + $0x158] sm:$0xff]
      %v598 = vld [vmem:[%s4 + $0x160] sm:$0xff]
      %v599 = vld [vmem:[%s4 + $0x168] sm:$0xff]
      %v600 = vld [vmem:[%s4 + $0x170] sm:$0xff]
      %v601 = vld [vmem:[%s4 + $0x178] sm:$0xff]
      %v602 = vld [vmem:[%s5] sm:$0xf]
      %v603 = vld [vmem:[%s5 + $0x4] sm:$0xf]
      %v604 = vld [vmem:[%s5 + $0x8] sm:$0xf]
      %v605 = vld [vmem:[%s5 + $0xc] sm:$0xf]
      %v606 = vld [vmem:[%s5 + $0x10] sm:$0xf]
      %v607 = vld [vmem:[%s5 + $0x14] sm:$0xf]
      %v608 = vld [vmem:[%s5 + $0x18] sm:$0xf]
      %v609 = vld [vmem:[%s5 + $0x1c] sm:$0xf]
      %v610 = vld [vmem:[%s5 + $0x20] sm:$0xf]
      %v611 = vld [vmem:[%s5 + $0x24] sm:$0xf]
      %v612 = vld [vmem:[%s5 + $0x28] sm:$0xf]
      %v613 = vld [vmem:[%s5 + $0x2c] sm:$0xf]
      %v614 = vld [vmem:[%s5 + $0x30] sm:$0xf]
      %v615 = vld [vmem:[%s5 + $0x34] sm:$0xf]
      %v616 = vld [vmem:[%s5 + $0x38] sm:$0xf]
      %v617 = vld [vmem:[%s5 + $0x3c] sm:$0xf]
      %v618 = vld [vmem:[%s6] sm:$0xff]
      %v619 = vld [vmem:[%s6 + $0x8] sm:$0xff]
      %v620 = vld [vmem:[%s6 + $0x10] sm:$0xff]
      %v621 = vld [vmem:[%s6 + $0x18] sm:$0xff]
      %v622 = vld [vmem:[%s6 + $0x20] sm:$0xff]
      %v623 = vld [vmem:[%s6 + $0x28] sm:$0xff]
      %v624 = vld [vmem:[%s6 + $0x30] sm:$0xff]
      %v625 = vld [vmem:[%s6 + $0x38] sm:$0xff]
      %v626 = vld [vmem:[%s6 + $0x40] sm:$0xff]
      %v627 = vld [vmem:[%s6 + $0x48] sm:$0xff]
      %v628 = vld [vmem:[%s6 + $0x50] sm:$0xff]
      %v629 = vld [vmem:[%s6 + $0x58] sm:$0xff]
      %v630 = vld [vmem:[%s6 + $0x60] sm:$0xff]
      %v631 = vld [vmem:[%s6 + $0x68] sm:$0xff]
      %v632 = vld [vmem:[%s6 + $0x70] sm:$0xff]
      %v633 = vld [vmem:[%s6 + $0x78] sm:$0xff]
      %v634 = vld [vmem:[%s9] sm:$0xf]
      %v635 = vld [vmem:[%s9 + $0x4] sm:$0xf]
      %v636 = vld [vmem:[%s9 + $0x8] sm:$0xf]
      %v637 = vld [vmem:[%s9 + $0xc] sm:$0xf]
      %v638 = vld [vmem:[%s9 + $0x10] sm:$0xf]
      %v639 = vld [vmem:[%s9 + $0x14] sm:$0xf]
      %v640 = vld [vmem:[%s9 + $0x18] sm:$0xf]
      %v641 = vld [vmem:[%s9 + $0x1c] sm:$0xf]
      %v642 = vld [vmem:[%s9 + $0x20] sm:$0xf]
      %v643 = vld [vmem:[%s9 + $0x24] sm:$0xf]
      %v644 = vld [vmem:[%s9 + $0x28] sm:$0xf]
      %v645 = vld [vmem:[%s9 + $0x2c] sm:$0xf]
      %v646 = vld [vmem:[%s9 + $0x30] sm:$0xf]
      %v647 = vld [vmem:[%s9 + $0x34] sm:$0xf]
      %v648 = vld [vmem:[%s9 + $0x38] sm:$0xf]
      %v649 = vld [vmem:[%s9 + $0x3c] sm:$0xf]
      %v650 = vld [vmem:[%s10] sm:$0xff]
      %v651 = vld [vmem:[%s10 + $0x8] sm:$0xff]
      %v652 = vld [vmem:[%s10 + $0x10] sm:$0xff]
      %v653 = vld [vmem:[%s10 + $0x18] sm:$0xff]
      %v654 = vld [vmem:[%s10 + $0x20] sm:$0xff]
      %v655 = vld [vmem:[%s10 + $0x28] sm:$0xff]
      %v656 = vld [vmem:[%s10 + $0x30] sm:$0xff]
      %v657 = vld [vmem:[%s10 + $0x38] sm:$0xff]
      %v658 = vld [vmem:[%s10 + $0x40] sm:$0xff]
      %v659 = vld [vmem:[%s10 + $0x48] sm:$0xff]
      %v660 = vld [vmem:[%s10 + $0x50] sm:$0xff]
      %v661 = vld [vmem:[%s10 + $0x58] sm:$0xff]
      %v662 = vld [vmem:[%s10 + $0x60] sm:$0xff]
      %v663 = vld [vmem:[%s10 + $0x68] sm:$0xff]
      %v664 = vld [vmem:[%s10 + $0x70] sm:$0xff]
      %v665 = vld [vmem:[%s10 + $0x78] sm:$0xff]
      %v666 = vld [vmem:[%s11] sm:$0xf]
      %v667 = vld [vmem:[%s11 + $0x4] sm:$0xf]
      %v668 = vld [vmem:[%s11 + $0x8] sm:$0xf]
      %v669 = vld [vmem:[%s11 + $0xc] sm:$0xf]
      %v670 = vld [vmem:[%s11 + $0x10] sm:$0xf]
      %v671 = vld [vmem:[%s11 + $0x14] sm:$0xf]
      %v672 = vld [vmem:[%s11 + $0x18] sm:$0xf]
      %v673 = vld [vmem:[%s11 + $0x1c] sm:$0xf]
      %v674 = vld [vmem:[%s11 + $0x20] sm:$0xf]
      %v675 = vld [vmem:[%s11 + $0x24] sm:$0xf]
      %v676 = vld [vmem:[%s11 + $0x28] sm:$0xf]
      %v677 = vld [vmem:[%s11 + $0x2c] sm:$0xf]
      %v678 = vld [vmem:[%s11 + $0x30] sm:$0xf]
      %v679 = vld [vmem:[%s11 + $0x34] sm:$0xf]
      %v680 = vld [vmem:[%s11 + $0x38] sm:$0xf]
      %v681 = vld [vmem:[%s11 + $0x3c] sm:$0xf]
      %v682 = vld [vmem:[%s12] sm:$0xff]
      %v683 = vld [vmem:[%s12 + $0x8] sm:$0xff]
      %v684 = vld [vmem:[%s12 + $0x10] sm:$0xff]
      %v685 = vld [vmem:[%s12 + $0x18] sm:$0xff]
      %v686 = vld [vmem:[%s12 + $0x20] sm:$0xff]
      %v687 = vld [vmem:[%s12 + $0x28] sm:$0xff]
      %v688 = vld [vmem:[%s12 + $0x30] sm:$0xff]
      %v689 = vld [vmem:[%s12 + $0x38] sm:$0xff]
      %v690 = vld [vmem:[%s12 + $0x40] sm:$0xff]
      %v691 = vld [vmem:[%s12 + $0x48] sm:$0xff]
      %v692 = vld [vmem:[%s12 + $0x50] sm:$0xff]
      %v693 = vld [vmem:[%s12 + $0x58] sm:$0xff]
      %v694 = vld [vmem:[%s12 + $0x60] sm:$0xff]
      %v695 = vld [vmem:[%s12 + $0x68] sm:$0xff]
      %v696 = vld [vmem:[%s12 + $0x70] sm:$0xff]
      %v697 = vld [vmem:[%s12 + $0x78] sm:$0xff]
      %v698 = vld [vmem:[%s435] sm:$0xff]
      %v699 = vld [vmem:[%s435 + $0x8] sm:$0xff]
      %v700 = vld [vmem:[%s435 + $0x10] sm:$0xff]
      %v701 = vld [vmem:[%s435 + $0x18] sm:$0xff]
      %v702 = vld [vmem:[%s435 + $0x20] sm:$0xff]
      %v703 = vld [vmem:[%s435 + $0x28] sm:$0xff]
      %v704 = vld [vmem:[%s435 + $0x30] sm:$0xff]
      %v705 = vld [vmem:[%s435 + $0x38] sm:$0xff]
      %v706 = vld [vmem:[%s435 + $0x40] sm:$0xff]
      %v707 = vld [vmem:[%s435 + $0x48] sm:$0xff]
      %v708 = vld [vmem:[%s435 + $0x50] sm:$0xff]
      %v709 = vld [vmem:[%s435 + $0x58] sm:$0xff]
      %v710 = vld [vmem:[%s435 + $0x60] sm:$0xff]
      %v711 = vld [vmem:[%s435 + $0x68] sm:$0xff]
      %v712 = vld [vmem:[%s435 + $0x70] sm:$0xff]
      %v713 = vld [vmem:[%s435 + $0x78] sm:$0xff]
      %v714 = vld [vmem:[%s435 + $0x80] sm:$0xff]
      %v715 = vld [vmem:[%s435 + $0x88] sm:$0xff]
      %v716 = vld [vmem:[%s435 + $0x90] sm:$0xff]
      %v717 = vld [vmem:[%s435 + $0x98] sm:$0xff]
      %v718 = vld [vmem:[%s435 + $0xa0] sm:$0xff]
      %v719 = vld [vmem:[%s435 + $0xa8] sm:$0xff]
      %v720 = vld [vmem:[%s435 + $0xb0] sm:$0xff]
      %v721 = vld [vmem:[%s435 + $0xb8] sm:$0xff]
      %v722 = vld [vmem:[%s435 + $0xc0] sm:$0xff]
      %v723 = vld [vmem:[%s435 + $0xc8] sm:$0xff]
      %v724 = vld [vmem:[%s435 + $0xd0] sm:$0xff]
      %v725 = vld [vmem:[%s435 + $0xd8] sm:$0xff]
      %v726 = vld [vmem:[%s435 + $0xe0] sm:$0xff]
      %v727 = vld [vmem:[%s435 + $0xe8] sm:$0xff]
      %v728 = vld [vmem:[%s435 + $0xf0] sm:$0xff]
      %v729 = vld [vmem:[%s435 + $0xf8] sm:$0xff]
      %v730 = vadd.f32 %v698, %v700
      %v731 = vadd.f32 %v730, %v702
      %v732 = vadd.f32 %v731, %v704
      %v733 = vadd.f32 %v732, %v706
      %v734 = vadd.f32 %v733, %v708
      %v735 = vadd.f32 %v734, %v710
      %v736 = vadd.f32 %v735, %v712
      %v737 = vadd.f32 %v736, %v714
      %v738 = vadd.f32 %v737, %v716
      %v739 = vadd.f32 %v738, %v718
      %v740 = vadd.f32 %v739, %v720
      %v741 = vadd.f32 %v740, %v722
      %v742 = vadd.f32 %v741, %v724
      %v743 = vadd.f32 %v742, %v726
      %v744 = vadd.f32 %v743, %v728
      %v745 = vrot.slane %v744, 4
      %v746 = vadd.f32 %v744, %v745
      %v747 = vrot.slane %v746, 2
      %v748 = vadd.f32 %v746, %v747
      %v749 = vrot.slane %v748, 1
      %v750 = vadd.f32 %v748, %v749
      %v751 = vadd.f32 %v699, %v701
      %v752 = vadd.f32 %v751, %v703
      %v753 = vadd.f32 %v752, %v705
      %v754 = vadd.f32 %v753, %v707
      %v755 = vadd.f32 %v754, %v709
      %v756 = vadd.f32 %v755, %v711
      %v757 = vadd.f32 %v756, %v713
      %v758 = vadd.f32 %v757, %v715
      %v759 = vadd.f32 %v758, %v717
      %v760 = vadd.f32 %v759, %v719
      %v761 = vadd.f32 %v760, %v721
      %v762 = vadd.f32 %v761, %v723
      %v763 = vadd.f32 %v762, %v725
      %v764 = vadd.f32 %v763, %v727
      %v765 = vadd.f32 %v764, %v729
      %v766 = vrot.slane %v765, 4
      %v767 = vadd.f32 %v765, %v766
      %v768 = vrot.slane %v767, 2
      %v769 = vadd.f32 %v767, %v768
      %v770 = vrot.slane %v769, 1
      %v771 = vadd.f32 %v769, %v770
      %v772 = vrcp.pop 128.0
      %v773 = vmul.f32 %v750, %v772
      %v774 = vmul.f32 %v771, %v772
      %v775 = vsub.f32 %v698, %v773
      %v776 = vsub.f32 %v699, %v774
      %v777 = vsub.f32 %v700, %v773
      %v778 = vsub.f32 %v701, %v774
      %v779 = vsub.f32 %v702, %v773
      %v780 = vsub.f32 %v703, %v774
      %v781 = vsub.f32 %v704, %v773
      %v782 = vsub.f32 %v705, %v774
      %v783 = vsub.f32 %v706, %v773
      %v784 = vsub.f32 %v707, %v774
      %v785 = vsub.f32 %v708, %v773
      %v786 = vsub.f32 %v709, %v774
      %v787 = vsub.f32 %v710, %v773
      %v788 = vsub.f32 %v711, %v774
      %v789 = vsub.f32 %v712, %v773
      %v790 = vsub.f32 %v713, %v774
      %v791 = vsub.f32 %v714, %v773
      %v792 = vsub.f32 %v715, %v774
      %v793 = vsub.f32 %v716, %v773
      %v794 = vsub.f32 %v717, %v774
      %v795 = vsub.f32 %v718, %v773
      %v796 = vsub.f32 %v719, %v774
      %v797 = vsub.f32 %v720, %v773
      %v798 = vsub.f32 %v721, %v774
      %v799 = vsub.f32 %v722, %v773
      %v800 = vsub.f32 %v723, %v774
      %v801 = vsub.f32 %v724, %v773
      %v802 = vsub.f32 %v725, %v774
      %v803 = vsub.f32 %v726, %v773
      %v804 = vsub.f32 %v727, %v774
      %v805 = vsub.f32 %v728, %v773
      %v806 = vsub.f32 %v729, %v774
      %v807 = vmul.f32 %v775, %v775
      %v808 = vmul.f32 %v776, %v776
      %v809 = vmul.f32 %v777, %v777
      %v810 = vmul.f32 %v778, %v778
      %v811 = vmul.f32 %v779, %v779
      %v812 = vmul.f32 %v780, %v780
      %v813 = vmul.f32 %v781, %v781
      %v814 = vmul.f32 %v782, %v782
      %v815 = vmul.f32 %v783, %v783
      %v816 = vmul.f32 %v784, %v784
      %v817 = vmul.f32 %v785, %v785
      %v818 = vmul.f32 %v786, %v786
      %v819 = vmul.f32 %v787, %v787
      %v820 = vmul.f32 %v788, %v788
      %v821 = vmul.f32 %v789, %v789
      %v822 = vmul.f32 %v790, %v790
      %v823 = vmul.f32 %v791, %v791
      %v824 = vmul.f32 %v792, %v792
      %v825 = vmul.f32 %v793, %v793
      %v826 = vmul.f32 %v794, %v794
      %v827 = vmul.f32 %v795, %v795
      %v828 = vmul.f32 %v796, %v796
      %v829 = vmul.f32 %v797, %v797
      %v830 = vmul.f32 %v798, %v798
      %v831 = vmul.f32 %v799, %v799
      %v832 = vmul.f32 %v800, %v800
      %v833 = vmul.f32 %v801, %v801
      %v834 = vmul.f32 %v802, %v802
      %v835 = vmul.f32 %v803, %v803
      %v836 = vmul.f32 %v804, %v804
      %v837 = vmul.f32 %v805, %v805
      %v838 = vmul.f32 %v806, %v806
      %v839 = vadd.f32 %v807, %v809
      %v840 = vadd.f32 %v839, %v811
      %v841 = vadd.f32 %v840, %v813
      %v842 = vadd.f32 %v841, %v815
      %v843 = vadd.f32 %v842, %v817
      %v844 = vadd.f32 %v843, %v819
      %v845 = vadd.f32 %v844, %v821
      %v846 = vadd.f32 %v845, %v823
      %v847 = vadd.f32 %v846, %v825
      %v848 = vadd.f32 %v847, %v827
      %v849 = vadd.f32 %v848, %v829
      %v850 = vadd.f32 %v849, %v831
      %v851 = vadd.f32 %v850, %v833
      %v852 = vadd.f32 %v851, %v835
      %v853 = vadd.f32 %v852, %v837
      %v854 = vrot.slane %v853, 4
      %v855 = vadd.f32 %v853, %v854
      %v856 = vrot.slane %v855, 2
      %v857 = vadd.f32 %v855, %v856
      %v858 = vrot.slane %v857, 1
      %v859 = vadd.f32 %v857, %v858
      %v860 = vadd.f32 %v808, %v810
      %v861 = vadd.f32 %v860, %v812
      %v862 = vadd.f32 %v861, %v814
      %v863 = vadd.f32 %v862, %v816
      %v864 = vadd.f32 %v863, %v818
      %v865 = vadd.f32 %v864, %v820
      %v866 = vadd.f32 %v865, %v822
      %v867 = vadd.f32 %v866, %v824
      %v868 = vadd.f32 %v867, %v826
      %v869 = vadd.f32 %v868, %v828
      %v870 = vadd.f32 %v869, %v830
      %v871 = vadd.f32 %v870, %v832
      %v872 = vadd.f32 %v871, %v834
      %v873 = vadd.f32 %v872, %v836
      %v874 = vadd.f32 %v873, %v838
      %v875 = vrot.slane %v874, 4
      %v876 = vadd.f32 %v874, %v875
      %v877 = vrot.slane %v876, 2
      %v878 = vadd.f32 %v876, %v877
      %v879 = vrot.slane %v878, 1
      %v880 = vadd.f32 %v878, %v879
      %v881 = vmul.f32 %v859, %v772
      %v882 = vmul.f32 %v880, %v772
      %v883 = vadd.f32 %v881, 1e-05
      %v884 = vadd.f32 %v882, 1e-05
      %v885 = vrsqrt.pop %v883
      %v886 = vrsqrt.pop %v884
      %v887 = vmul.f32 %v775, %v885
      %v888 = vmul.f32 %v776, %v886
      %v889 = vmul.f32 %v777, %v885
      %v890 = vmul.f32 %v778, %v886
      %v891 = vmul.f32 %v779, %v885
      %v892 = vmul.f32 %v780, %v886
      %v893 = vmul.f32 %v781, %v885
      %v894 = vmul.f32 %v782, %v886
      %v895 = vmul.f32 %v783, %v885
      %v896 = vmul.f32 %v784, %v886
      %v897 = vmul.f32 %v785, %v885
      %v898 = vmul.f32 %v786, %v886
      %v899 = vmul.f32 %v787, %v885
      %v900 = vmul.f32 %v788, %v886
      %v901 = vmul.f32 %v789, %v885
      %v902 = vmul.f32 %v790, %v886
      %v903 = vmul.f32 %v791, %v885
      %v904 = vmul.f32 %v792, %v886
      %v905 = vmul.f32 %v793, %v885
      %v906 = vmul.f32 %v794, %v886
      %v907 = vmul.f32 %v795, %v885
      %v908 = vmul.f32 %v796, %v886
      %v909 = vmul.f32 %v797, %v885
      %v910 = vmul.f32 %v798, %v886
      %v911 = vmul.f32 %v799, %v885
      %v912 = vmul.f32 %v800, %v886
      %v913 = vmul.f32 %v801, %v885
      %v914 = vmul.f32 %v802, %v886
      %v915 = vmul.f32 %v803, %v885
      %v916 = vmul.f32 %v804, %v886
      %v917 = vmul.f32 %v805, %v885
      %v918 = vmul.f32 %v806, %v886
      %920 = vset.pattern.permute.xlu0 0
      %921 = vperm.xlu0 %920, %v442
      %v922 = vpop.permute.xlu0 %921
      %925 = vset.pattern.permute.xlu0 0
      %926 = vperm.xlu0 %925, %v443
      %v927 = vpop.permute.xlu0 %926
      %930 = vset.pattern.permute.xlu0 0
      %931 = vperm.xlu0 %930, %v444
      %v932 = vpop.permute.xlu0 %931
      %935 = vset.pattern.permute.xlu0 0
      %936 = vperm.xlu0 %935, %v445
      %v937 = vpop.permute.xlu0 %936
      %940 = vset.pattern.permute.xlu0 0
      %941 = vperm.xlu0 %940, %v446
      %v942 = vpop.permute.xlu0 %941
      %945 = vset.pattern.permute.xlu0 0
      %946 = vperm.xlu0 %945, %v447
      %v947 = vpop.permute.xlu0 %946
      %950 = vset.pattern.permute.xlu0 0
      %951 = vperm.xlu0 %950, %v448
      %v952 = vpop.permute.xlu0 %951
      %955 = vset.pattern.permute.xlu0 0
      %956 = vperm.xlu0 %955, %v449
      %v957 = vpop.permute.xlu0 %956
      %960 = vset.pattern.permute.xlu0 0
      %961 = vperm.xlu0 %960, %v450
      %v962 = vpop.permute.xlu0 %961
      %965 = vset.pattern.permute.xlu0 0
      %966 = vperm.xlu0 %965, %v451
      %v967 = vpop.permute.xlu0 %966
      %970 = vset.pattern.permute.xlu0 0
      %971 = vperm.xlu0 %970, %v452
      %v972 = vpop.permute.xlu0 %971
      %975 = vset.pattern.permute.xlu0 0
      %976 = vperm.xlu0 %975, %v453
      %v977 = vpop.permute.xlu0 %976
      %980 = vset.pattern.permute.xlu0 0
      %981 = vperm.xlu0 %980, %v454
      %v982 = vpop.permute.xlu0 %981
      %985 = vset.pattern.permute.xlu0 0
      %986 = vperm.xlu0 %985, %v455
      %v987 = vpop.permute.xlu0 %986
      %990 = vset.pattern.permute.xlu0 0
      %991 = vperm.xlu0 %990, %v456
      %v992 = vpop.permute.xlu0 %991
      %995 = vset.pattern.permute.xlu0 0
      %996 = vperm.xlu0 %995, %v457
      %v997 = vpop.permute.xlu0 %996
      %v999 = vmul.f32 %v887, %v922
      %v1000 = vmul.f32 %v888, %v922
      %v1001 = vmul.f32 %v889, %v927
      %v1002 = vmul.f32 %v890, %v927
      %v1003 = vmul.f32 %v891, %v932
      %v1004 = vmul.f32 %v892, %v932
      %v1005 = vmul.f32 %v893, %v937
      %v1006 = vmul.f32 %v894, %v937
      %v1007 = vmul.f32 %v895, %v942
      %v1008 = vmul.f32 %v896, %v942
      %v1009 = vmul.f32 %v897, %v947
      %v1010 = vmul.f32 %v898, %v947
      %v1011 = vmul.f32 %v899, %v952
      %v1012 = vmul.f32 %v900, %v952
      %v1013 = vmul.f32 %v901, %v957
      %v1014 = vmul.f32 %v902, %v957
      %v1015 = vmul.f32 %v903, %v962
      %v1016 = vmul.f32 %v904, %v962
      %v1017 = vmul.f32 %v905, %v967
      %v1018 = vmul.f32 %v906, %v967
      %v1019 = vmul.f32 %v907, %v972
      %v1020 = vmul.f32 %v908, %v972
      %v1021 = vmul.f32 %v909, %v977
      %v1022 = vmul.f32 %v910, %v977
      %v1023 = vmul.f32 %v911, %v982
      %v1024 = vmul.f32 %v912, %v982
      %v1025 = vmul.f32 %v913, %v987
      %v1026 = vmul.f32 %v914, %v987
      %v1027 = vmul.f32 %v915, %v992
      %v1028 = vmul.f32 %v916, %v992
      %v1029 = vmul.f32 %v917, %v997
      %v1030 = vmul.f32 %v918, %v997
      %1032 = vset.pattern.permute.xlu0 0
      %1033 = vperm.xlu0 %1032, %v458
      %v1034 = vpop.permute.xlu0 %1033
      %1037 = vset.pattern.permute.xlu0 0
      %1038 = vperm.xlu0 %1037, %v459
      %v1039 = vpop.permute.xlu0 %1038
      %1042 = vset.pattern.permute.xlu0 0
      %1043 = vperm.xlu0 %1042, %v460
      %v1044 = vpop.permute.xlu0 %1043
      %1047 = vset.pattern.permute.xlu0 0
      %1048 = vperm.xlu0 %1047, %v461
      %v1049 = vpop.permute.xlu0 %1048
      %1052 = vset.pattern.permute.xlu0 0
      %1053 = vperm.xlu0 %1052, %v462
      %v1054 = vpop.permute.xlu0 %1053
      %1057 = vset.pattern.permute.xlu0 0
      %1058 = vperm.xlu0 %1057, %v463
      %v1059 = vpop.permute.xlu0 %1058
      %1062 = vset.pattern.permute.xlu0 0
      %1063 = vperm.xlu0 %1062, %v464
      %v1064 = vpop.permute.xlu0 %1063
      %1067 = vset.pattern.permute.xlu0 0
      %1068 = vperm.xlu0 %1067, %v465
      %v1069 = vpop.permute.xlu0 %1068
      %1072 = vset.pattern.permute.xlu0 0
      %1073 = vperm.xlu0 %1072, %v466
      %v1074 = vpop.permute.xlu0 %1073
      %1077 = vset.pattern.permute.xlu0 0
      %1078 = vperm.xlu0 %1077, %v467
      %v1079 = vpop.permute.xlu0 %1078
      %1082 = vset.pattern.permute.xlu0 0
      %1083 = vperm.xlu0 %1082, %v468
      %v1084 = vpop.permute.xlu0 %1083
      %1087 = vset.pattern.permute.xlu0 0
      %1088 = vperm.xlu0 %1087, %v469
      %v1089 = vpop.permute.xlu0 %1088
      %1092 = vset.pattern.permute.xlu0 0
      %1093 = vperm.xlu0 %1092, %v470
      %v1094 = vpop.permute.xlu0 %1093
      %1097 = vset.pattern.permute.xlu0 0
      %1098 = vperm.xlu0 %1097, %v471
      %v1099 = vpop.permute.xlu0 %1098
      %1102 = vset.pattern.permute.xlu0 0
      %1103 = vperm.xlu0 %1102, %v472
      %v1104 = vpop.permute.xlu0 %1103
      %1107 = vset.pattern.permute.xlu0 0
      %1108 = vperm.xlu0 %1107, %v473
      %v1109 = vpop.permute.xlu0 %1108
      %v1111 = vadd.f32 %v999, %v1034
      %v1112 = vadd.f32 %v1000, %v1034
      %v1113 = vadd.f32 %v1001, %v1039
      %v1114 = vadd.f32 %v1002, %v1039
      %v1115 = vadd.f32 %v1003, %v1044
      %v1116 = vadd.f32 %v1004, %v1044
      %v1117 = vadd.f32 %v1005, %v1049
      %v1118 = vadd.f32 %v1006, %v1049
      %v1119 = vadd.f32 %v1007, %v1054
      %v1120 = vadd.f32 %v1008, %v1054
      %v1121 = vadd.f32 %v1009, %v1059
      %v1122 = vadd.f32 %v1010, %v1059
      %v1123 = vadd.f32 %v1011, %v1064
      %v1124 = vadd.f32 %v1012, %v1064
      %v1125 = vadd.f32 %v1013, %v1069
      %v1126 = vadd.f32 %v1014, %v1069
      %v1127 = vadd.f32 %v1015, %v1074
      %v1128 = vadd.f32 %v1016, %v1074
      %v1129 = vadd.f32 %v1017, %v1079
      %v1130 = vadd.f32 %v1018, %v1079
      %v1131 = vadd.f32 %v1019, %v1084
      %v1132 = vadd.f32 %v1020, %v1084
      %v1133 = vadd.f32 %v1021, %v1089
      %v1134 = vadd.f32 %v1022, %v1089
      %v1135 = vadd.f32 %v1023, %v1094
      %v1136 = vadd.f32 %v1024, %v1094
      %v1137 = vadd.f32 %v1025, %v1099
      %v1138 = vadd.f32 %v1026, %v1099
      %v1139 = vadd.f32 %v1027, %v1104
      %v1140 = vadd.f32 %v1028, %v1104
      %v1141 = vadd.f32 %v1029, %v1109
      %v1142 = vadd.f32 %v1030, %v1109
      %v1143 = vpack.c.bf16 %v1113, %v1111
      %v1144 = vpack.c.bf16 %v1114, %v1112
      %v1145 = vpack.c.bf16 %v1117, %v1115
      %v1146 = vpack.c.bf16 %v1118, %v1116
      %v1147 = vpack.c.bf16 %v1121, %v1119
      %v1148 = vpack.c.bf16 %v1122, %v1120
      %v1149 = vpack.c.bf16 %v1125, %v1123
      %v1150 = vpack.c.bf16 %v1126, %v1124
      %v1151 = vpack.c.bf16 %v1129, %v1127
      %v1152 = vpack.c.bf16 %v1130, %v1128
      %v1153 = vpack.c.bf16 %v1133, %v1131
      %v1154 = vpack.c.bf16 %v1134, %v1132
      %v1155 = vpack.c.bf16 %v1137, %v1135
      %v1156 = vpack.c.bf16 %v1138, %v1136
      %v1157 = vpack.c.bf16 %v1141, %v1139
      %v1158 = vpack.c.bf16 %v1142, %v1140
      %1160 = vset.pattern.permute.xlu0 0
      %1161 = vperm.xlu0 %1160, %v554
      %v1162 = vpop.permute.xlu0 %1161
      %1165 = vset.pattern.permute.xlu0 0
      %1166 = vperm.xlu0 %1165, %v555
      %v1167 = vpop.permute.xlu0 %1166
      %1170 = vset.pattern.permute.xlu0 0
      %1171 = vperm.xlu0 %1170, %v556
      %v1172 = vpop.permute.xlu0 %1171
      %1175 = vset.pattern.permute.xlu0 0
      %1176 = vperm.xlu0 %1175, %v557
      %v1177 = vpop.permute.xlu0 %1176
      %1180 = vset.pattern.permute.xlu0 0
      %1181 = vperm.xlu0 %1180, %v558
      %v1182 = vpop.permute.xlu0 %1181
      %1185 = vset.pattern.permute.xlu0 0
      %1186 = vperm.xlu0 %1185, %v559
      %v1187 = vpop.permute.xlu0 %1186
      %1190 = vset.pattern.permute.xlu0 0
      %1191 = vperm.xlu0 %1190, %v560
      %v1192 = vpop.permute.xlu0 %1191
      %1195 = vset.pattern.permute.xlu0 0
      %1196 = vperm.xlu0 %1195, %v561
      %v1197 = vpop.permute.xlu0 %1196
      %1200 = vset.pattern.permute.xlu0 0
      %1201 = vperm.xlu0 %1200, %v562
      %v1202 = vpop.permute.xlu0 %1201
      %1205 = vset.pattern.permute.xlu0 0
      %1206 = vperm.xlu0 %1205, %v563
      %v1207 = vpop.permute.xlu0 %1206
      %1210 = vset.pattern.permute.xlu0 0
      %1211 = vperm.xlu0 %1210, %v564
      %v1212 = vpop.permute.xlu0 %1211
      %1215 = vset.pattern.permute.xlu0 0
      %1216 = vperm.xlu0 %1215, %v565
      %v1217 = vpop.permute.xlu0 %1216
      %1220 = vset.pattern.permute.xlu0 0
      %1221 = vperm.xlu0 %1220, %v566
      %v1222 = vpop.permute.xlu0 %1221
      %1225 = vset.pattern.permute.xlu0 0
      %1226 = vperm.xlu0 %1225, %v567
      %v1227 = vpop.permute.xlu0 %1226
      %1230 = vset.pattern.permute.xlu0 0
      %1231 = vperm.xlu0 %1230, %v568
      %v1232 = vpop.permute.xlu0 %1231
      %1235 = vset.pattern.permute.xlu0 0
      %1236 = vperm.xlu0 %1235, %v569
      %v1237 = vpop.permute.xlu0 %1236
      %1240 = vset.pattern.permute.xlu0 0
      %1241 = vperm.xlu0 %1240, %v570
      %v1242 = vpop.permute.xlu0 %1241
      %1245 = vset.pattern.permute.xlu0 0
      %1246 = vperm.xlu0 %1245, %v571
      %v1247 = vpop.permute.xlu0 %1246
      %1250 = vset.pattern.permute.xlu0 0
      %1251 = vperm.xlu0 %1250, %v572
      %v1252 = vpop.permute.xlu0 %1251
      %1255 = vset.pattern.permute.xlu0 0
      %1256 = vperm.xlu0 %1255, %v573
      %v1257 = vpop.permute.xlu0 %1256
      %1260 = vset.pattern.permute.xlu0 0
      %1261 = vperm.xlu0 %1260, %v574
      %v1262 = vpop.permute.xlu0 %1261
      %1265 = vset.pattern.permute.xlu0 0
      %1266 = vperm.xlu0 %1265, %v575
      %v1267 = vpop.permute.xlu0 %1266
      %1270 = vset.pattern.permute.xlu0 0
      %1271 = vperm.xlu0 %1270, %v576
      %v1272 = vpop.permute.xlu0 %1271
      %1275 = vset.pattern.permute.xlu0 0
      %1276 = vperm.xlu0 %1275, %v577
      %v1277 = vpop.permute.xlu0 %1276
      %1280 = vset.pattern.permute.xlu0 0
      %1281 = vperm.xlu0 %1280, %v578
      %v1282 = vpop.permute.xlu0 %1281
      %1285 = vset.pattern.permute.xlu0 0
      %1286 = vperm.xlu0 %1285, %v579
      %v1287 = vpop.permute.xlu0 %1286
      %1290 = vset.pattern.permute.xlu0 0
      %1291 = vperm.xlu0 %1290, %v580
      %v1292 = vpop.permute.xlu0 %1291
      %1295 = vset.pattern.permute.xlu0 0
      %1296 = vperm.xlu0 %1295, %v581
      %v1297 = vpop.permute.xlu0 %1296
      %1300 = vset.pattern.permute.xlu0 0
      %1301 = vperm.xlu0 %1300, %v582
      %v1302 = vpop.permute.xlu0 %1301
      %1305 = vset.pattern.permute.xlu0 0
      %1306 = vperm.xlu0 %1305, %v583
      %v1307 = vpop.permute.xlu0 %1306
      %1310 = vset.pattern.permute.xlu0 0
      %1311 = vperm.xlu0 %1310, %v584
      %v1312 = vpop.permute.xlu0 %1311
      %1315 = vset.pattern.permute.xlu0 0
      %1316 = vperm.xlu0 %1315, %v585
      %v1317 = vpop.permute.xlu0 %1316
      %1320 = vset.pattern.permute.xlu0 0
      %1321 = vperm.xlu0 %1320, %v586
      %v1322 = vpop.permute.xlu0 %1321
      %1325 = vset.pattern.permute.xlu0 0
      %1326 = vperm.xlu0 %1325, %v587
      %v1327 = vpop.permute.xlu0 %1326
      %1330 = vset.pattern.permute.xlu0 0
      %1331 = vperm.xlu0 %1330, %v588
      %v1332 = vpop.permute.xlu0 %1331
      %1335 = vset.pattern.permute.xlu0 0
      %1336 = vperm.xlu0 %1335, %v589
      %v1337 = vpop.permute.xlu0 %1336
      %1340 = vset.pattern.permute.xlu0 0
      %1341 = vperm.xlu0 %1340, %v590
      %v1342 = vpop.permute.xlu0 %1341
      %1345 = vset.pattern.permute.xlu0 0
      %1346 = vperm.xlu0 %1345, %v591
      %v1347 = vpop.permute.xlu0 %1346
      %1350 = vset.pattern.permute.xlu0 0
      %1351 = vperm.xlu0 %1350, %v592
      %v1352 = vpop.permute.xlu0 %1351
      %1355 = vset.pattern.permute.xlu0 0
      %1356 = vperm.xlu0 %1355, %v593
      %v1357 = vpop.permute.xlu0 %1356
      %1360 = vset.pattern.permute.xlu0 0
      %1361 = vperm.xlu0 %1360, %v594
      %v1362 = vpop.permute.xlu0 %1361
      %1365 = vset.pattern.permute.xlu0 0
      %1366 = vperm.xlu0 %1365, %v595
      %v1367 = vpop.permute.xlu0 %1366
      %1370 = vset.pattern.permute.xlu0 0
      %1371 = vperm.xlu0 %1370, %v596
      %v1372 = vpop.permute.xlu0 %1371
      %1375 = vset.pattern.permute.xlu0 0
      %1376 = vperm.xlu0 %1375, %v597
      %v1377 = vpop.permute.xlu0 %1376
      %1380 = vset.pattern.permute.xlu0 0
      %1381 = vperm.xlu0 %1380, %v598
      %v1382 = vpop.permute.xlu0 %1381
      %1385 = vset.pattern.permute.xlu0 0
      %1386 = vperm.xlu0 %1385, %v599
      %v1387 = vpop.permute.xlu0 %1386
      %1390 = vset.pattern.permute.xlu0 0
      %1391 = vperm.xlu0 %1390, %v600
      %v1392 = vpop.permute.xlu0 %1391
      %1395 = vset.pattern.permute.xlu0 0
      %1396 = vperm.xlu0 %1395, %v601
      %v1397 = vpop.permute.xlu0 %1396
      %v1447 = vunpack.c.l.b16 %v506
      %v1448 = vunpack.c.l.b16 %v507
      %v1449 = vunpack.c.l.b16 %v508
      %v1450 = vunpack.c.l.b16 %v509
      %v1451 = vunpack.c.l.b16 %v510
      %v1452 = vunpack.c.l.b16 %v511
      %v1453 = vunpack.c.l.b16 %v512
      %v1454 = vunpack.c.l.b16 %v513
      %v1455 = vunpack.c.l.b16 %v514
      %v1456 = vunpack.c.l.b16 %v515
      %v1457 = vunpack.c.l.b16 %v516
      %v1458 = vunpack.c.l.b16 %v517
      %v1459 = vunpack.c.l.b16 %v518
      %v1460 = vunpack.c.l.b16 %v519
      %v1461 = vunpack.c.l.b16 %v520
      %v1462 = vunpack.c.l.b16 %v521
      %v1463 = vunpack.c.l.b16 %v522
      %v1464 = vunpack.c.l.b16 %v523
      %v1465 = vunpack.c.l.b16 %v524
      %v1466 = vunpack.c.l.b16 %v525
      %v1467 = vunpack.c.l.b16 %v526
      %v1468 = vunpack.c.l.b16 %v527
      %v1469 = vunpack.c.l.b16 %v528
      %v1470 = vunpack.c.l.b16 %v529
      %v1471 = vunpack.c.l.b16 %v530
      %v1472 = vunpack.c.l.b16 %v531
      %v1473 = vunpack.c.l.b16 %v532
      %v1474 = vunpack.c.l.b16 %v533
      %v1475 = vunpack.c.l.b16 %v534
      %v1476 = vunpack.c.l.b16 %v535
      %v1477 = vunpack.c.l.b16 %v536
      %v1478 = vunpack.c.l.b16 %v537
      %v1479 = vunpack.c.l.b16 %v538
      %v1480 = vunpack.c.l.b16 %v539
      %v1481 = vunpack.c.l.b16 %v540
      %v1482 = vunpack.c.l.b16 %v541
      %v1483 = vunpack.c.l.b16 %v542
      %v1484 = vunpack.c.l.b16 %v543
      %v1485 = vunpack.c.l.b16 %v544
      %v1486 = vunpack.c.l.b16 %v545
      %v1487 = vunpack.c.l.b16 %v546
      %v1488 = vunpack.c.l.b16 %v547
      %v1489 = vunpack.c.l.b16 %v548
      %v1490 = vunpack.c.l.b16 %v549
      %v1491 = vunpack.c.l.b16 %v550
      %v1492 = vunpack.c.l.b16 %v551
      %v1493 = vunpack.c.l.b16 %v552
      %v1494 = vunpack.c.l.b16 %v553
      %v1495 = vpack.c.b16 %v1448, %v1447
      %v1496 = vpack.c.b16 %v1450, %v1449
      %v1497 = vpack.c.b16 %v1452, %v1451
      %v1498 = vpack.c.b16 %v1454, %v1453
      %v1499 = vpack.c.b16 %v1456, %v1455
      %v1500 = vpack.c.b16 %v1458, %v1457
      %v1501 = vpack.c.b16 %v1460, %v1459
      %v1502 = vpack.c.b16 %v1462, %v1461
      %v1503 = vpack.c.b16 %v1464, %v1463
      %v1504 = vpack.c.b16 %v1466, %v1465
      %v1505 = vpack.c.b16 %v1468, %v1467
      %v1506 = vpack.c.b16 %v1470, %v1469
      %v1507 = vpack.c.b16 %v1472, %v1471
      %v1508 = vpack.c.b16 %v1474, %v1473
      %v1509 = vpack.c.b16 %v1476, %v1475
      %v1510 = vpack.c.b16 %v1478, %v1477
      %v1511 = vpack.c.b16 %v1480, %v1479
      %v1512 = vpack.c.b16 %v1482, %v1481
      %v1513 = vpack.c.b16 %v1484, %v1483
      %v1514 = vpack.c.b16 %v1486, %v1485
      %v1515 = vpack.c.b16 %v1488, %v1487
      %v1516 = vpack.c.b16 %v1490, %v1489
      %v1517 = vpack.c.b16 %v1492, %v1491
      %v1518 = vpack.c.b16 %v1494, %v1493
      %1543 = vmatprep.subr.bf16.mxu0 %v1144
      %1544 = vmatpush1.bf16.msra.mxu0 %v1143
      %1545 = vmatprep.subr.bf16.mxu0 %v1146
      %1546 = vmatpush1.bf16.msra.mxu0 %v1145
      %1547 = vmatprep.subr.bf16.mxu0 %v1148
      %1548 = vmatpush1.bf16.msra.mxu0 %v1147
      %1549 = vmatprep.subr.bf16.mxu0 %v1150
      %1550 = vmatpush1.bf16.msra.mxu0 %v1149
      %1551 = vmatprep.subr.bf16.mxu0 %v1152
      %1552 = vmatpush1.bf16.msra.mxu0 %v1151
      %1553 = vmatprep.subr.bf16.mxu0 %v1154
      %1554 = vmatpush1.bf16.msra.mxu0 %v1153
      %1555 = vmatprep.subr.bf16.mxu0 %v1156
      %1556 = vmatpush1.bf16.msra.mxu0 %v1155
      %1557 = vmatprep.subr.bf16.mxu0 %v1158
      %1558 = vmatpush1.bf16.msra.mxu0 %v1157
      %1559 = vmatprep.subr.bf16.mxu0 0
      %1560 = vmatpush1.bf16.msra.mxu0 0
      %1561 = vmatprep.subr.bf16.mxu0 0
      %1562 = vmatpush1.bf16.msra.mxu0 0
      %1563 = vmatprep.subr.bf16.mxu0 0
      %1564 = vmatpush1.bf16.msra.mxu0 0
      %1565 = vmatprep.subr.bf16.mxu0 0
      %1566 = vmatpush1.bf16.msra.mxu0 0
      %1567 = vmatprep.subr.bf16.mxu0 0
      %1568 = vmatpush1.bf16.msra.mxu0 0
      %1569 = vmatprep.subr.bf16.mxu0 0
      %1570 = vmatpush1.bf16.msra.mxu0 0
      %1571 = vmatprep.subr.bf16.mxu0 0
      %1572 = vmatpush1.bf16.msra.mxu0 0
      %1573 = vmatprep.subr.bf16.mxu0 0
      %1574 = vmatpush1.bf16.msra.mxu0 0
      %1575 = vmatprep.mubr.bf16.mxu0 0
      %1576 = vmatmul.mubr.bf16.gmra.mrb[0].mxu0 %v1495
      %v1577 = vpop.f32.mrb[0].mxu0
      %v1578 = vadd.f32 %v1162, %v1577
      %v1579 = vpop.f32.mrb[0].mxu0
      %v1580 = vadd.f32 %v1162, %v1579
      %v1581 = vpop.f32.mrb[0].mxu0
      %v1582 = vadd.f32 %v1167, %v1581
      %v1583 = vpop.f32.mrb[0].mxu0
      %v1584 = vadd.f32 %v1167, %v1583
      %1585 = vmatprep.mubr.bf16.mxu0 0
      %1586 = vmatmul.mubr.bf16.gmra.mrb[0].mxu0 %v1496
      %v1587 = vpop.f32.mrb[0].mxu0
      %v1588 = vadd.f32 %v1172, %v1587
      %v1589 = vpop.f32.mrb[0].mxu0
      %v1590 = vadd.f32 %v1172, %v1589
      %v1591 = vpop.f32.mrb[0].mxu0
      %v1592 = vadd.f32 %v1177, %v1591
      %v1593 = vpop.f32.mrb[0].mxu0
      %v1594 = vadd.f32 %v1177, %v1593
      %1595 = vmatprep.mubr.bf16.mxu0 0
      %1596 = vmatmul.mubr.bf16.gmra.mrb[0].mxu0 %v1497
      %v1597 = vpop.f32.mrb[0].mxu0
      %v1598 = vadd.f32 %v1182, %v1597
      %v1599 = vpop.f32.mrb[0].mxu0
      %v1600 = vadd.f32 %v1182, %v1599
      %v1601 = vpop.f32.mrb[0].mxu0
      %v1602 = vadd.f32 %v1187, %v1601
      %v1603 = vpop.f32.mrb[0].mxu0
      %v1604 = vadd.f32 %v1187, %v1603
      %1605 = vmatprep.mubr.bf16.mxu0 0
      %1606 = vmatmul.mubr.bf16.gmra.mrb[0].mxu0 %v1498
      %v1607 = vpop.f32.mrb[0].mxu0
      %v1608 = vadd.f32 %v1192, %v1607
      %v1609 = vpop.f32.mrb[0].mxu0
      %v1610 = vadd.f32 %v1192, %v1609
      %v1611 = vpop.f32.mrb[0].mxu0
      %v1612 = vadd.f32 %v1197, %v1611
      %v1613 = vpop.f32.mrb[0].mxu0
      %v1614 = vadd.f32 %v1197, %v1613
      %1615 = vmatprep.mubr.bf16.mxu0 0
      %1616 = vmatmul.mubr.bf16.gmra.mrb[0].mxu0 %v1499
      %v1617 = vpop.f32.mrb[0].mxu0
      %v1618 = vadd.f32 %v1202, %v1617
      %v1619 = vpop.f32.mrb[0].mxu0
      %v1620 = vadd.f32 %v1202, %v1619
      %v1621 = vpop.f32.mrb[0].mxu0
      %v1622 = vadd.f32 %v1207, %v1621
      %v1623 = vpop.f32.mrb[0].mxu0
      %v1624 = vadd.f32 %v1207, %v1623
      %1625 = vmatprep.mubr.bf16.mxu0 0
      %1626 = vmatmul.mubr.bf16.gmra.mrb[0].mxu0 %v1500
      %v1627 = vpop.f32.mrb[0].mxu0
      %v1628 = vadd.f32 %v1212, %v1627
      %v1629 = vpop.f32.mrb[0].mxu0
      %v1630 = vadd.f32 %v1212, %v1629
      %v1631 = vpop.f32.mrb[0].mxu0
      %v1632 = vadd.f32 %v1217, %v1631
      %v1633 = vpop.f32.mrb[0].mxu0
      %v1634 = vadd.f32 %v1217, %v1633
      %1635 = vmatprep.mubr.bf16.mxu0 0
      %1636 = vmatmul.mubr.bf16.gmra.mrb[0].mxu0 %v1501
      %v1637 = vpop.f32.mrb[0].mxu0
      %v1638 = vadd.f32 %v1222, %v1637
      %v1639 = vpop.f32.mrb[0].mxu0
      %v1640 = vadd.f32 %v1222, %v1639
      %v1641 = vpop.f32.mrb[0].mxu0
      %v1642 = vadd.f32 %v1227, %v1641
      %v1643 = vpop.f32.mrb[0].mxu0
      %v1644 = vadd.f32 %v1227, %v1643
      %1645 = vmatprep.mubr.bf16.mxu0 0
      %1646 = vmatmul.mubr.bf16.gmra.mrb[0].mxu0 %v1502
      %v1647 = vpop.f32.mrb[0].mxu0
      %v1648 = vadd.f32 %v1232, %v1647
      %v1649 = vpop.f32.mrb[0].mxu0
      %v1650 = vadd.f32 %v1232, %v1649
      %v1651 = vpop.f32.mrb[0].mxu0
      %v1652 = vadd.f32 %v1237, %v1651
      %v1653 = vpop.f32.mrb[0].mxu0
      %v1654 = vadd.f32 %v1237, %v1653
      %1655 = vmatprep.mubr.bf16.mxu0 0
      %1656 = vmatmul.mubr.bf16.gmra.mrb[0].mxu0 %v1503
      %v1657 = vpop.f32.mrb[0].mxu0
      %v1658 = vadd.f32 %v1242, %v1657
      %v1659 = vpop.f32.mrb[0].mxu0
      %v1660 = vadd.f32 %v1242, %v1659
      %v1661 = vpop.f32.mrb[0].mxu0
      %v1662 = vadd.f32 %v1247, %v1661
      %v1663 = vpop.f32.mrb[0].mxu0
      %v1664 = vadd.f32 %v1247, %v1663
      %1665 = vmatprep.mubr.bf16.mxu0 0
      %1666 = vmatmul.mubr.bf16.gmra.mrb[0].mxu0 %v1504
      %v1667 = vpop.f32.mrb[0].mxu0
      %v1668 = vadd.f32 %v1252, %v1667
      %v1669 = vpop.f32.mrb[0].mxu0
      %v1670 = vadd.f32 %v1252, %v1669
      %v1671 = vpop.f32.mrb[0].mxu0
      %v1672 = vadd.f32 %v1257, %v1671
      %v1673 = vpop.f32.mrb[0].mxu0
      %v1674 = vadd.f32 %v1257, %v1673
      %1675 = vmatprep.mubr.bf16.mxu0 0
      %1676 = vmatmul.mubr.bf16.gmra.mrb[0].mxu0 %v1505
      %v1677 = vpop.f32.mrb[0].mxu0
      %v1678 = vadd.f32 %v1262, %v1677
      %v1679 = vpop.f32.mrb[0].mxu0
      %v1680 = vadd.f32 %v1262, %v1679
      %v1681 = vpop.f32.mrb[0].mxu0
      %v1682 = vadd.f32 %v1267, %v1681
      %v1683 = vpop.f32.mrb[0].mxu0
      %v1684 = vadd.f32 %v1267, %v1683
      %1685 = vmatprep.mubr.bf16.mxu0 0
      %1686 = vmatmul.mubr.bf16.gmra.mrb[0].mxu0 %v1506
      %v1687 = vpop.f32.mrb[0].mxu0
      %v1688 = vadd.f32 %v1272, %v1687
      %v1689 = vpop.f32.mrb[0].mxu0
      %v1690 = vadd.f32 %v1272, %v1689
      %v1691 = vpop.f32.mrb[0].mxu0
      %v1692 = vadd.f32 %v1277, %v1691
      %v1693 = vpop.f32.mrb[0].mxu0
      %v1694 = vadd.f32 %v1277, %v1693
      %1695 = vmatprep.mubr.bf16.mxu0 0
      %1696 = vmatmul.mubr.bf16.gmra.mrb[0].mxu0 %v1507
      %v1697 = vpop.f32.mrb[0].mxu0
      %v1698 = vadd.f32 %v1282, %v1697
      %v1699 = vpop.f32.mrb[0].mxu0
      %v1700 = vadd.f32 %v1282, %v1699
      %v1701 = vpop.f32.mrb[0].mxu0
      %v1702 = vadd.f32 %v1287, %v1701
      %v1703 = vpop.f32.mrb[0].mxu0
      %v1704 = vadd.f32 %v1287, %v1703
      %1705 = vmatprep.mubr.bf16.mxu0 0
      %1706 = vmatmul.mubr.bf16.gmra.mrb[0].mxu0 %v1508
      %v1707 = vpop.f32.mrb[0].mxu0
      %v1708 = vadd.f32 %v1292, %v1707
      %v1709 = vpop.f32.mrb[0].mxu0
      %v1710 = vadd.f32 %v1292, %v1709
      %v1711 = vpop.f32.mrb[0].mxu0
      %v1712 = vadd.f32 %v1297, %v1711
      %v1713 = vpop.f32.mrb[0].mxu0
      %v1714 = vadd.f32 %v1297, %v1713
      %1715 = vmatprep.mubr.bf16.mxu0 0
      %1716 = vmatmul.mubr.bf16.gmra.mrb[0].mxu0 %v1509
      %v1717 = vpop.f32.mrb[0].mxu0
      %v1718 = vadd.f32 %v1302, %v1717
      %v1719 = vpop.f32.mrb[0].mxu0
      %v1720 = vadd.f32 %v1302, %v1719
      %v1721 = vpop.f32.mrb[0].mxu0
      %v1722 = vadd.f32 %v1307, %v1721
      %v1723 = vpop.f32.mrb[0].mxu0
      %v1724 = vadd.f32 %v1307, %v1723
      %1725 = vmatprep.mubr.bf16.mxu0 0
      %1726 = vmatmul.mubr.bf16.gmra.mrb[0].mxu0 %v1510
      %v1727 = vpop.f32.mrb[0].mxu0
      %v1728 = vadd.f32 %v1312, %v1727
      %v1729 = vpop.f32.mrb[0].mxu0
      %v1730 = vadd.f32 %v1312, %v1729
      %v1731 = vpop.f32.mrb[0].mxu0
      %v1732 = vadd.f32 %v1317, %v1731
      %v1733 = vpop.f32.mrb[0].mxu0
      %v1734 = vadd.f32 %v1317, %v1733
      %1735 = vmatprep.mubr.bf16.mxu0 0
      %1736 = vmatmul.mubr.bf16.gmra.mrb[0].mxu0 %v1511
      %v1737 = vpop.f32.mrb[0].mxu0
      %v1738 = vadd.f32 %v1322, %v1737
      %v1739 = vpop.f32.mrb[0].mxu0
      %v1740 = vadd.f32 %v1322, %v1739
      %v1741 = vpop.f32.mrb[0].mxu0
      %v1742 = vadd.f32 %v1327, %v1741
      %v1743 = vpop.f32.mrb[0].mxu0
      %v1744 = vadd.f32 %v1327, %v1743
      %1745 = vmatprep.mubr.bf16.mxu0 0
      %1746 = vmatmul.mubr.bf16.gmra.mrb[0].mxu0 %v1512
      %v1747 = vpop.f32.mrb[0].mxu0
      %v1748 = vadd.f32 %v1332, %v1747
      %v1749 = vpop.f32.mrb[0].mxu0
      %v1750 = vadd.f32 %v1332, %v1749
      %v1751 = vpop.f32.mrb[0].mxu0
      %v1752 = vadd.f32 %v1337, %v1751
      %v1753 = vpop.f32.mrb[0].mxu0
      %v1754 = vadd.f32 %v1337, %v1753
      %1755 = vmatprep.mubr.bf16.mxu0 0
      %1756 = vmatmul.mubr.bf16.gmra.mrb[0].mxu0 %v1513
      %v1757 = vpop.f32.mrb[0].mxu0
      %v1758 = vadd.f32 %v1342, %v1757
      %v1759 = vpop.f32.mrb[0].mxu0
      %v1760 = vadd.f32 %v1342, %v1759
      %v1761 = vpop.f32.mrb[0].mxu0
      %v1762 = vadd.f32 %v1347, %v1761
      %v1763 = vpop.f32.mrb[0].mxu0
      %v1764 = vadd.f32 %v1347, %v1763
      %1765 = vmatprep.mubr.bf16.mxu0 0
      %1766 = vmatmul.mubr.bf16.gmra.mrb[0].mxu0 %v1514
      %v1767 = vpop.f32.mrb[0].mxu0
      %v1768 = vadd.f32 %v1352, %v1767
      %v1769 = vpop.f32.mrb[0].mxu0
      %v1770 = vadd.f32 %v1352, %v1769
      %v1771 = vpop.f32.mrb[0].mxu0
      %v1772 = vadd.f32 %v1357, %v1771
      %v1773 = vpop.f32.mrb[0].mxu0
      %v1774 = vadd.f32 %v1357, %v1773
      %1775 = vmatprep.mubr.bf16.mxu0 0
      %1776 = vmatmul.mubr.bf16.gmra.mrb[0].mxu0 %v1515
      %v1777 = vpop.f32.mrb[0].mxu0
      %v1778 = vadd.f32 %v1362, %v1777
      %v1779 = vpop.f32.mrb[0].mxu0
      %v1780 = vadd.f32 %v1362, %v1779
      %v1781 = vpop.f32.mrb[0].mxu0
      %v1782 = vadd.f32 %v1367, %v1781
      %v1783 = vpop.f32.mrb[0].mxu0
      %v1784 = vadd.f32 %v1367, %v1783
      %1785 = vmatprep.mubr.bf16.mxu0 0
      %1786 = vmatmul.mubr.bf16.gmra.mrb[0].mxu0 %v1516
      %v1787 = vpop.f32.mrb[0].mxu0
      %v1788 = vadd.f32 %v1372, %v1787
      %v1789 = vpop.f32.mrb[0].mxu0
      %v1790 = vadd.f32 %v1372, %v1789
      %v1791 = vpop.f32.mrb[0].mxu0
      %v1792 = vadd.f32 %v1377, %v1791
      %v1793 = vpop.f32.mrb[0].mxu0
      %v1794 = vadd.f32 %v1377, %v1793
      %1795 = vmatprep.mubr.bf16.mxu0 0
      %1796 = vmatmul.mubr.bf16.gmra.mrb[0].mxu0 %v1517
      %v1797 = vpop.f32.mrb[0].mxu0
      %v1798 = vadd.f32 %v1382, %v1797
      %v1799 = vpop.f32.mrb[0].mxu0
      %v1800 = vadd.f32 %v1382, %v1799
      %v1801 = vpop.f32.mrb[0].mxu0
      %v1802 = vadd.f32 %v1387, %v1801
      %v1803 = vpop.f32.mrb[0].mxu0
      %v1804 = vadd.f32 %v1387, %v1803
      %1805 = vmatprep.mubr.bf16.mxu0 0
      %1806 = vmatmul.mubr.bf16.gmra.mrb[0].mxu0 %v1518
      %v1807 = vpop.f32.mrb[0].mxu0
      %v1808 = vadd.f32 %v1392, %v1807
      %v1809 = vpop.f32.mrb[0].mxu0
      %v1810 = vadd.f32 %v1392, %v1809
      %v1811 = vpop.f32.mrb[0].mxu0
      %v1812 = vadd.f32 %v1397, %v1811
      %v1813 = vpop.f32.mrb[0].mxu0
      %v1814 = vadd.f32 %v1397, %v1813
      %1815 = vdwg.mxu0
      %1816 = vst [vmem:[#allocation2] sm:$0xff] %v1578
      %1817 = vst [vmem:[#allocation2 + $0x8] sm:$0xff] %v1580
      %1818 = vst [vmem:[#allocation2 + $0x10] sm:$0xff] %v1582
      %1819 = vst [vmem:[#allocation2 + $0x18] sm:$0xff] %v1584
      %1820 = vst [vmem:[#allocation2 + $0x20] sm:$0xff] %v1588
      %1821 = vst [vmem:[#allocation2 + $0x28] sm:$0xff] %v1590
      %1822 = vst [vmem:[#allocation2 + $0x30] sm:$0xff] %v1592
      %1823 = vst [vmem:[#allocation2 + $0x38] sm:$0xff] %v1594
      %1824 = vst [vmem:[#allocation2 + $0x40] sm:$0xff] %v1598
      %1825 = vst [vmem:[#allocation2 + $0x48] sm:$0xff] %v1600
      %1826 = vst [vmem:[#allocation2 + $0x50] sm:$0xff] %v1602
      %1827 = vst [vmem:[#allocation2 + $0x58] sm:$0xff] %v1604
      %1828 = vst [vmem:[#allocation2 + $0x60] sm:$0xff] %v1608
      %1829 = vst [vmem:[#allocation2 + $0x68] sm:$0xff] %v1610
      %1830 = vst [vmem:[#allocation2 + $0x70] sm:$0xff] %v1612
      %1831 = vst [vmem:[#allocation2 + $0x78] sm:$0xff] %v1614
      %1832 = vst [vmem:[#allocation2 + $0x80] sm:$0xff] %v1618
      %1833 = vst [vmem:[#allocation2 + $0x88] sm:$0xff] %v1620
      %1834 = vst [vmem:[#allocation2 + $0x90] sm:$0xff] %v1622
      %1835 = vst [vmem:[#allocation2 + $0x98] sm:$0xff] %v1624
      %1836 = vst [vmem:[#allocation2 + $0xa0] sm:$0xff] %v1628
      %1837 = vst [vmem:[#allocation2 + $0xa8] sm:$0xff] %v1630
      %1838 = vst [vmem:[#allocation2 + $0xb0] sm:$0xff] %v1632
      %1839 = vst [vmem:[#allocation2 + $0xb8] sm:$0xff] %v1634
      %1840 = vst [vmem:[#allocation2 + $0xc0] sm:$0xff] %v1638
      %1841 = vst [vmem:[#allocation2 + $0xc8] sm:$0xff] %v1640
      %1842 = vst [vmem:[#allocation2 + $0xd0] sm:$0xff] %v1642
      %1843 = vst [vmem:[#allocation2 + $0xd8] sm:$0xff] %v1644
      %1844 = vst [vmem:[#allocation2 + $0xe0] sm:$0xff] %v1648
      %1845 = vst [vmem:[#allocation2 + $0xe8] sm:$0xff] %v1650
      %1846 = vst [vmem:[#allocation2 + $0xf0] sm:$0xff] %v1652
      %1847 = vst [vmem:[#allocation2 + $0xf8] sm:$0xff] %v1654
      %1848 = vst [vmem:[#allocation2 + $0x100] sm:$0xff] %v1658
      %1849 = vst [vmem:[#allocation2 + $0x108] sm:$0xff] %v1660
      %1850 = vst [vmem:[#allocation2 + $0x110] sm:$0xff] %v1662
      %1851 = vst [vmem:[#allocation2 + $0x118] sm:$0xff] %v1664
      %1852 = vst [vmem:[#allocation2 + $0x120] sm:$0xff] %v1668
      %1853 = vst [vmem:[#allocation2 + $0x128] sm:$0xff] %v1670
      %1854 = vst [vmem:[#allocation2 + $0x130] sm:$0xff] %v1672
      %1855 = vst [vmem:[#allocation2 + $0x138] sm:$0xff] %v1674
      %1856 = vst [vmem:[#allocation2 + $0x140] sm:$0xff] %v1678
      %1857 = vst [vmem:[#allocation2 + $0x148] sm:$0xff] %v1680
      %1858 = vst [vmem:[#allocation2 + $0x150] sm:$0xff] %v1682
      %1859 = vst [vmem:[#allocation2 + $0x158] sm:$0xff] %v1684
      %1860 = vst [vmem:[#allocation2 + $0x160] sm:$0xff] %v1688
      %1861 = vst [vmem:[#allocation2 + $0x168] sm:$0xff] %v1690
      %1862 = vst [vmem:[#allocation2 + $0x170] sm:$0xff] %v1692
      %1863 = vst [vmem:[#allocation2 + $0x178] sm:$0xff] %v1694
      %1864 = vst [vmem:[#allocation2 + $0x180] sm:$0xff] %v1698
      %1865 = vst [vmem:[#allocation2 + $0x188] sm:$0xff] %v1700
      %1866 = vst [vmem:[#allocation2 + $0x190] sm:$0xff] %v1702
      %1867 = vst [vmem:[#allocation2 + $0x198] sm:$0xff] %v1704
      %1868 = vst [vmem:[#allocation2 + $0x1a0] sm:$0xff] %v1708
      %1869 = vst [vmem:[#allocation2 + $0x1a8] sm:$0xff] %v1710
      %1870 = vst [vmem:[#allocation2 + $0x1b0] sm:$0xff] %v1712
      %1871 = vst [vmem:[#allocation2 + $0x1b8] sm:$0xff] %v1714
      %1872 = vst [vmem:[#allocation2 + $0x1c0] sm:$0xff] %v1718
      %1873 = vst [vmem:[#allocation2 + $0x1c8] sm:$0xff] %v1720
      %1874 = vst [vmem:[#allocation2 + $0x1d0] sm:$0xff] %v1722
      %1875 = vst [vmem:[#allocation2 + $0x1d8] sm:$0xff] %v1724
      %1876 = vst [vmem:[#allocation2 + $0x1e0] sm:$0xff] %v1728
      %1877 = vst [vmem:[#allocation2 + $0x1e8] sm:$0xff] %v1730
      %1878 = vst [vmem:[#allocation2 + $0x1f0] sm:$0xff] %v1732
      %1879 = vst [vmem:[#allocation2 + $0x1f8] sm:$0xff] %v1734
      %1880 = vst [vmem:[#allocation2 + $0x200] sm:$0xff] %v1738
      %1881 = vst [vmem:[#allocation2 + $0x208] sm:$0xff] %v1740
      %1882 = vst [vmem:[#allocation2 + $0x210] sm:$0xff] %v1742
      %1883 = vst [vmem:[#allocation2 + $0x218] sm:$0xff] %v1744
      %1884 = vst [vmem:[#allocation2 + $0x220] sm:$0xff] %v1748
      %1885 = vst [vmem:[#allocation2 + $0x228] sm:$0xff] %v1750
      %1886 = vst [vmem:[#allocation2 + $0x230] sm:$0xff] %v1752
      %1887 = vst [vmem:[#allocation2 + $0x238] sm:$0xff] %v1754
      %1888 = vst [vmem:[#allocation2 + $0x240] sm:$0xff] %v1758
      %1889 = vst [vmem:[#allocation2 + $0x248] sm:$0xff] %v1760
      %1890 = vst [vmem:[#allocation2 + $0x250] sm:$0xff] %v1762
      %1891 = vst [vmem:[#allocation2 + $0x258] sm:$0xff] %v1764
      %1892 = vst [vmem:[#allocation2 + $0x260] sm:$0xff] %v1768
      %1893 = vst [vmem:[#allocation2 + $0x268] sm:$0xff] %v1770
      %1894 = vst [vmem:[#allocation2 + $0x270] sm:$0xff] %v1772
      %1895 = vst [vmem:[#allocation2 + $0x278] sm:$0xff] %v1774
      %1896 = vst [vmem:[#allocation2 + $0x280] sm:$0xff] %v1778
      %1897 = vst [vmem:[#allocation2 + $0x288] sm:$0xff] %v1780
      %1898 = vst [vmem:[#allocation2 + $0x290] sm:$0xff] %v1782
      %1899 = vst [vmem:[#allocation2 + $0x298] sm:$0xff] %v1784
      %1900 = vst [vmem:[#allocation2 + $0x2a0] sm:$0xff] %v1788
      %1901 = vst [vmem:[#allocation2 + $0x2a8] sm:$0xff] %v1790
      %1902 = vst [vmem:[#allocation2 + $0x2b0] sm:$0xff] %v1792
      %1903 = vst [vmem:[#allocation2 + $0x2b8] sm:$0xff] %v1794
      %1904 = vst [vmem:[#allocation2 + $0x2c0] sm:$0xff] %v1798
      %1905 = vst [vmem:[#allocation2 + $0x2c8] sm:$0xff] %v1800
      %1906 = vst [vmem:[#allocation2 + $0x2d0] sm:$0xff] %v1802
      %1907 = vst [vmem:[#allocation2 + $0x2d8] sm:$0xff] %v1804
      %1908 = vst [vmem:[#allocation2 + $0x2e0] sm:$0xff] %v1808
      %1909 = vst [vmem:[#allocation2 + $0x2e8] sm:$0xff] %v1810
      %1910 = vst [vmem:[#allocation2 + $0x2f0] sm:$0xff] %v1812
      %1911 = vst [vmem:[#allocation2 + $0x2f8] sm:$0xff] %v1814
      loop: start=0, step=1, limit=8
      $region73: #{self_attention.1} parent=71 // loop_pre_header
        _
      $region74: #{self_attention.1} parent=71 // loop_header
        %s1913 = sphi 0, %s1917
        %p1914 = scmp.ge.s32.totalorder %s1913, 8
      $region75: #{self_attention.1} parent=71 // loop_header_branch
        %1916 = sbr.rel (%p1914) target = $region79
      $region76: #{self_attention.1} parent=71 // loop_body
        %s1918 = smul.u32 %s1913, 16
        %s1919 = sshra.s32 %s1918, 3
        %s1920 = sand.u32 %s1918, 7
        %s1921 = smul.u32 %s1919, 2
        %s1922 = smul.addr %s1921, 8
        %s1923 = scalar_lea.vmem [#allocation2], %s1922
        %v1924 = vld [vmem:[%s1923] sm:$0xff]
        %v1925 = vld [vmem:[%s1923 + $0x8] sm:$0xff]
        %v1926 = vld [vmem:[%s1923 + $0x10] sm:$0xff]
        %v1927 = vld [vmem:[%s1923 + $0x18] sm:$0xff]
        %s1928 = sadd.s32 %s1918, 128
        %s1929 = sshra.s32 %s1928, 3
        %s1930 = sand.u32 %s1928, 7
        %s1931 = smul.u32 %s1929, 2
        %s1932 = smul.addr %s1931, 8
        %s1933 = scalar_lea.vmem [#allocation2], %s1932
        %v1934 = vld [vmem:[%s1933] sm:$0xff]
        %v1935 = vld [vmem:[%s1933 + $0x8] sm:$0xff]
        %v1936 = vld [vmem:[%s1933 + $0x10] sm:$0xff]
        %v1937 = vld [vmem:[%s1933 + $0x18] sm:$0xff]
        %s1938 = sadd.s32 %s1918, 256
        %s1939 = sshra.s32 %s1938, 3
        %s1940 = sand.u32 %s1938, 7
        %s1941 = smul.u32 %s1939, 2
        %s1942 = smul.addr %s1941, 8
        %s1943 = scalar_lea.vmem [#allocation2], %s1942
        %v1944 = vld [vmem:[%s1943] sm:$0xff]
        %v1945 = vld [vmem:[%s1943 + $0x8] sm:$0xff]
        %v1946 = vld [vmem:[%s1943 + $0x10] sm:$0xff]
        %v1947 = vld [vmem:[%s1943 + $0x18] sm:$0xff]
        %1948 = vxpose.xlu0.b32.start [1/16] %v1924, 128
        %1949 = vxpose.xlu0.b32.cont [2/16] %v1926, 128
        %1950 = vxpose.xlu0.b32.cont [3/16] 0.0, 128
        %1951 = vxpose.xlu0.b32.cont [4/16] 0.0, 128
        %1952 = vxpose.xlu0.b32.cont [5/16] 0.0, 128
        %1953 = vxpose.xlu0.b32.cont [6/16] 0.0, 128
        %1954 = vxpose.xlu0.b32.cont [7/16] 0.0, 128
        %1955 = vxpose.xlu0.b32.cont [8/16] 0.0, 128
        %1956 = vxpose.xlu0.b32.cont [9/16] 0.0, 128
        %1957 = vxpose.xlu0.b32.cont [10/16] 0.0, 128
        %1958 = vxpose.xlu0.b32.cont [11/16] 0.0, 128
        %1959 = vxpose.xlu0.b32.cont [12/16] 0.0, 128
        %1960 = vxpose.xlu0.b32.cont [13/16] 0.0, 128
        %1961 = vxpose.xlu0.b32.cont [14/16] 0.0, 128
        %1962 = vxpose.xlu0.b32.cont [15/16] 0.0, 128
        %1963 = vxpose.xlu0.b32.end [16/16] 0.0, 128
        %v1964 = vpop.trf.xlu0
        %v1965 = vpop.trf.xlu0
        %v1966 = vpop.trf.xlu0
        %v1967 = vpop.trf.xlu0
        %v1968 = vpop.trf.xlu0
        %v1969 = vpop.trf.xlu0
        %v1970 = vpop.trf.xlu0
        %v1971 = vpop.trf.xlu0
        %v1972 = vpop.trf.xlu0
        %v1973 = vpop.trf.xlu0
        %v1974 = vpop.trf.xlu0
        %v1975 = vpop.trf.xlu0
        %v1976 = vpop.trf.xlu0
        %v1977 = vpop.trf.xlu0
        %v1978 = vpop.trf.xlu0
        %v1979 = vpop.trf.xlu0
        %1980 = vxpose.xlu0.b32.start [1/16] %v1925, 128
        %1981 = vxpose.xlu0.b32.cont [2/16] %v1927, 128
        %1982 = vxpose.xlu0.b32.cont [3/16] 0.0, 128
        %1983 = vxpose.xlu0.b32.cont [4/16] 0.0, 128
        %1984 = vxpose.xlu0.b32.cont [5/16] 0.0, 128
        %1985 = vxpose.xlu0.b32.cont [6/16] 0.0, 128
        %1986 = vxpose.xlu0.b32.cont [7/16] 0.0, 128
        %1987 = vxpose.xlu0.b32.cont [8/16] 0.0, 128
        %1988 = vxpose.xlu0.b32.cont [9/16] 0.0, 128
        %1989 = vxpose.xlu0.b32.cont [10/16] 0.0, 128
        %1990 = vxpose.xlu0.b32.cont [11/16] 0.0, 128
        %1991 = vxpose.xlu0.b32.cont [12/16] 0.0, 128
        %1992 = vxpose.xlu0.b32.cont [13/16] 0.0, 128
        %1993 = vxpose.xlu0.b32.cont [14/16] 0.0, 128
        %1994 = vxpose.xlu0.b32.cont [15/16] 0.0, 128
        %1995 = vxpose.xlu0.b32.end [16/16] 0.0, 128
        %v1996 = vpop.trf.xlu0
        %v1997 = vpop.trf.xlu0
        %v1998 = vpop.trf.xlu0
        %v1999 = vpop.trf.xlu0
        %v2000 = vpop.trf.xlu0
        %v2001 = vpop.trf.xlu0
        %v2002 = vpop.trf.xlu0
        %v2003 = vpop.trf.xlu0
        %v2004 = vpop.trf.xlu0
        %v2005 = vpop.trf.xlu0
        %v2006 = vpop.trf.xlu0
        %v2007 = vpop.trf.xlu0
        %v2008 = vpop.trf.xlu0
        %v2009 = vpop.trf.xlu0
        %v2010 = vpop.trf.xlu0
        %v2011 = vpop.trf.xlu0
        %v2012 = vpack.c.bf16 %v1965, %v1964
        %v2013 = vpack.c.bf16 %v1967, %v1966
        %v2014 = vpack.c.bf16 %v1969, %v1968
        %v2015 = vpack.c.bf16 %v1971, %v1970
        %v2016 = vpack.c.bf16 %v1973, %v1972
        %v2017 = vpack.c.bf16 %v1975, %v1974
        %v2018 = vpack.c.bf16 %v1977, %v1976
        %v2019 = vpack.c.bf16 %v1979, %v1978
        %v2020 = vpack.c.bf16 %v1997, %v1996
        %v2021 = vpack.c.bf16 %v1999, %v1998
        %v2022 = vpack.c.bf16 %v2001, %v2000
        %v2023 = vpack.c.bf16 %v2003, %v2002
        %v2024 = vpack.c.bf16 %v2005, %v2004
        %v2025 = vpack.c.bf16 %v2007, %v2006
        %v2026 = vpack.c.bf16 %v2009, %v2008
        %v2027 = vpack.c.bf16 %v2011, %v2010
        %v2028 = vpack.c.bf16 %v1936, %v1934
        %v2029 = vpack.c.bf16 %v1937, %v1935
        %vm2030 = vcmask 130048
        %v2032 = vsel %vm2030, %v2012, 0
        %v2035 = vsel %vm2030, %v2013, 0
        %v2038 = vsel %vm2030, %v2014, 0
        %v2041 = vsel %vm2030, %v2015, 0
        %v2044 = vsel %vm2030, %v2016, 0
        %v2047 = vsel %vm2030, %v2017, 0
        %v2050 = vsel %vm2030, %v2018, 0
        %v2053 = vsel %vm2030, %v2019, 0
        %v2056 = vsel %vm2030, %v2020, 0
        %v2059 = vsel %vm2030, %v2021, 0
        %v2062 = vsel %vm2030, %v2022, 0
        %v2065 = vsel %vm2030, %v2023, 0
        %v2068 = vsel %vm2030, %v2024, 0
        %v2071 = vsel %vm2030, %v2025, 0
        %v2074 = vsel %vm2030, %v2026, 0
        %v2077 = vsel %vm2030, %v2027, 0
        %2079 = vmatprep.subr.bf16.mxu0 %v2029
        %2080 = vmatpush1.bf16.msra.mxu0 %v2028
        %2081 = vmatprep.subr.bf16.mxu0 0
        %2082 = vmatpush1.bf16.msra.mxu0 0
        %2083 = vmatprep.subr.bf16.mxu0 0
        %2084 = vmatpush1.bf16.msra.mxu0 0
        %2085 = vmatprep.subr.bf16.mxu0 0
        %2086 = vmatpush1.bf16.msra.mxu0 0
        %2087 = vmatprep.subr.bf16.mxu0 0
        %2088 = vmatpush1.bf16.msra.mxu0 0
        %2089 = vmatprep.subr.bf16.mxu0 0
        %2090 = vmatpush1.bf16.msra.mxu0 0
        %2091 = vmatprep.subr.bf16.mxu0 0
        %2092 = vmatpush1.bf16.msra.mxu0 0
        %2093 = vmatprep.subr.bf16.mxu0 0
        %2094 = vmatpush1.bf16.msra.mxu0 0
        %2095 = vmatprep.subr.bf16.mxu0 0
        %2096 = vmatpush1.bf16.msra.mxu0 0
        %2097 = vmatprep.subr.bf16.mxu0 0
        %2098 = vmatpush1.bf16.msra.mxu0 0
        %2099 = vmatprep.subr.bf16.mxu0 0
        %2100 = vmatpush1.bf16.msra.mxu0 0
        %2101 = vmatprep.subr.bf16.mxu0 0
        %2102 = vmatpush1.bf16.msra.mxu0 0
        %2103 = vmatprep.subr.bf16.mxu0 0
        %2104 = vmatpush1.bf16.msra.mxu0 0
        %2105 = vmatprep.subr.bf16.mxu0 0
        %2106 = vmatpush1.bf16.msra.mxu0 0
        %2107 = vmatprep.subr.bf16.mxu0 0
        %2108 = vmatpush1.bf16.msra.mxu0 0
        %2109 = vmatprep.subr.bf16.mxu0 0
        %2110 = vmatpush1.bf16.msra.mxu0 0
        %2111 = vmatprep.mubr.bf16.mxu0 0
        %2112 = vmatmul.mubr.bf16.gmra.mrb[0].mxu0 %v2032
        %v2113 = vpop.f32.mrb[0].mxu0
        %v2114 = vadd.f32 0.0, %v2113
        %v2115 = vpop.f32.mrb[0].mxu0
        %v2116 = vadd.f32 0.0, %v2115
        %v2117 = vpop.f32.mrb[0].mxu0
        %v2118 = vadd.f32 0.0, %v2117
        %v2119 = vpop.f32.mrb[0].mxu0
        %v2120 = vadd.f32 0.0, %v2119
        %2121 = vmatprep.mubr.bf16.mxu0 0
        %2122 = vmatmul.mubr.bf16.gmra.mrb[0].mxu0 %v2035
        %v2123 = vpop.f32.mrb[0].mxu0
        %v2124 = vadd.f32 0.0, %v2123
        %v2125 = vpop.f32.mrb[0].mxu0
        %v2126 = vadd.f32 0.0, %v2125
        %v2127 = vpop.f32.mrb[0].mxu0
        %v2128 = vadd.f32 0.0, %v2127
        %v2129 = vpop.f32.mrb[0].mxu0
        %v2130 = vadd.f32 0.0, %v2129
        %2131 = vmatprep.mubr.bf16.mxu0 0
        %2132 = vmatmul.mubr.bf16.gmra.mrb[0].mxu0 %v2038
        %v2133 = vpop.f32.mrb[0].mxu0
        %v2134 = vadd.f32 0.0, %v2133
        %v2135 = vpop.f32.mrb[0].mxu0
        %v2136 = vadd.f32 0.0, %v2135
        %v2137 = vpop.f32.mrb[0].mxu0
        %v2138 = vadd.f32 0.0, %v2137
        %v2139 = vpop.f32.mrb[0].mxu0
        %v2140 = vadd.f32 0.0, %v2139
        %2141 = vmatprep.mubr.bf16.mxu0 0
        %2142 = vmatmul.mubr.bf16.gmra.mrb[0].mxu0 %v2041
        %v2143 = vpop.f32.mrb[0].mxu0
        %v2144 = vadd.f32 0.0, %v2143
        %v2145 = vpop.f32.mrb[0].mxu0
        %v2146 = vadd.f32 0.0, %v2145
        %v2147 = vpop.f32.mrb[0].mxu0
        %v2148 = vadd.f32 0.0, %v2147
        %v2149 = vpop.f32.mrb[0].mxu0
        %v2150 = vadd.f32 0.0, %v2149
        %2151 = vmatprep.mubr.bf16.mxu0 0
        %2152 = vmatmul.mubr.bf16.gmra.mrb[0].mxu0 %v2044
        %v2153 = vpop.f32.mrb[0].mxu0
        %v2154 = vadd.f32 0.0, %v2153
        %v2155 = vpop.f32.mrb[0].mxu0
        %v2156 = vadd.f32 0.0, %v2155
        %v2157 = vpop.f32.mrb[0].mxu0
        %v2158 = vadd.f32 0.0, %v2157
        %v2159 = vpop.f32.mrb[0].mxu0
        %v2160 = vadd.f32 0.0, %v2159
        %2161 = vmatprep.mubr.bf16.mxu0 0
        %2162 = vmatmul.mubr.bf16.gmra.mrb[0].mxu0 %v2047
        %v2163 = vpop.f32.mrb[0].mxu0
        %v2164 = vadd.f32 0.0, %v2163
        %v2165 = vpop.f32.mrb[0].mxu0
        %v2166 = vadd.f32 0.0, %v2165
        %v2167 = vpop.f32.mrb[0].mxu0
        %v2168 = vadd.f32 0.0, %v2167
        %v2169 = vpop.f32.mrb[0].mxu0
        %v2170 = vadd.f32 0.0, %v2169
        %2171 = vmatprep.mubr.bf16.mxu0 0
        %2172 = vmatmul.mubr.bf16.gmra.mrb[0].mxu0 %v2050
        %v2173 = vpop.f32.mrb[0].mxu0
        %v2174 = vadd.f32 0.0, %v2173
        %v2175 = vpop.f32.mrb[0].mxu0
        %v2176 = vadd.f32 0.0, %v2175
        %v2177 = vpop.f32.mrb[0].mxu0
        %v2178 = vadd.f32 0.0, %v2177
        %v2179 = vpop.f32.mrb[0].mxu0
        %v2180 = vadd.f32 0.0, %v2179
        %2181 = vmatprep.mubr.bf16.mxu0 0
        %2182 = vmatmul.mubr.bf16.gmra.mrb[0].mxu0 %v2053
        %v2183 = vpop.f32.mrb[0].mxu0
        %v2184 = vadd.f32 0.0, %v2183
        %v2185 = vpop.f32.mrb[0].mxu0
        %v2186 = vadd.f32 0.0, %v2185
        %v2187 = vpop.f32.mrb[0].mxu0
        %v2188 = vadd.f32 0.0, %v2187
        %v2189 = vpop.f32.mrb[0].mxu0
        %v2190 = vadd.f32 0.0, %v2189
        %2191 = vmatprep.mubr.bf16.mxu0 0
        %2192 = vmatmul.mubr.bf16.gmra.mrb[0].mxu0 %v2056
        %v2193 = vpop.f32.mrb[0].mxu0
        %v2194 = vadd.f32 0.0, %v2193
        %v2195 = vpop.f32.mrb[0].mxu0
        %v2196 = vadd.f32 0.0, %v2195
        %v2197 = vpop.f32.mrb[0].mxu0
        %v2198 = vadd.f32 0.0, %v2197
        %v2199 = vpop.f32.mrb[0].mxu0
        %v2200 = vadd.f32 0.0, %v2199
        %2201 = vmatprep.mubr.bf16.mxu0 0
        %2202 = vmatmul.mubr.bf16.gmra.mrb[0].mxu0 %v2059
        %v2203 = vpop.f32.mrb[0].mxu0
        %v2204 = vadd.f32 0.0, %v2203
        %v2205 = vpop.f32.mrb[0].mxu0
        %v2206 = vadd.f32 0.0, %v2205
        %v2207 = vpop.f32.mrb[0].mxu0
        %v2208 = vadd.f32 0.0, %v2207
        %v2209 = vpop.f32.mrb[0].mxu0
        %v2210 = vadd.f32 0.0, %v2209
        %2211 = vmatprep.mubr.bf16.mxu0 0
        %2212 = vmatmul.mubr.bf16.gmra.mrb[0].mxu0 %v2062
        %v2213 = vpop.f32.mrb[0].mxu0
        %v2214 = vadd.f32 0.0, %v2213
        %v2215 = vpop.f32.mrb[0].mxu0
        %v2216 = vadd.f32 0.0, %v2215
        %v2217 = vpop.f32.mrb[0].mxu0
        %v2218 = vadd.f32 0.0, %v2217
        %v2219 = vpop.f32.mrb[0].mxu0
        %v2220 = vadd.f32 0.0, %v2219
        %2221 = vmatprep.mubr.bf16.mxu0 0
        %2222 = vmatmul.mubr.bf16.gmra.mrb[0].mxu0 %v2065
        %v2223 = vpop.f32.mrb[0].mxu0
        %v2224 = vadd.f32 0.0, %v2223
        %v2225 = vpop.f32.mrb[0].mxu0
        %v2226 = vadd.f32 0.0, %v2225
        %v2227 = vpop.f32.mrb[0].mxu0
        %v2228 = vadd.f32 0.0, %v2227
        %v2229 = vpop.f32.mrb[0].mxu0
        %v2230 = vadd.f32 0.0, %v2229
        %2231 = vmatprep.mubr.bf16.mxu0 0
        %2232 = vmatmul.mubr.bf16.gmra.mrb[0].mxu0 %v2068
        %v2233 = vpop.f32.mrb[0].mxu0
        %v2234 = vadd.f32 0.0, %v2233
        %v2235 = vpop.f32.mrb[0].mxu0
        %v2236 = vadd.f32 0.0, %v2235
        %v2237 = vpop.f32.mrb[0].mxu0
        %v2238 = vadd.f32 0.0, %v2237
        %v2239 = vpop.f32.mrb[0].mxu0
        %v2240 = vadd.f32 0.0, %v2239
        %2241 = vmatprep.mubr.bf16.mxu0 0
        %2242 = vmatmul.mubr.bf16.gmra.mrb[0].mxu0 %v2071
        %v2243 = vpop.f32.mrb[0].mxu0
        %v2244 = vadd.f32 0.0, %v2243
        %v2245 = vpop.f32.mrb[0].mxu0
        %v2246 = vadd.f32 0.0, %v2245
        %v2247 = vpop.f32.mrb[0].mxu0
        %v2248 = vadd.f32 0.0, %v2247
        %v2249 = vpop.f32.mrb[0].mxu0
        %v2250 = vadd.f32 0.0, %v2249
        %2251 = vmatprep.mubr.bf16.mxu0 0
        %2252 = vmatmul.mubr.bf16.gmra.mrb[0].mxu0 %v2074
        %v2253 = vpop.f32.mrb[0].mxu0
        %v2254 = vadd.f32 0.0, %v2253
        %v2255 = vpop.f32.mrb[0].mxu0
        %v2256 = vadd.f32 0.0, %v2255
        %v2257 = vpop.f32.mrb[0].mxu0
        %v2258 = vadd.f32 0.0, %v2257
        %v2259 = vpop.f32.mrb[0].mxu0
        %v2260 = vadd.f32 0.0, %v2259
        %2261 = vmatprep.mubr.bf16.mxu0 0
        %2262 = vmatmul.mubr.bf16.gmra.mrb[0].mxu0 %v2077
        %v2263 = vpop.f32.mrb[0].mxu0
        %v2264 = vadd.f32 0.0, %v2263
        %v2265 = vpop.f32.mrb[0].mxu0
        %v2266 = vadd.f32 0.0, %v2265
        %v2267 = vpop.f32.mrb[0].mxu0
        %v2268 = vadd.f32 0.0, %v2267
        %v2269 = vpop.f32.mrb[0].mxu0
        %v2270 = vadd.f32 0.0, %v2269
        %2271 = vdwg.mxu0
        %v2272 = vmax.f32 %v2114, %v2116
        %2273 = vmax.xlane.f32.xlu0 %v2272
        %v2274 = vpop.xlane.xlu0 %2273
        %v2275 = vmax.f32 %v2118, %v2120
        %2276 = vmax.xlane.f32.xlu0 %v2275
        %v2277 = vpop.xlane.xlu0 %2276
        %v2278 = vmax.f32 %v2124, %v2126
        %2279 = vmax.xlane.f32.xlu0 %v2278
        %v2280 = vpop.xlane.xlu0 %2279
        %v2281 = vmax.f32 %v2128, %v2130
        %2282 = vmax.xlane.f32.xlu0 %v2281
        %v2283 = vpop.xlane.xlu0 %2282
        %v2284 = vmax.f32 %v2134, %v2136
        %2285 = vmax.xlane.f32.xlu0 %v2284
        %v2286 = vpop.xlane.xlu0 %2285
        %v2287 = vmax.f32 %v2138, %v2140
        %2288 = vmax.xlane.f32.xlu0 %v2287
        %v2289 = vpop.xlane.xlu0 %2288
        %v2290 = vmax.f32 %v2144, %v2146
        %2291 = vmax.xlane.f32.xlu0 %v2290
        %v2292 = vpop.xlane.xlu0 %2291
        %v2293 = vmax.f32 %v2148, %v2150
        %2294 = vmax.xlane.f32.xlu0 %v2293
        %v2295 = vpop.xlane.xlu0 %2294
        %v2296 = vmax.f32 %v2154, %v2156
        %2297 = vmax.xlane.f32.xlu0 %v2296
        %v2298 = vpop.xlane.xlu0 %2297
        %v2299 = vmax.f32 %v2158, %v2160
        %2300 = vmax.xlane.f32.xlu0 %v2299
        %v2301 = vpop.xlane.xlu0 %2300
        %v2302 = vmax.f32 %v2164, %v2166
        %2303 = vmax.xlane.f32.xlu0 %v2302
        %v2304 = vpop.xlane.xlu0 %2303
        %v2305 = vmax.f32 %v2168, %v2170
        %2306 = vmax.xlane.f32.xlu0 %v2305
        %v2307 = vpop.xlane.xlu0 %2306
        %v2308 = vmax.f32 %v2174, %v2176
        %2309 = vmax.xlane.f32.xlu0 %v2308
        %v2310 = vpop.xlane.xlu0 %2309
        %v2311 = vmax.f32 %v2178, %v2180
        %2312 = vmax.xlane.f32.xlu0 %v2311
        %v2313 = vpop.xlane.xlu0 %2312
        %v2314 = vmax.f32 %v2184, %v2186
        %2315 = vmax.xlane.f32.xlu0 %v2314
        %v2316 = vpop.xlane.xlu0 %2315
        %v2317 = vmax.f32 %v2188, %v2190
        %2318 = vmax.xlane.f32.xlu0 %v2317
        %v2319 = vpop.xlane.xlu0 %2318
        %v2320 = vmax.f32 %v2194, %v2196
        %2321 = vmax.xlane.f32.xlu0 %v2320
        %v2322 = vpop.xlane.xlu0 %2321
        %v2323 = vmax.f32 %v2198, %v2200
        %2324 = vmax.xlane.f32.xlu0 %v2323
        %v2325 = vpop.xlane.xlu0 %2324
        %v2326 = vmax.f32 %v2204, %v2206
        %2327 = vmax.xlane.f32.xlu0 %v2326
        %v2328 = vpop.xlane.xlu0 %2327
        %v2329 = vmax.f32 %v2208, %v2210
        %2330 = vmax.xlane.f32.xlu0 %v2329
        %v2331 = vpop.xlane.xlu0 %2330
        %v2332 = vmax.f32 %v2214, %v2216
        %2333 = vmax.xlane.f32.xlu0 %v2332
        %v2334 = vpop.xlane.xlu0 %2333
        %v2335 = vmax.f32 %v2218, %v2220
        %2336 = vmax.xlane.f32.xlu0 %v2335
        %v2337 = vpop.xlane.xlu0 %2336
        %v2338 = vmax.f32 %v2224, %v2226
        %2339 = vmax.xlane.f32.xlu0 %v2338
        %v2340 = vpop.xlane.xlu0 %2339
        %v2341 = vmax.f32 %v2228, %v2230
        %2342 = vmax.xlane.f32.xlu0 %v2341
        %v2343 = vpop.xlane.xlu0 %2342
        %v2344 = vmax.f32 %v2234, %v2236
        %2345 = vmax.xlane.f32.xlu0 %v2344
        %v2346 = vpop.xlane.xlu0 %2345
        %v2347 = vmax.f32 %v2238, %v2240
        %2348 = vmax.xlane.f32.xlu0 %v2347
        %v2349 = vpop.xlane.xlu0 %2348
        %v2350 = vmax.f32 %v2244, %v2246
        %2351 = vmax.xlane.f32.xlu0 %v2350
        %v2352 = vpop.xlane.xlu0 %2351
        %v2353 = vmax.f32 %v2248, %v2250
        %2354 = vmax.xlane.f32.xlu0 %v2353
        %v2355 = vpop.xlane.xlu0 %2354
        %v2356 = vmax.f32 %v2254, %v2256
        %2357 = vmax.xlane.f32.xlu0 %v2356
        %v2358 = vpop.xlane.xlu0 %2357
        %v2359 = vmax.f32 %v2258, %v2260
        %2360 = vmax.xlane.f32.xlu0 %v2359
        %v2361 = vpop.xlane.xlu0 %2360
        %v2362 = vmax.f32 %v2264, %v2266
        %2363 = vmax.xlane.f32.xlu0 %v2362
        %v2364 = vpop.xlane.xlu0 %2363
        %v2365 = vmax.f32 %v2268, %v2270
        %2366 = vmax.xlane.f32.xlu0 %v2365
        %v2367 = vpop.xlane.xlu0 %2366
        %v2368 = vsub.f32 %v2114, %v2274
        %v2369 = vsub.f32 %v2116, %v2274
        %v2370 = vsub.f32 %v2118, %v2277
        %v2371 = vsub.f32 %v2120, %v2277
        %v2372 = vsub.f32 %v2124, %v2280
        %v2373 = vsub.f32 %v2126, %v2280
        %v2374 = vsub.f32 %v2128, %v2283
        %v2375 = vsub.f32 %v2130, %v2283
        %v2376 = vsub.f32 %v2134, %v2286
        %v2377 = vsub.f32 %v2136, %v2286
        %v2378 = vsub.f32 %v2138, %v2289
        %v2379 = vsub.f32 %v2140, %v2289
        %v2380 = vsub.f32 %v2144, %v2292
        %v2381 = vsub.f32 %v2146, %v2292
        %v2382 = vsub.f32 %v2148, %v2295
        %v2383 = vsub.f32 %v2150, %v2295
        %v2384 = vsub.f32 %v2154, %v2298
        %v2385 = vsub.f32 %v2156, %v2298
        %v2386 = vsub.f32 %v2158, %v2301
        %v2387 = vsub.f32 %v2160, %v2301
        %v2388 = vsub.f32 %v2164, %v2304
        %v2389 = vsub.f32 %v2166, %v2304
        %v2390 = vsub.f32 %v2168, %v2307
        %v2391 = vsub.f32 %v2170, %v2307
        %v2392 = vsub.f32 %v2174, %v2310
        %v2393 = vsub.f32 %v2176, %v2310
        %v2394 = vsub.f32 %v2178, %v2313
        %v2395 = vsub.f32 %v2180, %v2313
        %v2396 = vsub.f32 %v2184, %v2316
        %v2397 = vsub.f32 %v2186, %v2316
        %v2398 = vsub.f32 %v2188, %v2319
        %v2399 = vsub.f32 %v2190, %v2319
        %v2400 = vsub.f32 %v2194, %v2322
        %v2401 = vsub.f32 %v2196, %v2322
        %v2402 = vsub.f32 %v2198, %v2325
        %v2403 = vsub.f32 %v2200, %v2325
        %v2404 = vsub.f32 %v2204, %v2328
        %v2405 = vsub.f32 %v2206, %v2328
        %v2406 = vsub.f32 %v2208, %v2331
        %v2407 = vsub.f32 %v2210, %v2331
        %v2408 = vsub.f32 %v2214, %v2334
        %v2409 = vsub.f32 %v2216, %v2334
        %v2410 = vsub.f32 %v2218, %v2337
        %v2411 = vsub.f32 %v2220, %v2337
        %v2412 = vsub.f32 %v2224, %v2340
        %v2413 = vsub.f32 %v2226, %v2340
        %v2414 = vsub.f32 %v2228, %v2343
        %v2415 = vsub.f32 %v2230, %v2343
        %v2416 = vsub.f32 %v2234, %v2346
        %v2417 = vsub.f32 %v2236, %v2346
        %v2418 = vsub.f32 %v2238, %v2349
        %v2419 = vsub.f32 %v2240, %v2349
        %v2420 = vsub.f32 %v2244, %v2352
        %v2421 = vsub.f32 %v2246, %v2352
        %v2422 = vsub.f32 %v2248, %v2355
        %v2423 = vsub.f32 %v2250, %v2355
        %v2424 = vsub.f32 %v2254, %v2358
        %v2425 = vsub.f32 %v2256, %v2358
        %v2426 = vsub.f32 %v2258, %v2361
        %v2427 = vsub.f32 %v2260, %v2361
        %v2428 = vsub.f32 %v2264, %v2364
        %v2429 = vsub.f32 %v2266, %v2364
        %v2430 = vsub.f32 %v2268, %v2367
        %v2431 = vsub.f32 %v2270, %v2367
        %v2432 = vmul.f32 %v2368, 1.442695
        %v2433 = vpow.pop %v2432
        %v2434 = vmul.f32 %v2369, 1.442695
        %v2435 = vpow.pop %v2434
        %v2436 = vmul.f32 %v2370, 1.442695
        %v2437 = vpow.pop %v2436
        %v2438 = vmul.f32 %v2371, 1.442695
        %v2439 = vpow.pop %v2438
        %v2440 = vmul.f32 %v2372, 1.442695
        %v2441 = vpow.pop %v2440
        %v2442 = vmul.f32 %v2373, 1.442695
        %v2443 = vpow.pop %v2442
        %v2444 = vmul.f32 %v2374, 1.442695
        %v2445 = vpow.pop %v2444
        %v2446 = vmul.f32 %v2375, 1.442695
        %v2447 = vpow.pop %v2446
        %v2448 = vmul.f32 %v2376, 1.442695
        %v2449 = vpow.pop %v2448
        %v2450 = vmul.f32 %v2377, 1.442695
        %v2451 = vpow.pop %v2450
        %v2452 = vmul.f32 %v2378, 1.442695
        %v2453 = vpow.pop %v2452
        %v2454 = vmul.f32 %v2379, 1.442695
        %v2455 = vpow.pop %v2454
        %v2456 = vmul.f32 %v2380, 1.442695
        %v2457 = vpow.pop %v2456
        %v2458 = vmul.f32 %v2381, 1.442695
        %v2459 = vpow.pop %v2458
        %v2460 = vmul.f32 %v2382, 1.442695
        %v2461 = vpow.pop %v2460
        %v2462 = vmul.f32 %v2383, 1.442695
        %v2463 = vpow.pop %v2462
        %v2464 = vmul.f32 %v2384, 1.442695
        %v2465 = vpow.pop %v2464
        %v2466 = vmul.f32 %v2385, 1.442695
        %v2467 = vpow.pop %v2466
        %v2468 = vmul.f32 %v2386, 1.442695
        %v2469 = vpow.pop %v2468
        %v2470 = vmul.f32 %v2387, 1.442695
        %v2471 = vpow.pop %v2470
        %v2472 = vmul.f32 %v2388, 1.442695
        %v2473 = vpow.pop %v2472
        %v2474 = vmul.f32 %v2389, 1.442695
        %v2475 = vpow.pop %v2474
        %v2476 = vmul.f32 %v2390, 1.442695
        %v2477 = vpow.pop %v2476
        %v2478 = vmul.f32 %v2391, 1.442695
        %v2479 = vpow.pop %v2478
        %v2480 = vmul.f32 %v2392, 1.442695
        %v2481 = vpow.pop %v2480
        %v2482 = vmul.f32 %v2393, 1.442695
        %v2483 = vpow.pop %v2482
        %v2484 = vmul.f32 %v2394, 1.442695
        %v2485 = vpow.pop %v2484
        %v2486 = vmul.f32 %v2395, 1.442695
        %v2487 = vpow.pop %v2486
        %v2488 = vmul.f32 %v2396, 1.442695
        %v2489 = vpow.pop %v2488
        %v2490 = vmul.f32 %v2397, 1.442695
        %v2491 = vpow.pop %v2490
        %v2492 = vmul.f32 %v2398, 1.442695
        %v2493 = vpow.pop %v2492
        %v2494 = vmul.f32 %v2399, 1.442695
        %v2495 = vpow.pop %v2494
        %v2496 = vmul.f32 %v2400, 1.442695
        %v2497 = vpow.pop %v2496
        %v2498 = vmul.f32 %v2401, 1.442695
        %v2499 = vpow.pop %v2498
        %v2500 = vmul.f32 %v2402, 1.442695
        %v2501 = vpow.pop %v2500
        %v2502 = vmul.f32 %v2403, 1.442695
        %v2503 = vpow.pop %v2502
        %v2504 = vmul.f32 %v2404, 1.442695
        %v2505 = vpow.pop %v2504
        %v2506 = vmul.f32 %v2405, 1.442695
        %v2507 = vpow.pop %v2506
        %v2508 = vmul.f32 %v2406, 1.442695
        %v2509 = vpow.pop %v2508
        %v2510 = vmul.f32 %v2407, 1.442695
        %v2511 = vpow.pop %v2510
        %v2512 = vmul.f32 %v2408, 1.442695
        %v2513 = vpow.pop %v2512
        %v2514 = vmul.f32 %v2409, 1.442695
        %v2515 = vpow.pop %v2514
        %v2516 = vmul.f32 %v2410, 1.442695
        %v2517 = vpow.pop %v2516
        %v2518 = vmul.f32 %v2411, 1.442695
        %v2519 = vpow.pop %v2518
        %v2520 = vmul.f32 %v2412, 1.442695
        %v2521 = vpow.pop %v2520
        %v2522 = vmul.f32 %v2413, 1.442695
        %v2523 = vpow.pop %v2522
        %v2524 = vmul.f32 %v2414, 1.442695
        %v2525 = vpow.pop %v2524
        %v2526 = vmul.f32 %v2415, 1.442695
        %v2527 = vpow.pop %v2526
        %v2528 = vmul.f32 %v2416, 1.442695
        %v2529 = vpow.pop %v2528
        %v2530 = vmul.f32 %v2417, 1.442695
        %v2531 = vpow.pop %v2530
        %v2532 = vmul.f32 %v2418, 1.442695
        %v2533 = vpow.pop %v2532
        %v2534 = vmul.f32 %v2419, 1.442695
        %v2535 = vpow.pop %v2534
        %v2536 = vmul.f32 %v2420, 1.442695
        %v2537 = vpow.pop %v2536
        %v2538 = vmul.f32 %v2421, 1.442695
        %v2539 = vpow.pop %v2538
        %v2540 = vmul.f32 %v2422, 1.442695
        %v2541 = vpow.pop %v2540
        %v2542 = vmul.f32 %v2423, 1.442695
        %v2543 = vpow.pop %v2542
        %v2544 = vmul.f32 %v2424, 1.442695
        %v2545 = vpow.pop %v2544
        %v2546 = vmul.f32 %v2425, 1.442695
        %v2547 = vpow.pop %v2546
        %v2548 = vmul.f32 %v2426, 1.442695
        %v2549 = vpow.pop %v2548
        %v2550 = vmul.f32 %v2427, 1.442695
        %v2551 = vpow.pop %v2550
        %v2552 = vmul.f32 %v2428, 1.442695
        %v2553 = vpow.pop %v2552
        %v2554 = vmul.f32 %v2429, 1.442695
        %v2555 = vpow.pop %v2554
        %v2556 = vmul.f32 %v2430, 1.442695
        %v2557 = vpow.pop %v2556
        %v2558 = vmul.f32 %v2431, 1.442695
        %v2559 = vpow.pop %v2558
        %v2560 = vadd.f32 %v2433, %v2435
        %2561 = vadd.xlane.f32.xlu0 %v2560
        %v2562 = vpop.xlane.xlu0 %2561
        %v2563 = vadd.f32 %v2437, %v2439
        %2564 = vadd.xlane.f32.xlu0 %v2563
        %v2565 = vpop.xlane.xlu0 %2564
        %v2566 = vadd.f32 %v2441, %v2443
        %2567 = vadd.xlane.f32.xlu0 %v2566
        %v2568 = vpop.xlane.xlu0 %2567
        %v2569 = vadd.f32 %v2445, %v2447
        %2570 = vadd.xlane.f32.xlu0 %v2569
        %v2571 = vpop.xlane.xlu0 %2570
        %v2572 = vadd.f32 %v2449, %v2451
        %2573 = vadd.xlane.f32.xlu0 %v2572
        %v2574 = vpop.xlane.xlu0 %2573
        %v2575 = vadd.f32 %v2453, %v2455
        %2576 = vadd.xlane.f32.xlu0 %v2575
        %v2577 = vpop.xlane.xlu0 %2576
        %v2578 = vadd.f32 %v2457, %v2459
        %2579 = vadd.xlane.f32.xlu0 %v2578
        %v2580 = vpop.xlane.xlu0 %2579
        %v2581 = vadd.f32 %v2461, %v2463
        %2582 = vadd.xlane.f32.xlu0 %v2581
        %v2583 = vpop.xlane.xlu0 %2582
        %v2584 = vadd.f32 %v2465, %v2467
        %2585 = vadd.xlane.f32.xlu0 %v2584
        %v2586 = vpop.xlane.xlu0 %2585
        %v2587 = vadd.f32 %v2469, %v2471
        %2588 = vadd.xlane.f32.xlu0 %v2587
        %v2589 = vpop.xlane.xlu0 %2588
        %v2590 = vadd.f32 %v2473, %v2475
        %2591 = vadd.xlane.f32.xlu0 %v2590
        %v2592 = vpop.xlane.xlu0 %2591
        %v2593 = vadd.f32 %v2477, %v2479
        %2594 = vadd.xlane.f32.xlu0 %v2593
        %v2595 = vpop.xlane.xlu0 %2594
        %v2596 = vadd.f32 %v2481, %v2483
        %2597 = vadd.xlane.f32.xlu0 %v2596
        %v2598 = vpop.xlane.xlu0 %2597
        %v2599 = vadd.f32 %v2485, %v2487
        %2600 = vadd.xlane.f32.xlu0 %v2599
        %v2601 = vpop.xlane.xlu0 %2600
        %v2602 = vadd.f32 %v2489, %v2491
        %2603 = vadd.xlane.f32.xlu0 %v2602
        %v2604 = vpop.xlane.xlu0 %2603
        %v2605 = vadd.f32 %v2493, %v2495
        %2606 = vadd.xlane.f32.xlu0 %v2605
        %v2607 = vpop.xlane.xlu0 %2606
        %v2608 = vadd.f32 %v2497, %v2499
        %2609 = vadd.xlane.f32.xlu0 %v2608
        %v2610 = vpop.xlane.xlu0 %2609
        %v2611 = vadd.f32 %v2501, %v2503
        %2612 = vadd.xlane.f32.xlu0 %v2611
        %v2613 = vpop.xlane.xlu0 %2612
        %v2614 = vadd.f32 %v2505, %v2507
        %2615 = vadd.xlane.f32.xlu0 %v2614
        %v2616 = vpop.xlane.xlu0 %2615
        %v2617 = vadd.f32 %v2509, %v2511
        %2618 = vadd.xlane.f32.xlu0 %v2617
        %v2619 = vpop.xlane.xlu0 %2618
        %v2620 = vadd.f32 %v2513, %v2515
        %2621 = vadd.xlane.f32.xlu0 %v2620
        %v2622 = vpop.xlane.xlu0 %2621
        %v2623 = vadd.f32 %v2517, %v2519
        %2624 = vadd.xlane.f32.xlu0 %v2623
        %v2625 = vpop.xlane.xlu0 %2624
        %v2626 = vadd.f32 %v2521, %v2523
        %2627 = vadd.xlane.f32.xlu0 %v2626
        %v2628 = vpop.xlane.xlu0 %2627
        %v2629 = vadd.f32 %v2525, %v2527
        %2630 = vadd.xlane.f32.xlu0 %v2629
        %v2631 = vpop.xlane.xlu0 %2630
        %v2632 = vadd.f32 %v2529, %v2531
        %2633 = vadd.xlane.f32.xlu0 %v2632
        %v2634 = vpop.xlane.xlu0 %2633
        %v2635 = vadd.f32 %v2533, %v2535
        %2636 = vadd.xlane.f32.xlu0 %v2635
        %v2637 = vpop.xlane.xlu0 %2636
        %v2638 = vadd.f32 %v2537, %v2539
        %2639 = vadd.xlane.f32.xlu0 %v2638
        %v2640 = vpop.xlane.xlu0 %2639
        %v2641 = vadd.f32 %v2541, %v2543
        %2642 = vadd.xlane.f32.xlu0 %v2641
        %v2643 = vpop.xlane.xlu0 %2642
        %v2644 = vadd.f32 %v2545, %v2547
        %2645 = vadd.xlane.f32.xlu0 %v2644
        %v2646 = vpop.xlane.xlu0 %2645
        %v2647 = vadd.f32 %v2549, %v2551
        %2648 = vadd.xlane.f32.xlu0 %v2647
        %v2649 = vpop.xlane.xlu0 %2648
        %v2650 = vadd.f32 %v2553, %v2555
        %2651 = vadd.xlane.f32.xlu0 %v2650
        %v2652 = vpop.xlane.xlu0 %2651
        %v2653 = vadd.f32 %v2557, %v2559
        %2654 = vadd.xlane.f32.xlu0 %v2653
        %v2655 = vpop.xlane.xlu0 %2654
        %v2656 = vrcp.pop %v2562
        %v2657 = vmul.f32 1.0, %v2656
        %v2658 = vrcp.pop %v2565
        %v2659 = vmul.f32 1.0, %v2658
        %v2660 = vrcp.pop %v2568
        %v2661 = vmul.f32 1.0, %v2660
        %v2662 = vrcp.pop %v2571
        %v2663 = vmul.f32 1.0, %v2662
        %v2664 = vrcp.pop %v2574
        %v2665 = vmul.f32 1.0, %v2664
        %v2666 = vrcp.pop %v2577
        %v2667 = vmul.f32 1.0, %v2666
        %v2668 = vrcp.pop %v2580
        %v2669 = vmul.f32 1.0, %v2668
        %v2670 = vrcp.pop %v2583
        %v2671 = vmul.f32 1.0, %v2670
        %v2672 = vrcp.pop %v2586
        %v2673 = vmul.f32 1.0, %v2672
        %v2674 = vrcp.pop %v2589
        %v2675 = vmul.f32 1.0, %v2674
        %v2676 = vrcp.pop %v2592
        %v2677 = vmul.f32 1.0, %v2676
        %v2678 = vrcp.pop %v2595
        %v2679 = vmul.f32 1.0, %v2678
        %v2680 = vrcp.pop %v2598
        %v2681 = vmul.f32 1.0, %v2680
        %v2682 = vrcp.pop %v2601
        %v2683 = vmul.f32 1.0, %v2682
        %v2684 = vrcp.pop %v2604
        %v2685 = vmul.f32 1.0, %v2684
        %v2686 = vrcp.pop %v2607
        %v2687 = vmul.f32 1.0, %v2686
        %v2688 = vrcp.pop %v2610
        %v2689 = vmul.f32 1.0, %v2688
        %v2690 = vrcp.pop %v2613
        %v2691 = vmul.f32 1.0, %v2690
        %v2692 = vrcp.pop %v2616
        %v2693 = vmul.f32 1.0, %v2692
        %v2694 = vrcp.pop %v2619
        %v2695 = vmul.f32 1.0, %v2694
        %v2696 = vrcp.pop %v2622
        %v2697 = vmul.f32 1.0, %v2696
        %v2698 = vrcp.pop %v2625
        %v2699 = vmul.f32 1.0, %v2698
        %v2700 = vrcp.pop %v2628
        %v2701 = vmul.f32 1.0, %v2700
        %v2702 = vrcp.pop %v2631
        %v2703 = vmul.f32 1.0, %v2702
        %v2704 = vrcp.pop %v2634
        %v2705 = vmul.f32 1.0, %v2704
        %v2706 = vrcp.pop %v2637
        %v2707 = vmul.f32 1.0, %v2706
        %v2708 = vrcp.pop %v2640
        %v2709 = vmul.f32 1.0, %v2708
        %v2710 = vrcp.pop %v2643
        %v2711 = vmul.f32 1.0, %v2710
        %v2712 = vrcp.pop %v2646
        %v2713 = vmul.f32 1.0, %v2712
        %v2714 = vrcp.pop %v2649
        %v2715 = vmul.f32 1.0, %v2714
        %v2716 = vrcp.pop %v2652
        %v2717 = vmul.f32 1.0, %v2716
        %v2718 = vrcp.pop %v2655
        %v2719 = vmul.f32 1.0, %v2718
        %v2720 = vmul.f32 %v2433, %v2657
        %v2721 = vmul.f32 %v2435, %v2657
        %v2722 = vmul.f32 %v2437, %v2659
        %v2723 = vmul.f32 %v2439, %v2659
        %v2724 = vmul.f32 %v2441, %v2661
        %v2725 = vmul.f32 %v2443, %v2661
        %v2726 = vmul.f32 %v2445, %v2663
        %v2727 = vmul.f32 %v2447, %v2663
        %v2728 = vmul.f32 %v2449, %v2665
        %v2729 = vmul.f32 %v2451, %v2665
        %v2730 = vmul.f32 %v2453, %v2667
        %v2731 = vmul.f32 %v2455, %v2667
        %v2732 = vmul.f32 %v2457, %v2669
        %v2733 = vmul.f32 %v2459, %v2669
        %v2734 = vmul.f32 %v2461, %v2671
        %v2735 = vmul.f32 %v2463, %v2671
        %v2736 = vmul.f32 %v2465, %v2673
        %v2737 = vmul.f32 %v2467, %v2673
        %v2738 = vmul.f32 %v2469, %v2675
        %v2739 = vmul.f32 %v2471, %v2675
        %v2740 = vmul.f32 %v2473, %v2677
        %v2741 = vmul.f32 %v2475, %v2677
        %v2742 = vmul.f32 %v2477, %v2679
        %v2743 = vmul.f32 %v2479, %v2679
        %v2744 = vmul.f32 %v2481, %v2681
        %v2745 = vmul.f32 %v2483, %v2681
        %v2746 = vmul.f32 %v2485, %v2683
        %v2747 = vmul.f32 %v2487, %v2683
        %v2748 = vmul.f32 %v2489, %v2685
        %v2749 = vmul.f32 %v2491, %v2685
        %v2750 = vmul.f32 %v2493, %v2687
        %v2751 = vmul.f32 %v2495, %v2687
        %v2752 = vmul.f32 %v2497, %v2689
        %v2753 = vmul.f32 %v2499, %v2689
        %v2754 = vmul.f32 %v2501, %v2691
        %v2755 = vmul.f32 %v2503, %v2691
        %v2756 = vmul.f32 %v2505, %v2693
        %v2757 = vmul.f32 %v2507, %v2693
        %v2758 = vmul.f32 %v2509, %v2695
        %v2759 = vmul.f32 %v2511, %v2695
        %v2760 = vmul.f32 %v2513, %v2697
        %v2761 = vmul.f32 %v2515, %v2697
        %v2762 = vmul.f32 %v2517, %v2699
        %v2763 = vmul.f32 %v2519, %v2699
        %v2764 = vmul.f32 %v2521, %v2701
        %v2765 = vmul.f32 %v2523, %v2701
        %v2766 = vmul.f32 %v2525, %v2703
        %v2767 = vmul.f32 %v2527, %v2703
        %v2768 = vmul.f32 %v2529, %v2705
        %v2769 = vmul.f32 %v2531, %v2705
        %v2770 = vmul.f32 %v2533, %v2707
        %v2771 = vmul.f32 %v2535, %v2707
        %v2772 = vmul.f32 %v2537, %v2709
        %v2773 = vmul.f32 %v2539, %v2709
        %v2774 = vmul.f32 %v2541, %v2711
        %v2775 = vmul.f32 %v2543, %v2711
        %v2776 = vmul.f32 %v2545, %v2713
        %v2777 = vmul.f32 %v2547, %v2713
        %v2778 = vmul.f32 %v2549, %v2715
        %v2779 = vmul.f32 %v2551, %v2715
        %v2780 = vmul.f32 %v2553, %v2717
        %v2781 = vmul.f32 %v2555, %v2717
        %v2782 = vmul.f32 %v2557, %v2719
        %v2783 = vmul.f32 %v2559, %v2719
        %v2784 = vpack.c.bf16 %v2722, %v2720
        %v2785 = vpack.c.bf16 %v2723, %v2721
        %v2786 = vpack.c.bf16 %v2726, %v2724
        %v2787 = vpack.c.bf16 %v2727, %v2725
        %v2788 = vpack.c.bf16 %v2730, %v2728
        %v2789 = vpack.c.bf16 %v2731, %v2729
        %v2790 = vpack.c.bf16 %v2734, %v2732
        %v2791 = vpack.c.bf16 %v2735, %v2733
        %v2792 = vpack.c.bf16 %v2738, %v2736
        %v2793 = vpack.c.bf16 %v2739, %v2737
        %v2794 = vpack.c.bf16 %v2742, %v2740
        %v2795 = vpack.c.bf16 %v2743, %v2741
        %v2796 = vpack.c.bf16 %v2746, %v2744
        %v2797 = vpack.c.bf16 %v2747, %v2745
        %v2798 = vpack.c.bf16 %v2750, %v2748
        %v2799 = vpack.c.bf16 %v2751, %v2749
        %v2800 = vpack.c.bf16 %v2754, %v2752
        %v2801 = vpack.c.bf16 %v2755, %v2753
        %v2802 = vpack.c.bf16 %v2758, %v2756
        %v2803 = vpack.c.bf16 %v2759, %v2757
        %v2804 = vpack.c.bf16 %v2762, %v2760
        %v2805 = vpack.c.bf16 %v2763, %v2761
        %v2806 = vpack.c.bf16 %v2766, %v2764
        %v2807 = vpack.c.bf16 %v2767, %v2765
        %v2808 = vpack.c.bf16 %v2770, %v2768
        %v2809 = vpack.c.bf16 %v2771, %v2769
        %v2810 = vpack.c.bf16 %v2774, %v2772
        %v2811 = vpack.c.bf16 %v2775, %v2773
        %v2812 = vpack.c.bf16 %v2778, %v2776
        %v2813 = vpack.c.bf16 %v2779, %v2777
        %v2814 = vpack.c.bf16 %v2782, %v2780
        %v2815 = vpack.c.bf16 %v2783, %v2781
        %v2816 = vpack.c.bf16 %v1946, %v1944
        %v2817 = vpack.c.bf16 %v1947, %v1945
        %2818 = vmatprep.subr.bf16.mxu0 %v2785
        %2819 = vmatpush1.bf16.xpose.msra.mxu0 %v2784
        %2820 = vmatprep.subr.bf16.mxu0 %v2787
        %2821 = vmatpush1.bf16.xpose.msra.mxu0 %v2786
        %2822 = vmatprep.subr.bf16.mxu0 %v2789
        %2823 = vmatpush1.bf16.xpose.msra.mxu0 %v2788
        %2824 = vmatprep.subr.bf16.mxu0 %v2791
        %2825 = vmatpush1.bf16.xpose.msra.mxu0 %v2790
        %2826 = vmatprep.subr.bf16.mxu0 %v2793
        %2827 = vmatpush1.bf16.xpose.msra.mxu0 %v2792
        %2828 = vmatprep.subr.bf16.mxu0 %v2795
        %2829 = vmatpush1.bf16.xpose.msra.mxu0 %v2794
        %2830 = vmatprep.subr.bf16.mxu0 %v2797
        %2831 = vmatpush1.bf16.xpose.msra.mxu0 %v2796
        %2832 = vmatprep.subr.bf16.mxu0 %v2799
        %2833 = vmatpush1.bf16.xpose.msra.mxu0 %v2798
        %2834 = vmatprep.subr.bf16.mxu0 %v2801
        %2835 = vmatpush1.bf16.xpose.msra.mxu0 %v2800
        %2836 = vmatprep.subr.bf16.mxu0 %v2803
        %2837 = vmatpush1.bf16.xpose.msra.mxu0 %v2802
        %2838 = vmatprep.subr.bf16.mxu0 %v2805
        %2839 = vmatpush1.bf16.xpose.msra.mxu0 %v2804
        %2840 = vmatprep.subr.bf16.mxu0 %v2807
        %2841 = vmatpush1.bf16.xpose.msra.mxu0 %v2806
        %2842 = vmatprep.subr.bf16.mxu0 %v2809
        %2843 = vmatpush1.bf16.xpose.msra.mxu0 %v2808
        %2844 = vmatprep.subr.bf16.mxu0 %v2811
        %2845 = vmatpush1.bf16.xpose.msra.mxu0 %v2810
        %2846 = vmatprep.subr.bf16.mxu0 %v2813
        %2847 = vmatpush1.bf16.xpose.msra.mxu0 %v2812
        %2848 = vmatprep.subr.bf16.mxu0 %v2815
        %2849 = vmatpush1.bf16.xpose.msra.mxu0 %v2814
        %2850 = vmatprep.mubr.bf16.mxu0 %v2817
        %2851 = vmatmul.mubr.bf16.gmra.mrb[0].mxu0 %v2816
        %v2852 = vpop.f32.mrb[0].mxu0
        %v2853 = vadd.f32 0.0, %v2852
        %v2854 = vpop.f32.mrb[0].mxu0
        %v2855 = vadd.f32 0.0, %v2854
        %v2856 = vpop.f32.mrb[0].mxu0
        %v2857 = vadd.f32 0.0, %v2856
        %v2858 = vpop.f32.mrb[0].mxu0
        %v2859 = vadd.f32 0.0, %v2858
        %2860 = vdwg.mxu0
        %s2861 = smul.addr %s1921, 8
        %s2862 = scalar_lea.vmem [#allocation3], %s2861
        %2863 = vst [vmem:[%s2862] sm:$0xff] %v2853
        %2864 = vst [vmem:[%s2862 + $0x8] sm:$0xff] %v2855
        %2865 = vst [vmem:[%s2862 + $0x10] sm:$0xff] %v2857
        %2866 = vst [vmem:[%s2862 + $0x18] sm:$0xff] %v2859
      $region77: #{self_attention.1} parent=71 // loop_footer
        %s1917 = sadd.s32 1, %s1913
      $region78: #{self_attention.1} parent=71 // loop_footer_branch
        %1912 = sbr.rel target = $region74
      $region79: #{self_attention.1} parent=71 // loop_exit
        _
      %v2867 = vld [vmem:[#allocation3] sm:$0xff]
      %v2868 = vld [vmem:[#allocation3 + $0x8] sm:$0xff]
      %v2869 = vld [vmem:[#allocation3 + $0x10] sm:$0xff]
      %v2870 = vld [vmem:[#allocation3 + $0x18] sm:$0xff]
      %v2871 = vld [vmem:[#allocation3 + $0x20] sm:$0xff]
      %v2872 = vld [vmem:[#allocation3 + $0x28] sm:$0xff]
      %v2873 = vld [vmem:[#allocation3 + $0x30] sm:$0xff]
      %v2874 = vld [vmem:[#allocation3 + $0x38] sm:$0xff]
      %v2875 = vld [vmem:[#allocation3 + $0x40] sm:$0xff]
      %v2876 = vld [vmem:[#allocation3 + $0x48] sm:$0xff]
      %v2877 = vld [vmem:[#allocation3 + $0x50] sm:$0xff]
      %v2878 = vld [vmem:[#allocation3 + $0x58] sm:$0xff]
      %v2879 = vld [vmem:[#allocation3 + $0x60] sm:$0xff]
      %v2880 = vld [vmem:[#allocation3 + $0x68] sm:$0xff]
      %v2881 = vld [vmem:[#allocation3 + $0x70] sm:$0xff]
      %v2882 = vld [vmem:[#allocation3 + $0x78] sm:$0xff]
      %v2883 = vld [vmem:[#allocation3 + $0x80] sm:$0xff]
      %v2884 = vld [vmem:[#allocation3 + $0x88] sm:$0xff]
      %v2885 = vld [vmem:[#allocation3 + $0x90] sm:$0xff]
      %v2886 = vld [vmem:[#allocation3 + $0x98] sm:$0xff]
      %v2887 = vld [vmem:[#allocation3 + $0xa0] sm:$0xff]
      %v2888 = vld [vmem:[#allocation3 + $0xa8] sm:$0xff]
      %v2889 = vld [vmem:[#allocation3 + $0xb0] sm:$0xff]
      %v2890 = vld [vmem:[#allocation3 + $0xb8] sm:$0xff]
      %v2891 = vld [vmem:[#allocation3 + $0xc0] sm:$0xff]
      %v2892 = vld [vmem:[#allocation3 + $0xc8] sm:$0xff]
      %v2893 = vld [vmem:[#allocation3 + $0xd0] sm:$0xff]
      %v2894 = vld [vmem:[#allocation3 + $0xd8] sm:$0xff]
      %v2895 = vld [vmem:[#allocation3 + $0xe0] sm:$0xff]
      %v2896 = vld [vmem:[#allocation3 + $0xe8] sm:$0xff]
      %v2897 = vld [vmem:[#allocation3 + $0xf0] sm:$0xff]
      %v2898 = vld [vmem:[#allocation3 + $0xf8] sm:$0xff]
      %v2899 = vpack.c.bf16 %v2869, %v2867
      %v2900 = vpack.c.bf16 %v2870, %v2868
      %v2901 = vpack.c.bf16 %v2873, %v2871
      %v2902 = vpack.c.bf16 %v2874, %v2872
      %v2903 = vpack.c.bf16 %v2877, %v2875
      %v2904 = vpack.c.bf16 %v2878, %v2876
      %v2905 = vpack.c.bf16 %v2881, %v2879
      %v2906 = vpack.c.bf16 %v2882, %v2880
      %v2907 = vpack.c.bf16 %v2885, %v2883
      %v2908 = vpack.c.bf16 %v2886, %v2884
      %v2909 = vpack.c.bf16 %v2889, %v2887
      %v2910 = vpack.c.bf16 %v2890, %v2888
      %v2911 = vpack.c.bf16 %v2893, %v2891
      %v2912 = vpack.c.bf16 %v2894, %v2892
      %v2913 = vpack.c.bf16 %v2897, %v2895
      %v2914 = vpack.c.bf16 %v2898, %v2896
      %2916 = vset.pattern.permute.xlu0 0
      %2917 = vperm.xlu0 %2916, %v618
      %v2918 = vpop.permute.xlu0 %2917
      %2921 = vset.pattern.permute.xlu0 0
      %2922 = vperm.xlu0 %2921, %v619
      %v2923 = vpop.permute.xlu0 %2922
      %2926 = vset.pattern.permute.xlu0 0
      %2927 = vperm.xlu0 %2926, %v620
      %v2928 = vpop.permute.xlu0 %2927
      %2931 = vset.pattern.permute.xlu0 0
      %2932 = vperm.xlu0 %2931, %v621
      %v2933 = vpop.permute.xlu0 %2932
      %2936 = vset.pattern.permute.xlu0 0
      %2937 = vperm.xlu0 %2936, %v622
      %v2938 = vpop.permute.xlu0 %2937
      %2941 = vset.pattern.permute.xlu0 0
      %2942 = vperm.xlu0 %2941, %v623
      %v2943 = vpop.permute.xlu0 %2942
      %2946 = vset.pattern.permute.xlu0 0
      %2947 = vperm.xlu0 %2946, %v624
      %v2948 = vpop.permute.xlu0 %2947
      %2951 = vset.pattern.permute.xlu0 0
      %2952 = vperm.xlu0 %2951, %v625
      %v2953 = vpop.permute.xlu0 %2952
      %2956 = vset.pattern.permute.xlu0 0
      %2957 = vperm.xlu0 %2956, %v626
      %v2958 = vpop.permute.xlu0 %2957
      %2961 = vset.pattern.permute.xlu0 0
      %2962 = vperm.xlu0 %2961, %v627
      %v2963 = vpop.permute.xlu0 %2962
      %2966 = vset.pattern.permute.xlu0 0
      %2967 = vperm.xlu0 %2966, %v628
      %v2968 = vpop.permute.xlu0 %2967
      %2971 = vset.pattern.permute.xlu0 0
      %2972 = vperm.xlu0 %2971, %v629
      %v2973 = vpop.permute.xlu0 %2972
      %2976 = vset.pattern.permute.xlu0 0
      %2977 = vperm.xlu0 %2976, %v630
      %v2978 = vpop.permute.xlu0 %2977
      %2981 = vset.pattern.permute.xlu0 0
      %2982 = vperm.xlu0 %2981, %v631
      %v2983 = vpop.permute.xlu0 %2982
      %2986 = vset.pattern.permute.xlu0 0
      %2987 = vperm.xlu0 %2986, %v632
      %v2988 = vpop.permute.xlu0 %2987
      %2991 = vset.pattern.permute.xlu0 0
      %2992 = vperm.xlu0 %2991, %v633
      %v2993 = vpop.permute.xlu0 %2992
      %v3011 = vunpack.c.l.b16 %v602
      %v3012 = vunpack.c.l.b16 %v603
      %v3013 = vunpack.c.l.b16 %v604
      %v3014 = vunpack.c.l.b16 %v605
      %v3015 = vunpack.c.l.b16 %v606
      %v3016 = vunpack.c.l.b16 %v607
      %v3017 = vunpack.c.l.b16 %v608
      %v3018 = vunpack.c.l.b16 %v609
      %v3019 = vunpack.c.l.b16 %v610
      %v3020 = vunpack.c.l.b16 %v611
      %v3021 = vunpack.c.l.b16 %v612
      %v3022 = vunpack.c.l.b16 %v613
      %v3023 = vunpack.c.l.b16 %v614
      %v3024 = vunpack.c.l.b16 %v615
      %v3025 = vunpack.c.l.b16 %v616
      %v3026 = vunpack.c.l.b16 %v617
      %v3027 = vpack.c.b16 %v3012, %v3011
      %v3028 = vpack.c.b16 %v3014, %v3013
      %v3029 = vpack.c.b16 %v3016, %v3015
      %v3030 = vpack.c.b16 %v3018, %v3017
      %v3031 = vpack.c.b16 %v3020, %v3019
      %v3032 = vpack.c.b16 %v3022, %v3021
      %v3033 = vpack.c.b16 %v3024, %v3023
      %v3034 = vpack.c.b16 %v3026, %v3025
      %3043 = vmatprep.subr.bf16.mxu0 %v2900
      %3044 = vmatpush1.bf16.msra.mxu0 %v2899
      %3045 = vmatprep.subr.bf16.mxu0 %v2902
      %3046 = vmatpush1.bf16.msra.mxu0 %v2901
      %3047 = vmatprep.subr.bf16.mxu0 %v2904
      %3048 = vmatpush1.bf16.msra.mxu0 %v2903
      %3049 = vmatprep.subr.bf16.mxu0 %v2906
      %3050 = vmatpush1.bf16.msra.mxu0 %v2905
      %3051 = vmatprep.subr.bf16.mxu0 %v2908
      %3052 = vmatpush1.bf16.msra.mxu0 %v2907
      %3053 = vmatprep.subr.bf16.mxu0 %v2910
      %3054 = vmatpush1.bf16.msra.mxu0 %v2909
      %3055 = vmatprep.subr.bf16.mxu0 %v2912
      %3056 = vmatpush1.bf16.msra.mxu0 %v2911
      %3057 = vmatprep.subr.bf16.mxu0 %v2914
      %3058 = vmatpush1.bf16.msra.mxu0 %v2913
      %3059 = vmatprep.subr.bf16.mxu0 0
      %3060 = vmatpush1.bf16.msra.mxu0 0
      %3061 = vmatprep.subr.bf16.mxu0 0
      %3062 = vmatpush1.bf16.msra.mxu0 0
      %3063 = vmatprep.subr.bf16.mxu0 0
      %3064 = vmatpush1.bf16.msra.mxu0 0
      %3065 = vmatprep.subr.bf16.mxu0 0
      %3066 = vmatpush1.bf16.msra.mxu0 0
      %3067 = vmatprep.subr.bf16.mxu0 0
      %3068 = vmatpush1.bf16.msra.mxu0 0
      %3069 = vmatprep.subr.bf16.mxu0 0
      %3070 = vmatpush1.bf16.msra.mxu0 0
      %3071 = vmatprep.subr.bf16.mxu0 0
      %3072 = vmatpush1.bf16.msra.mxu0 0
      %3073 = vmatprep.subr.bf16.mxu0 0
      %3074 = vmatpush1.bf16.msra.mxu0 0
      %3075 = vmatprep.mubr.bf16.mxu0 0
      %3076 = vmatmul.mubr.bf16.gmra.mrb[0].mxu0 %v3027
      %v3077 = vpop.f32.mrb[0].mxu0
      %v3078 = vadd.f32 %v2918, %v3077
      %v3079 = vpop.f32.mrb[0].mxu0
      %v3080 = vadd.f32 %v2918, %v3079
      %v3081 = vpop.f32.mrb[0].mxu0
      %v3082 = vadd.f32 %v2923, %v3081
      %v3083 = vpop.f32.mrb[0].mxu0
      %v3084 = vadd.f32 %v2923, %v3083
      %3085 = vmatprep.mubr.bf16.mxu0 0
      %3086 = vmatmul.mubr.bf16.gmra.mrb[0].mxu0 %v3028
      %v3087 = vpop.f32.mrb[0].mxu0
      %v3088 = vadd.f32 %v2928, %v3087
      %v3089 = vpop.f32.mrb[0].mxu0
      %v3090 = vadd.f32 %v2928, %v3089
      %v3091 = vpop.f32.mrb[0].mxu0
      %v3092 = vadd.f32 %v2933, %v3091
      %v3093 = vpop.f32.mrb[0].mxu0
      %v3094 = vadd.f32 %v2933, %v3093
      %3095 = vmatprep.mubr.bf16.mxu0 0
      %3096 = vmatmul.mubr.bf16.gmra.mrb[0].mxu0 %v3029
      %v3097 = vpop.f32.mrb[0].mxu0
      %v3098 = vadd.f32 %v2938, %v3097
      %v3099 = vpop.f32.mrb[0].mxu0
      %v3100 = vadd.f32 %v2938, %v3099
      %v3101 = vpop.f32.mrb[0].mxu0
      %v3102 = vadd.f32 %v2943, %v3101
      %v3103 = vpop.f32.mrb[0].mxu0
      %v3104 = vadd.f32 %v2943, %v3103
      %3105 = vmatprep.mubr.bf16.mxu0 0
      %3106 = vmatmul.mubr.bf16.gmra.mrb[0].mxu0 %v3030
      %v3107 = vpop.f32.mrb[0].mxu0
      %v3108 = vadd.f32 %v2948, %v3107
      %v3109 = vpop.f32.mrb[0].mxu0
      %v3110 = vadd.f32 %v2948, %v3109
      %v3111 = vpop.f32.mrb[0].mxu0
      %v3112 = vadd.f32 %v2953, %v3111
      %v3113 = vpop.f32.mrb[0].mxu0
      %v3114 = vadd.f32 %v2953, %v3113
      %3115 = vmatprep.mubr.bf16.mxu0 0
      %3116 = vmatmul.mubr.bf16.gmra.mrb[0].mxu0 %v3031
      %v3117 = vpop.f32.mrb[0].mxu0
      %v3118 = vadd.f32 %v2958, %v3117
      %v3119 = vpop.f32.mrb[0].mxu0
      %v3120 = vadd.f32 %v2958, %v3119
      %v3121 = vpop.f32.mrb[0].mxu0
      %v3122 = vadd.f32 %v2963, %v3121
      %v3123 = vpop.f32.mrb[0].mxu0
      %v3124 = vadd.f32 %v2963, %v3123
      %3125 = vmatprep.mubr.bf16.mxu0 0
      %3126 = vmatmul.mubr.bf16.gmra.mrb[0].mxu0 %v3032
      %v3127 = vpop.f32.mrb[0].mxu0
      %v3128 = vadd.f32 %v2968, %v3127
      %v3129 = vpop.f32.mrb[0].mxu0
      %v3130 = vadd.f32 %v2968, %v3129
      %v3131 = vpop.f32.mrb[0].mxu0
      %v3132 = vadd.f32 %v2973, %v3131
      %v3133 = vpop.f32.mrb[0].mxu0
      %v3134 = vadd.f32 %v2973, %v3133
      %3135 = vmatprep.mubr.bf16.mxu0 0
      %3136 = vmatmul.mubr.bf16.gmra.mrb[0].mxu0 %v3033
      %v3137 = vpop.f32.mrb[0].mxu0
      %v3138 = vadd.f32 %v2978, %v3137
      %v3139 = vpop.f32.mrb[0].mxu0
      %v3140 = vadd.f32 %v2978, %v3139
      %v3141 = vpop.f32.mrb[0].mxu0
      %v3142 = vadd.f32 %v2983, %v3141
      %v3143 = vpop.f32.mrb[0].mxu0
      %v3144 = vadd.f32 %v2983, %v3143
      %3145 = vmatprep.mubr.bf16.mxu0 0
      %3146 = vmatmul.mubr.bf16.gmra.mrb[0].mxu0 %v3034
      %v3147 = vpop.f32.mrb[0].mxu0
      %v3148 = vadd.f32 %v2988, %v3147
      %v3149 = vpop.f32.mrb[0].mxu0
      %v3150 = vadd.f32 %v2988, %v3149
      %v3151 = vpop.f32.mrb[0].mxu0
      %v3152 = vadd.f32 %v2993, %v3151
      %v3153 = vpop.f32.mrb[0].mxu0
      %v3154 = vadd.f32 %v2993, %v3153
      %3155 = vdwg.mxu0
      %v3156 = vadd.f32 %v3078, %v698
      %v3157 = vadd.f32 %v3080, %v699
      %v3158 = vadd.f32 %v3082, %v700
      %v3159 = vadd.f32 %v3084, %v701
      %v3160 = vadd.f32 %v3088, %v702
      %v3161 = vadd.f32 %v3090, %v703
      %v3162 = vadd.f32 %v3092, %v704
      %v3163 = vadd.f32 %v3094, %v705
      %v3164 = vadd.f32 %v3098, %v706
      %v3165 = vadd.f32 %v3100, %v707
      %v3166 = vadd.f32 %v3102, %v708
      %v3167 = vadd.f32 %v3104, %v709
      %v3168 = vadd.f32 %v3108, %v710
      %v3169 = vadd.f32 %v3110, %v711
      %v3170 = vadd.f32 %v3112, %v712
      %v3171 = vadd.f32 %v3114, %v713
      %v3172 = vadd.f32 %v3118, %v714
      %v3173 = vadd.f32 %v3120, %v715
      %v3174 = vadd.f32 %v3122, %v716
      %v3175 = vadd.f32 %v3124, %v717
      %v3176 = vadd.f32 %v3128, %v718
      %v3177 = vadd.f32 %v3130, %v719
      %v3178 = vadd.f32 %v3132, %v720
      %v3179 = vadd.f32 %v3134, %v721
      %v3180 = vadd.f32 %v3138, %v722
      %v3181 = vadd.f32 %v3140, %v723
      %v3182 = vadd.f32 %v3142, %v724
      %v3183 = vadd.f32 %v3144, %v725
      %v3184 = vadd.f32 %v3148, %v726
      %v3185 = vadd.f32 %v3150, %v727
      %v3186 = vadd.f32 %v3152, %v728
      %v3187 = vadd.f32 %v3154, %v729
      %v3188 = vadd.f32 %v3156, %v3158
      %v3189 = vadd.f32 %v3188, %v3160
      %v3190 = vadd.f32 %v3189, %v3162
      %v3191 = vadd.f32 %v3190, %v3164
      %v3192 = vadd.f32 %v3191, %v3166
      %v3193 = vadd.f32 %v3192, %v3168
      %v3194 = vadd.f32 %v3193, %v3170
      %v3195 = vadd.f32 %v3194, %v3172
      %v3196 = vadd.f32 %v3195, %v3174
      %v3197 = vadd.f32 %v3196, %v3176
      %v3198 = vadd.f32 %v3197, %v3178
      %v3199 = vadd.f32 %v3198, %v3180
      %v3200 = vadd.f32 %v3199, %v3182
      %v3201 = vadd.f32 %v3200, %v3184
      %v3202 = vadd.f32 %v3201, %v3186
      %v3203 = vrot.slane %v3202, 4
      %v3204 = vadd.f32 %v3202, %v3203
      %v3205 = vrot.slane %v3204, 2
      %v3206 = vadd.f32 %v3204, %v3205
      %v3207 = vrot.slane %v3206, 1
      %v3208 = vadd.f32 %v3206, %v3207
      %v3209 = vadd.f32 %v3157, %v3159
      %v3210 = vadd.f32 %v3209, %v3161
      %v3211 = vadd.f32 %v3210, %v3163
      %v3212 = vadd.f32 %v3211, %v3165
      %v3213 = vadd.f32 %v3212, %v3167
      %v3214 = vadd.f32 %v3213, %v3169
      %v3215 = vadd.f32 %v3214, %v3171
      %v3216 = vadd.f32 %v3215, %v3173
      %v3217 = vadd.f32 %v3216, %v3175
      %v3218 = vadd.f32 %v3217, %v3177
      %v3219 = vadd.f32 %v3218, %v3179
      %v3220 = vadd.f32 %v3219, %v3181
      %v3221 = vadd.f32 %v3220, %v3183
      %v3222 = vadd.f32 %v3221, %v3185
      %v3223 = vadd.f32 %v3222, %v3187
      %v3224 = vrot.slane %v3223, 4
      %v3225 = vadd.f32 %v3223, %v3224
      %v3226 = vrot.slane %v3225, 2
      %v3227 = vadd.f32 %v3225, %v3226
      %v3228 = vrot.slane %v3227, 1
      %v3229 = vadd.f32 %v3227, %v3228
      %v3230 = vmul.f32 %v3208, %v772
      %v3231 = vmul.f32 %v3229, %v772
      %v3232 = vsub.f32 %v3156, %v3230
      %v3233 = vsub.f32 %v3157, %v3231
      %v3234 = vsub.f32 %v3158, %v3230
      %v3235 = vsub.f32 %v3159, %v3231
      %v3236 = vsub.f32 %v3160, %v3230
      %v3237 = vsub.f32 %v3161, %v3231
      %v3238 = vsub.f32 %v3162, %v3230
      %v3239 = vsub.f32 %v3163, %v3231
      %v3240 = vsub.f32 %v3164, %v3230
      %v3241 = vsub.f32 %v3165, %v3231
      %v3242 = vsub.f32 %v3166, %v3230
      %v3243 = vsub.f32 %v3167, %v3231
      %v3244 = vsub.f32 %v3168, %v3230
      %v3245 = vsub.f32 %v3169, %v3231
      %v3246 = vsub.f32 %v3170, %v3230
      %v3247 = vsub.f32 %v3171, %v3231
      %v3248 = vsub.f32 %v3172, %v3230
      %v3249 = vsub.f32 %v3173, %v3231
      %v3250 = vsub.f32 %v3174, %v3230
      %v3251 = vsub.f32 %v3175, %v3231
      %v3252 = vsub.f32 %v3176, %v3230
      %v3253 = vsub.f32 %v3177, %v3231
      %v3254 = vsub.f32 %v3178, %v3230
      %v3255 = vsub.f32 %v3179, %v3231
      %v3256 = vsub.f32 %v3180, %v3230
      %v3257 = vsub.f32 %v3181, %v3231
      %v3258 = vsub.f32 %v3182, %v3230
      %v3259 = vsub.f32 %v3183, %v3231
      %v3260 = vsub.f32 %v3184, %v3230
      %v3261 = vsub.f32 %v3185, %v3231
      %v3262 = vsub.f32 %v3186, %v3230
      %v3263 = vsub.f32 %v3187, %v3231
      %v3264 = vmul.f32 %v3232, %v3232
      %v3265 = vmul.f32 %v3233, %v3233
      %v3266 = vmul.f32 %v3234, %v3234
      %v3267 = vmul.f32 %v3235, %v3235
      %v3268 = vmul.f32 %v3236, %v3236
      %v3269 = vmul.f32 %v3237, %v3237
      %v3270 = vmul.f32 %v3238, %v3238
      %v3271 = vmul.f32 %v3239, %v3239
      %v3272 = vmul.f32 %v3240, %v3240
      %v3273 = vmul.f32 %v3241, %v3241
      %v3274 = vmul.f32 %v3242, %v3242
      %v3275 = vmul.f32 %v3243, %v3243
      %v3276 = vmul.f32 %v3244, %v3244
      %v3277 = vmul.f32 %v3245, %v3245
      %v3278 = vmul.f32 %v3246, %v3246
      %v3279 = vmul.f32 %v3247, %v3247
      %v3280 = vmul.f32 %v3248, %v3248
      %v3281 = vmul.f32 %v3249, %v3249
      %v3282 = vmul.f32 %v3250, %v3250
      %v3283 = vmul.f32 %v3251, %v3251
      %v3284 = vmul.f32 %v3252, %v3252
      %v3285 = vmul.f32 %v3253, %v3253
      %v3286 = vmul.f32 %v3254, %v3254
      %v3287 = vmul.f32 %v3255, %v3255
      %v3288 = vmul.f32 %v3256, %v3256
      %v3289 = vmul.f32 %v3257, %v3257
      %v3290 = vmul.f32 %v3258, %v3258
      %v3291 = vmul.f32 %v3259, %v3259
      %v3292 = vmul.f32 %v3260, %v3260
      %v3293 = vmul.f32 %v3261, %v3261
      %v3294 = vmul.f32 %v3262, %v3262
      %v3295 = vmul.f32 %v3263, %v3263
      %v3296 = vadd.f32 %v3264, %v3266
      %v3297 = vadd.f32 %v3296, %v3268
      %v3298 = vadd.f32 %v3297, %v3270
      %v3299 = vadd.f32 %v3298, %v3272
      %v3300 = vadd.f32 %v3299, %v3274
      %v3301 = vadd.f32 %v3300, %v3276
      %v3302 = vadd.f32 %v3301, %v3278
      %v3303 = vadd.f32 %v3302, %v3280
      %v3304 = vadd.f32 %v3303, %v3282
      %v3305 = vadd.f32 %v3304, %v3284
      %v3306 = vadd.f32 %v3305, %v3286
      %v3307 = vadd.f32 %v3306, %v3288
      %v3308 = vadd.f32 %v3307, %v3290
      %v3309 = vadd.f32 %v3308, %v3292
      %v3310 = vadd.f32 %v3309, %v3294
      %v3311 = vrot.slane %v3310, 4
      %v3312 = vadd.f32 %v3310, %v3311
      %v3313 = vrot.slane %v3312, 2
      %v3314 = vadd.f32 %v3312, %v3313
      %v3315 = vrot.slane %v3314, 1
      %v3316 = vadd.f32 %v3314, %v3315
      %v3317 = vadd.f32 %v3265, %v3267
      %v3318 = vadd.f32 %v3317, %v3269
      %v3319 = vadd.f32 %v3318, %v3271
      %v3320 = vadd.f32 %v3319, %v3273
      %v3321 = vadd.f32 %v3320, %v3275
      %v3322 = vadd.f32 %v3321, %v3277
      %v3323 = vadd.f32 %v3322, %v3279
      %v3324 = vadd.f32 %v3323, %v3281
      %v3325 = vadd.f32 %v3324, %v3283
      %v3326 = vadd.f32 %v3325, %v3285
      %v3327 = vadd.f32 %v3326, %v3287
      %v3328 = vadd.f32 %v3327, %v3289
      %v3329 = vadd.f32 %v3328, %v3291
      %v3330 = vadd.f32 %v3329, %v3293
      %v3331 = vadd.f32 %v3330, %v3295
      %v3332 = vrot.slane %v3331, 4
      %v3333 = vadd.f32 %v3331, %v3332
      %v3334 = vrot.slane %v3333, 2
      %v3335 = vadd.f32 %v3333, %v3334
      %v3336 = vrot.slane %v3335, 1
      %v3337 = vadd.f32 %v3335, %v3336
      %v3338 = vmul.f32 %v3316, %v772
      %v3339 = vmul.f32 %v3337, %v772
      %v3340 = vadd.f32 %v3338, 1e-05
      %v3341 = vadd.f32 %v3339, 1e-05
      %v3342 = vrsqrt.pop %v3340
      %v3343 = vrsqrt.pop %v3341
      %v3344 = vmul.f32 %v3232, %v3342
      %v3345 = vmul.f32 %v3233, %v3343
      %v3346 = vmul.f32 %v3234, %v3342
      %v3347 = vmul.f32 %v3235, %v3343
      %v3348 = vmul.f32 %v3236, %v3342
      %v3349 = vmul.f32 %v3237, %v3343
      %v3350 = vmul.f32 %v3238, %v3342
      %v3351 = vmul.f32 %v3239, %v3343
      %v3352 = vmul.f32 %v3240, %v3342
      %v3353 = vmul.f32 %v3241, %v3343
      %v3354 = vmul.f32 %v3242, %v3342
      %v3355 = vmul.f32 %v3243, %v3343
      %v3356 = vmul.f32 %v3244, %v3342
      %v3357 = vmul.f32 %v3245, %v3343
      %v3358 = vmul.f32 %v3246, %v3342
      %v3359 = vmul.f32 %v3247, %v3343
      %v3360 = vmul.f32 %v3248, %v3342
      %v3361 = vmul.f32 %v3249, %v3343
      %v3362 = vmul.f32 %v3250, %v3342
      %v3363 = vmul.f32 %v3251, %v3343
      %v3364 = vmul.f32 %v3252, %v3342
      %v3365 = vmul.f32 %v3253, %v3343
      %v3366 = vmul.f32 %v3254, %v3342
      %v3367 = vmul.f32 %v3255, %v3343
      %v3368 = vmul.f32 %v3256, %v3342
      %v3369 = vmul.f32 %v3257, %v3343
      %v3370 = vmul.f32 %v3258, %v3342
      %v3371 = vmul.f32 %v3259, %v3343
      %v3372 = vmul.f32 %v3260, %v3342
      %v3373 = vmul.f32 %v3261, %v3343
      %v3374 = vmul.f32 %v3262, %v3342
      %v3375 = vmul.f32 %v3263, %v3343
      %3377 = vset.pattern.permute.xlu0 0
      %3378 = vperm.xlu0 %3377, %v474
      %v3379 = vpop.permute.xlu0 %3378
      %3382 = vset.pattern.permute.xlu0 0
      %3383 = vperm.xlu0 %3382, %v475
      %v3384 = vpop.permute.xlu0 %3383
      %3387 = vset.pattern.permute.xlu0 0
      %3388 = vperm.xlu0 %3387, %v476
      %v3389 = vpop.permute.xlu0 %3388
      %3392 = vset.pattern.permute.xlu0 0
      %3393 = vperm.xlu0 %3392, %v477
      %v3394 = vpop.permute.xlu0 %3393
      %3397 = vset.pattern.permute.xlu0 0
      %3398 = vperm.xlu0 %3397, %v478
      %v3399 = vpop.permute.xlu0 %3398
      %3402 = vset.pattern.permute.xlu0 0
      %3403 = vperm.xlu0 %3402, %v479
      %v3404 = vpop.permute.xlu0 %3403
      %3407 = vset.pattern.permute.xlu0 0
      %3408 = vperm.xlu0 %3407, %v480
      %v3409 = vpop.permute.xlu0 %3408
      %3412 = vset.pattern.permute.xlu0 0
      %3413 = vperm.xlu0 %3412, %v481
      %v3414 = vpop.permute.xlu0 %3413
      %3417 = vset.pattern.permute.xlu0 0
      %3418 = vperm.xlu0 %3417, %v482
      %v3419 = vpop.permute.xlu0 %3418
      %3422 = vset.pattern.permute.xlu0 0
      %3423 = vperm.xlu0 %3422, %v483
      %v3424 = vpop.permute.xlu0 %3423
      %3427 = vset.pattern.permute.xlu0 0
      %3428 = vperm.xlu0 %3427, %v484
      %v3429 = vpop.permute.xlu0 %3428
      %3432 = vset.pattern.permute.xlu0 0
      %3433 = vperm.xlu0 %3432, %v485
      %v3434 = vpop.permute.xlu0 %3433
      %3437 = vset.pattern.permute.xlu0 0
      %3438 = vperm.xlu0 %3437, %v486
      %v3439 = vpop.permute.xlu0 %3438
      %3442 = vset.pattern.permute.xlu0 0
      %3443 = vperm.xlu0 %3442, %v487
      %v3444 = vpop.permute.xlu0 %3443
      %3447 = vset.pattern.permute.xlu0 0
      %3448 = vperm.xlu0 %3447, %v488
      %v3449 = vpop.permute.xlu0 %3448
      %3452 = vset.pattern.permute.xlu0 0
      %3453 = vperm.xlu0 %3452, %v489
      %v3454 = vpop.permute.xlu0 %3453
      %v3456 = vmul.f32 %v3344, %v3379
      %v3457 = vmul.f32 %v3345, %v3379
      %v3458 = vmul.f32 %v3346, %v3384
      %v3459 = vmul.f32 %v3347, %v3384
      %v3460 = vmul.f32 %v3348, %v3389
      %v3461 = vmul.f32 %v3349, %v3389
      %v3462 = vmul.f32 %v3350, %v3394
      %v3463 = vmul.f32 %v3351, %v3394
      %v3464 = vmul.f32 %v3352, %v3399
      %v3465 = vmul.f32 %v3353, %v3399
      %v3466 = vmul.f32 %v3354, %v3404
      %v3467 = vmul.f32 %v3355, %v3404
      %v3468 = vmul.f32 %v3356, %v3409
      %v3469 = vmul.f32 %v3357, %v3409
      %v3470 = vmul.f32 %v3358, %v3414
      %v3471 = vmul.f32 %v3359, %v3414
      %v3472 = vmul.f32 %v3360, %v3419
      %v3473 = vmul.f32 %v3361, %v3419
      %v3474 = vmul.f32 %v3362, %v3424
      %v3475 = vmul.f32 %v3363, %v3424
      %v3476 = vmul.f32 %v3364, %v3429
      %v3477 = vmul.f32 %v3365, %v3429
      %v3478 = vmul.f32 %v3366, %v3434
      %v3479 = vmul.f32 %v3367, %v3434
      %v3480 = vmul.f32 %v3368, %v3439
      %v3481 = vmul.f32 %v3369, %v3439
      %v3482 = vmul.f32 %v3370, %v3444
      %v3483 = vmul.f32 %v3371, %v3444
      %v3484 = vmul.f32 %v3372, %v3449
      %v3485 = vmul.f32 %v3373, %v3449
      %v3486 = vmul.f32 %v3374, %v3454
      %v3487 = vmul.f32 %v3375, %v3454
      %3489 = vset.pattern.permute.xlu0 0
      %3490 = vperm.xlu0 %3489, %v490
      %v3491 = vpop.permute.xlu0 %3490
      %3494 = vset.pattern.permute.xlu0 0
      %3495 = vperm.xlu0 %3494, %v491
      %v3496 = vpop.permute.xlu0 %3495
      %3499 = vset.pattern.permute.xlu0 0
      %3500 = vperm.xlu0 %3499, %v492
      %v3501 = vpop.permute.xlu0 %3500
      %3504 = vset.pattern.permute.xlu0 0
      %3505 = vperm.xlu0 %3504, %v493
      %v3506 = vpop.permute.xlu0 %3505
      %3509 = vset.pattern.permute.xlu0 0
      %3510 = vperm.xlu0 %3509, %v494
      %v3511 = vpop.permute.xlu0 %3510
      %3514 = vset.pattern.permute.xlu0 0
      %3515 = vperm.xlu0 %3514, %v495
      %v3516 = vpop.permute.xlu0 %3515
      %3519 = vset.pattern.permute.xlu0 0
      %3520 = vperm.xlu0 %3519, %v496
      %v3521 = vpop.permute.xlu0 %3520
      %3524 = vset.pattern.permute.xlu0 0
      %3525 = vperm.xlu0 %3524, %v497
      %v3526 = vpop.permute.xlu0 %3525
      %3529 = vset.pattern.permute.xlu0 0
      %3530 = vperm.xlu0 %3529, %v498
      %v3531 = vpop.permute.xlu0 %3530
      %3534 = vset.pattern.permute.xlu0 0
      %3535 = vperm.xlu0 %3534, %v499
      %v3536 = vpop.permute.xlu0 %3535
      %3539 = vset.pattern.permute.xlu0 0
      %3540 = vperm.xlu0 %3539, %v500
      %v3541 = vpop.permute.xlu0 %3540
      %3544 = vset.pattern.permute.xlu0 0
      %3545 = vperm.xlu0 %3544, %v501
      %v3546 = vpop.permute.xlu0 %3545
      %3549 = vset.pattern.permute.xlu0 0
      %3550 = vperm.xlu0 %3549, %v502
      %v3551 = vpop.permute.xlu0 %3550
      %3554 = vset.pattern.permute.xlu0 0
      %3555 = vperm.xlu0 %3554, %v503
      %v3556 = vpop.permute.xlu0 %3555
      %3559 = vset.pattern.permute.xlu0 0
      %3560 = vperm.xlu0 %3559, %v504
      %v3561 = vpop.permute.xlu0 %3560
      %3564 = vset.pattern.permute.xlu0 0
      %3565 = vperm.xlu0 %3564, %v505
      %v3566 = vpop.permute.xlu0 %3565
      %v3568 = vadd.f32 %v3456, %v3491
      %v3569 = vadd.f32 %v3457, %v3491
      %v3570 = vadd.f32 %v3458, %v3496
      %v3571 = vadd.f32 %v3459, %v3496
      %v3572 = vadd.f32 %v3460, %v3501
      %v3573 = vadd.f32 %v3461, %v3501
      %v3574 = vadd.f32 %v3462, %v3506
      %v3575 = vadd.f32 %v3463, %v3506
      %v3576 = vadd.f32 %v3464, %v3511
      %v3577 = vadd.f32 %v3465, %v3511
      %v3578 = vadd.f32 %v3466, %v3516
      %v3579 = vadd.f32 %v3467, %v3516
      %v3580 = vadd.f32 %v3468, %v3521
      %v3581 = vadd.f32 %v3469, %v3521
      %v3582 = vadd.f32 %v3470, %v3526
      %v3583 = vadd.f32 %v3471, %v3526
      %v3584 = vadd.f32 %v3472, %v3531
      %v3585 = vadd.f32 %v3473, %v3531
      %v3586 = vadd.f32 %v3474, %v3536
      %v3587 = vadd.f32 %v3475, %v3536
      %v3588 = vadd.f32 %v3476, %v3541
      %v3589 = vadd.f32 %v3477, %v3541
      %v3590 = vadd.f32 %v3478, %v3546
      %v3591 = vadd.f32 %v3479, %v3546
      %v3592 = vadd.f32 %v3480, %v3551
      %v3593 = vadd.f32 %v3481, %v3551
      %v3594 = vadd.f32 %v3482, %v3556
      %v3595 = vadd.f32 %v3483, %v3556
      %v3596 = vadd.f32 %v3484, %v3561
      %v3597 = vadd.f32 %v3485, %v3561
      %v3598 = vadd.f32 %v3486, %v3566
      %v3599 = vadd.f32 %v3487, %v3566
      %v3600 = vpack.c.bf16 %v3570, %v3568
      %v3601 = vpack.c.bf16 %v3571, %v3569
      %v3602 = vpack.c.bf16 %v3574, %v3572
      %v3603 = vpack.c.bf16 %v3575, %v3573
      %v3604 = vpack.c.bf16 %v3578, %v3576
      %v3605 = vpack.c.bf16 %v3579, %v3577
      %v3606 = vpack.c.bf16 %v3582, %v3580
      %v3607 = vpack.c.bf16 %v3583, %v3581
      %v3608 = vpack.c.bf16 %v3586, %v3584
      %v3609 = vpack.c.bf16 %v3587, %v3585
      %v3610 = vpack.c.bf16 %v3590, %v3588
      %v3611 = vpack.c.bf16 %v3591, %v3589
      %v3612 = vpack.c.bf16 %v3594, %v3592
      %v3613 = vpack.c.bf16 %v3595, %v3593
      %v3614 = vpack.c.bf16 %v3598, %v3596
      %v3615 = vpack.c.bf16 %v3599, %v3597
      %3617 = vset.pattern.permute.xlu0 0
      %3618 = vperm.xlu0 %3617, %v650
      %v3619 = vpop.permute.xlu0 %3618
      %3622 = vset.pattern.permute.xlu0 0
      %3623 = vperm.xlu0 %3622, %v651
      %v3624 = vpop.permute.xlu0 %3623
      %3627 = vset.pattern.permute.xlu0 0
      %3628 = vperm.xlu0 %3627, %v652
      %v3629 = vpop.permute.xlu0 %3628
      %3632 = vset.pattern.permute.xlu0 0
      %3633 = vperm.xlu0 %3632, %v653
      %v3634 = vpop.permute.xlu0 %3633
      %3637 = vset.pattern.permute.xlu0 0
      %3638 = vperm.xlu0 %3637, %v654
      %v3639 = vpop.permute.xlu0 %3638
      %3642 = vset.pattern.permute.xlu0 0
      %3643 = vperm.xlu0 %3642, %v655
      %v3644 = vpop.permute.xlu0 %3643
      %3647 = vset.pattern.permute.xlu0 0
      %3648 = vperm.xlu0 %3647, %v656
      %v3649 = vpop.permute.xlu0 %3648
      %3652 = vset.pattern.permute.xlu0 0
      %3653 = vperm.xlu0 %3652, %v657
      %v3654 = vpop.permute.xlu0 %3653
      %3657 = vset.pattern.permute.xlu0 0
      %3658 = vperm.xlu0 %3657, %v658
      %v3659 = vpop.permute.xlu0 %3658
      %3662 = vset.pattern.permute.xlu0 0
      %3663 = vperm.xlu0 %3662, %v659
      %v3664 = vpop.permute.xlu0 %3663
      %3667 = vset.pattern.permute.xlu0 0
      %3668 = vperm.xlu0 %3667, %v660
      %v3669 = vpop.permute.xlu0 %3668
      %3672 = vset.pattern.permute.xlu0 0
      %3673 = vperm.xlu0 %3672, %v661
      %v3674 = vpop.permute.xlu0 %3673
      %3677 = vset.pattern.permute.xlu0 0
      %3678 = vperm.xlu0 %3677, %v662
      %v3679 = vpop.permute.xlu0 %3678
      %3682 = vset.pattern.permute.xlu0 0
      %3683 = vperm.xlu0 %3682, %v663
      %v3684 = vpop.permute.xlu0 %3683
      %3687 = vset.pattern.permute.xlu0 0
      %3688 = vperm.xlu0 %3687, %v664
      %v3689 = vpop.permute.xlu0 %3688
      %3692 = vset.pattern.permute.xlu0 0
      %3693 = vperm.xlu0 %3692, %v665
      %v3694 = vpop.permute.xlu0 %3693
      %v3712 = vunpack.c.l.b16 %v634
      %v3713 = vunpack.c.l.b16 %v635
      %v3714 = vunpack.c.l.b16 %v636
      %v3715 = vunpack.c.l.b16 %v637
      %v3716 = vunpack.c.l.b16 %v638
      %v3717 = vunpack.c.l.b16 %v639
      %v3718 = vunpack.c.l.b16 %v640
      %v3719 = vunpack.c.l.b16 %v641
      %v3720 = vunpack.c.l.b16 %v642
      %v3721 = vunpack.c.l.b16 %v643
      %v3722 = vunpack.c.l.b16 %v644
      %v3723 = vunpack.c.l.b16 %v645
      %v3724 = vunpack.c.l.b16 %v646
      %v3725 = vunpack.c.l.b16 %v647
      %v3726 = vunpack.c.l.b16 %v648
      %v3727 = vunpack.c.l.b16 %v649
      %v3728 = vpack.c.b16 %v3713, %v3712
      %v3729 = vpack.c.b16 %v3715, %v3714
      %v3730 = vpack.c.b16 %v3717, %v3716
      %v3731 = vpack.c.b16 %v3719, %v3718
      %v3732 = vpack.c.b16 %v3721, %v3720
      %v3733 = vpack.c.b16 %v3723, %v3722
      %v3734 = vpack.c.b16 %v3725, %v3724
      %v3735 = vpack.c.b16 %v3727, %v3726
      %3744 = vmatprep.subr.bf16.mxu0 %v3601
      %3745 = vmatpush1.bf16.msra.mxu0 %v3600
      %3746 = vmatprep.subr.bf16.mxu0 %v3603
      %3747 = vmatpush1.bf16.msra.mxu0 %v3602
      %3748 = vmatprep.subr.bf16.mxu0 %v3605
      %3749 = vmatpush1.bf16.msra.mxu0 %v3604
      %3750 = vmatprep.subr.bf16.mxu0 %v3607
      %3751 = vmatpush1.bf16.msra.mxu0 %v3606
      %3752 = vmatprep.subr.bf16.mxu0 %v3609
      %3753 = vmatpush1.bf16.msra.mxu0 %v3608
      %3754 = vmatprep.subr.bf16.mxu0 %v3611
      %3755 = vmatpush1.bf16.msra.mxu0 %v3610
      %3756 = vmatprep.subr.bf16.mxu0 %v3613
      %3757 = vmatpush1.bf16.msra.mxu0 %v3612
      %3758 = vmatprep.subr.bf16.mxu0 %v3615
      %3759 = vmatpush1.bf16.msra.mxu0 %v3614
      %3760 = vmatprep.subr.bf16.mxu0 0
      %3761 = vmatpush1.bf16.msra.mxu0 0
      %3762 = vmatprep.subr.bf16.mxu0 0
      %3763 = vmatpush1.bf16.msra.mxu0 0
      %3764 = vmatprep.subr.bf16.mxu0 0
      %3765 = vmatpush1.bf16.msra.mxu0 0
      %3766 = vmatprep.subr.bf16.mxu0 0
      %3767 = vmatpush1.bf16.msra.mxu0 0
      %3768 = vmatprep.subr.bf16.mxu0 0
      %3769 = vmatpush1.bf16.msra.mxu0 0
      %3770 = vmatprep.subr.bf16.mxu0 0
      %3771 = vmatpush1.bf16.msra.mxu0 0
      %3772 = vmatprep.subr.bf16.mxu0 0
      %3773 = vmatpush1.bf16.msra.mxu0 0
      %3774 = vmatprep.subr.bf16.mxu0 0
      %3775 = vmatpush1.bf16.msra.mxu0 0
      %3776 = vmatprep.mubr.bf16.mxu0 0
      %3777 = vmatmul.mubr.bf16.gmra.mrb[0].mxu0 %v3728
      %v3778 = vpop.f32.mrb[0].mxu0
      %v3779 = vadd.f32 %v3619, %v3778
      %v3780 = vpop.f32.mrb[0].mxu0
      %v3781 = vadd.f32 %v3619, %v3780
      %v3782 = vpop.f32.mrb[0].mxu0
      %v3783 = vadd.f32 %v3624, %v3782
      %v3784 = vpop.f32.mrb[0].mxu0
      %v3785 = vadd.f32 %v3624, %v3784
      %3786 = vmatprep.mubr.bf16.mxu0 0
      %3787 = vmatmul.mubr.bf16.gmra.mrb[0].mxu0 %v3729
      %v3788 = vpop.f32.mrb[0].mxu0
      %v3789 = vadd.f32 %v3629, %v3788
      %v3790 = vpop.f32.mrb[0].mxu0
      %v3791 = vadd.f32 %v3629, %v3790
      %v3792 = vpop.f32.mrb[0].mxu0
      %v3793 = vadd.f32 %v3634, %v3792
      %v3794 = vpop.f32.mrb[0].mxu0
      %v3795 = vadd.f32 %v3634, %v3794
      %3796 = vmatprep.mubr.bf16.mxu0 0
      %3797 = vmatmul.mubr.bf16.gmra.mrb[0].mxu0 %v3730
      %v3798 = vpop.f32.mrb[0].mxu0
      %v3799 = vadd.f32 %v3639, %v3798
      %v3800 = vpop.f32.mrb[0].mxu0
      %v3801 = vadd.f32 %v3639, %v3800
      %v3802 = vpop.f32.mrb[0].mxu0
      %v3803 = vadd.f32 %v3644, %v3802
      %v3804 = vpop.f32.mrb[0].mxu0
      %v3805 = vadd.f32 %v3644, %v3804
      %3806 = vmatprep.mubr.bf16.mxu0 0
      %3807 = vmatmul.mubr.bf16.gmra.mrb[0].mxu0 %v3731
      %v3808 = vpop.f32.mrb[0].mxu0
      %v3809 = vadd.f32 %v3649, %v3808
      %v3810 = vpop.f32.mrb[0].mxu0
      %v3811 = vadd.f32 %v3649, %v3810
      %v3812 = vpop.f32.mrb[0].mxu0
      %v3813 = vadd.f32 %v3654, %v3812
      %v3814 = vpop.f32.mrb[0].mxu0
      %v3815 = vadd.f32 %v3654, %v3814
      %3816 = vmatprep.mubr.bf16.mxu0 0
      %3817 = vmatmul.mubr.bf16.gmra.mrb[0].mxu0 %v3732
      %v3818 = vpop.f32.mrb[0].mxu0
      %v3819 = vadd.f32 %v3659, %v3818
      %v3820 = vpop.f32.mrb[0].mxu0
      %v3821 = vadd.f32 %v3659, %v3820
      %v3822 = vpop.f32.mrb[0].mxu0
      %v3823 = vadd.f32 %v3664, %v3822
      %v3824 = vpop.f32.mrb[0].mxu0
      %v3825 = vadd.f32 %v3664, %v3824
      %3826 = vmatprep.mubr.bf16.mxu0 0
      %3827 = vmatmul.mubr.bf16.gmra.mrb[0].mxu0 %v3733
      %v3828 = vpop.f32.mrb[0].mxu0
      %v3829 = vadd.f32 %v3669, %v3828
      %v3830 = vpop.f32.mrb[0].mxu0
      %v3831 = vadd.f32 %v3669, %v3830
      %v3832 = vpop.f32.mrb[0].mxu0
      %v3833 = vadd.f32 %v3674, %v3832
      %v3834 = vpop.f32.mrb[0].mxu0
      %v3835 = vadd.f32 %v3674, %v3834
      %3836 = vmatprep.mubr.bf16.mxu0 0
      %3837 = vmatmul.mubr.bf16.gmra.mrb[0].mxu0 %v3734
      %v3838 = vpop.f32.mrb[0].mxu0
      %v3839 = vadd.f32 %v3679, %v3838
      %v3840 = vpop.f32.mrb[0].mxu0
      %v3841 = vadd.f32 %v3679, %v3840
      %v3842 = vpop.f32.mrb[0].mxu0
      %v3843 = vadd.f32 %v3684, %v3842
      %v3844 = vpop.f32.mrb[0].mxu0
      %v3845 = vadd.f32 %v3684, %v3844
      %3846 = vmatprep.mubr.bf16.mxu0 0
      %3847 = vmatmul.mubr.bf16.gmra.mrb[0].mxu0 %v3735
      %v3848 = vpop.f32.mrb[0].mxu0
      %v3849 = vadd.f32 %v3689, %v3848
      %v3850 = vpop.f32.mrb[0].mxu0
      %v3851 = vadd.f32 %v3689, %v3850
      %v3852 = vpop.f32.mrb[0].mxu0
      %v3853 = vadd.f32 %v3694, %v3852
      %v3854 = vpop.f32.mrb[0].mxu0
      %v3855 = vadd.f32 %v3694, %v3854
      %3856 = vdwg.mxu0
      %v3857 = vmul.f32 %v3779, 0.5
      %v3858 = vmul.f32 %v3781, 0.5
      %v3859 = vmul.f32 %v3783, 0.5
      %v3860 = vmul.f32 %v3785, 0.5
      %v3861 = vmul.f32 %v3789, 0.5
      %v3862 = vmul.f32 %v3791, 0.5
      %v3863 = vmul.f32 %v3793, 0.5
      %v3864 = vmul.f32 %v3795, 0.5
      %v3865 = vmul.f32 %v3799, 0.5
      %v3866 = vmul.f32 %v3801, 0.5
      %v3867 = vmul.f32 %v3803, 0.5
      %v3868 = vmul.f32 %v3805, 0.5
      %v3869 = vmul.f32 %v3809, 0.5
      %v3870 = vmul.f32 %v3811, 0.5
      %v3871 = vmul.f32 %v3813, 0.5
      %v3872 = vmul.f32 %v3815, 0.5
      %v3873 = vmul.f32 %v3819, 0.5
      %v3874 = vmul.f32 %v3821, 0.5
      %v3875 = vmul.f32 %v3823, 0.5
      %v3876 = vmul.f32 %v3825, 0.5
      %v3877 = vmul.f32 %v3829, 0.5
      %v3878 = vmul.f32 %v3831, 0.5
      %v3879 = vmul.f32 %v3833, 0.5
      %v3880 = vmul.f32 %v3835, 0.5
      %v3881 = vmul.f32 %v3839, 0.5
      %v3882 = vmul.f32 %v3841, 0.5
      %v3883 = vmul.f32 %v3843, 0.5
      %v3884 = vmul.f32 %v3845, 0.5
      %v3885 = vmul.f32 %v3849, 0.5
      %v3886 = vmul.f32 %v3851, 0.5
      %v3887 = vmul.f32 %v3853, 0.5
      %v3888 = vmul.f32 %v3855, 0.5
      %v3889 = vmul.f32 %v3779, 0.044715
      %v3890 = vmul.f32 %v3781, 0.044715
      %v3891 = vmul.f32 %v3783, 0.044715
      %v3892 = vmul.f32 %v3785, 0.044715
      %v3893 = vmul.f32 %v3789, 0.044715
      %v3894 = vmul.f32 %v3791, 0.044715
      %v3895 = vmul.f32 %v3793, 0.044715
      %v3896 = vmul.f32 %v3795, 0.044715
      %v3897 = vmul.f32 %v3799, 0.044715
      %v3898 = vmul.f32 %v3801, 0.044715
      %v3899 = vmul.f32 %v3803, 0.044715
      %v3900 = vmul.f32 %v3805, 0.044715
      %v3901 = vmul.f32 %v3809, 0.044715
      %v3902 = vmul.f32 %v3811, 0.044715
      %v3903 = vmul.f32 %v3813, 0.044715
      %v3904 = vmul.f32 %v3815, 0.044715
      %v3905 = vmul.f32 %v3819, 0.044715
      %v3906 = vmul.f32 %v3821, 0.044715
      %v3907 = vmul.f32 %v3823, 0.044715
      %v3908 = vmul.f32 %v3825, 0.044715
      %v3909 = vmul.f32 %v3829, 0.044715
      %v3910 = vmul.f32 %v3831, 0.044715
      %v3911 = vmul.f32 %v3833, 0.044715
      %v3912 = vmul.f32 %v3835, 0.044715
      %v3913 = vmul.f32 %v3839, 0.044715
      %v3914 = vmul.f32 %v3841, 0.044715
      %v3915 = vmul.f32 %v3843, 0.044715
      %v3916 = vmul.f32 %v3845, 0.044715
      %v3917 = vmul.f32 %v3849, 0.044715
      %v3918 = vmul.f32 %v3851, 0.044715
      %v3919 = vmul.f32 %v3853, 0.044715
      %v3920 = vmul.f32 %v3855, 0.044715
      %v3921 = vmul.f32 %v3889, %v3779
      %v3922 = vmul.f32 %v3890, %v3781
      %v3923 = vmul.f32 %v3891, %v3783
      %v3924 = vmul.f32 %v3892, %v3785
      %v3925 = vmul.f32 %v3893, %v3789
      %v3926 = vmul.f32 %v3894, %v3791
      %v3927 = vmul.f32 %v3895, %v3793
      %v3928 = vmul.f32 %v3896, %v3795
      %v3929 = vmul.f32 %v3897, %v3799
      %v3930 = vmul.f32 %v3898, %v3801
      %v3931 = vmul.f32 %v3899, %v3803
      %v3932 = vmul.f32 %v3900, %v3805
      %v3933 = vmul.f32 %v3901, %v3809
      %v3934 = vmul.f32 %v3902, %v3811
      %v3935 = vmul.f32 %v3903, %v3813
      %v3936 = vmul.f32 %v3904, %v3815
      %v3937 = vmul.f32 %v3905, %v3819
      %v3938 = vmul.f32 %v3906, %v3821
      %v3939 = vmul.f32 %v3907, %v3823
      %v3940 = vmul.f32 %v3908, %v3825
      %v3941 = vmul.f32 %v3909, %v3829
      %v3942 = vmul.f32 %v3910, %v3831
      %v3943 = vmul.f32 %v3911, %v3833
      %v3944 = vmul.f32 %v3912, %v3835
      %v3945 = vmul.f32 %v3913, %v3839
      %v3946 = vmul.f32 %v3914, %v3841
      %v3947 = vmul.f32 %v3915, %v3843
      %v3948 = vmul.f32 %v3916, %v3845
      %v3949 = vmul.f32 %v3917, %v3849
      %v3950 = vmul.f32 %v3918, %v3851
      %v3951 = vmul.f32 %v3919, %v3853
      %v3952 = vmul.f32 %v3920, %v3855
      %v3953 = vmul.f32 %v3921, %v3779
      %v3954 = vmul.f32 %v3922, %v3781
      %v3955 = vmul.f32 %v3923, %v3783
      %v3956 = vmul.f32 %v3924, %v3785
      %v3957 = vmul.f32 %v3925, %v3789
      %v3958 = vmul.f32 %v3926, %v3791
      %v3959 = vmul.f32 %v3927, %v3793
      %v3960 = vmul.f32 %v3928, %v3795
      %v3961 = vmul.f32 %v3929, %v3799
      %v3962 = vmul.f32 %v3930, %v3801
      %v3963 = vmul.f32 %v3931, %v3803
      %v3964 = vmul.f32 %v3932, %v3805
      %v3965 = vmul.f32 %v3933, %v3809
      %v3966 = vmul.f32 %v3934, %v3811
      %v3967 = vmul.f32 %v3935, %v3813
      %v3968 = vmul.f32 %v3936, %v3815
      %v3969 = vmul.f32 %v3937, %v3819
      %v3970 = vmul.f32 %v3938, %v3821
      %v3971 = vmul.f32 %v3939, %v3823
      %v3972 = vmul.f32 %v3940, %v3825
      %v3973 = vmul.f32 %v3941, %v3829
      %v3974 = vmul.f32 %v3942, %v3831
      %v3975 = vmul.f32 %v3943, %v3833
      %v3976 = vmul.f32 %v3944, %v3835
      %v3977 = vmul.f32 %v3945, %v3839
      %v3978 = vmul.f32 %v3946, %v3841
      %v3979 = vmul.f32 %v3947, %v3843
      %v3980 = vmul.f32 %v3948, %v3845
      %v3981 = vmul.f32 %v3949, %v3849
      %v3982 = vmul.f32 %v3950, %v3851
      %v3983 = vmul.f32 %v3951, %v3853
      %v3984 = vmul.f32 %v3952, %v3855
      %v3985 = vadd.f32 %v3779, %v3953
      %v3986 = vadd.f32 %v3781, %v3954
      %v3987 = vadd.f32 %v3783, %v3955
      %v3988 = vadd.f32 %v3785, %v3956
      %v3989 = vadd.f32 %v3789, %v3957
      %v3990 = vadd.f32 %v3791, %v3958
      %v3991 = vadd.f32 %v3793, %v3959
      %v3992 = vadd.f32 %v3795, %v3960
      %v3993 = vadd.f32 %v3799, %v3961
      %v3994 = vadd.f32 %v3801, %v3962
      %v3995 = vadd.f32 %v3803, %v3963
      %v3996 = vadd.f32 %v3805, %v3964
      %v3997 = vadd.f32 %v3809, %v3965
      %v3998 = vadd.f32 %v3811, %v3966
      %v3999 = vadd.f32 %v3813, %v3967
      %v4000 = vadd.f32 %v3815, %v3968
      %v4001 = vadd.f32 %v3819, %v3969
      %v4002 = vadd.f32 %v3821, %v3970
      %v4003 = vadd.f32 %v3823, %v3971
      %v4004 = vadd.f32 %v3825, %v3972
      %v4005 = vadd.f32 %v3829, %v3973
      %v4006 = vadd.f32 %v3831, %v3974
      %v4007 = vadd.f32 %v3833, %v3975
      %v4008 = vadd.f32 %v3835, %v3976
      %v4009 = vadd.f32 %v3839, %v3977
      %v4010 = vadd.f32 %v3841, %v3978
      %v4011 = vadd.f32 %v3843, %v3979
      %v4012 = vadd.f32 %v3845, %v3980
      %v4013 = vadd.f32 %v3849, %v3981
      %v4014 = vadd.f32 %v3851, %v3982
      %v4015 = vadd.f32 %v3853, %v3983
      %v4016 = vadd.f32 %v3855, %v3984
      %v4017 = vmul.f32 %v3985, 0.7978846
      %v4018 = vmul.f32 %v3986, 0.7978846
      %v4019 = vmul.f32 %v3987, 0.7978846
      %v4020 = vmul.f32 %v3988, 0.7978846
      %v4021 = vmul.f32 %v3989, 0.7978846
      %v4022 = vmul.f32 %v3990, 0.7978846
      %v4023 = vmul.f32 %v3991, 0.7978846
      %v4024 = vmul.f32 %v3992, 0.7978846
      %v4025 = vmul.f32 %v3993, 0.7978846
      %v4026 = vmul.f32 %v3994, 0.7978846
      %v4027 = vmul.f32 %v3995, 0.7978846
      %v4028 = vmul.f32 %v3996, 0.7978846
      %v4029 = vmul.f32 %v3997, 0.7978846
      %v4030 = vmul.f32 %v3998, 0.7978846
      %v4031 = vmul.f32 %v3999, 0.7978846
      %v4032 = vmul.f32 %v4000, 0.7978846
      %v4033 = vmul.f32 %v4001, 0.7978846
      %v4034 = vmul.f32 %v4002, 0.7978846
      %v4035 = vmul.f32 %v4003, 0.7978846
      %v4036 = vmul.f32 %v4004, 0.7978846
      %v4037 = vmul.f32 %v4005, 0.7978846
      %v4038 = vmul.f32 %v4006, 0.7978846
      %v4039 = vmul.f32 %v4007, 0.7978846
      %v4040 = vmul.f32 %v4008, 0.7978846
      %v4041 = vmul.f32 %v4009, 0.7978846
      %v4042 = vmul.f32 %v4010, 0.7978846
      %v4043 = vmul.f32 %v4011, 0.7978846
      %v4044 = vmul.f32 %v4012, 0.7978846
      %v4045 = vmul.f32 %v4013, 0.7978846
      %v4046 = vmul.f32 %v4014, 0.7978846
      %v4047 = vmul.f32 %v4015, 0.7978846
      %v4048 = vmul.f32 %v4016, 0.7978846
      %v4049 = vtanh.pop %v4017
      %v4050 = vtanh.pop %v4018
      %v4051 = vtanh.pop %v4019
      %v4052 = vtanh.pop %v4020
      %v4053 = vtanh.pop %v4021
      %v4054 = vtanh.pop %v4022
      %v4055 = vtanh.pop %v4023
      %v4056 = vtanh.pop %v4024
      %v4057 = vtanh.pop %v4025
      %v4058 = vtanh.pop %v4026
      %v4059 = vtanh.pop %v4027
      %v4060 = vtanh.pop %v4028
      %v4061 = vtanh.pop %v4029
      %v4062 = vtanh.pop %v4030
      %v4063 = vtanh.pop %v4031
      %v4064 = vtanh.pop %v4032
      %v4065 = vtanh.pop %v4033
      %v4066 = vtanh.pop %v4034
      %v4067 = vtanh.pop %v4035
      %v4068 = vtanh.pop %v4036
      %v4069 = vtanh.pop %v4037
      %v4070 = vtanh.pop %v4038
      %v4071 = vtanh.pop %v4039
      %v4072 = vtanh.pop %v4040
      %v4073 = vtanh.pop %v4041
      %v4074 = vtanh.pop %v4042
      %v4075 = vtanh.pop %v4043
      %v4076 = vtanh.pop %v4044
      %v4077 = vtanh.pop %v4045
      %v4078 = vtanh.pop %v4046
      %v4079 = vtanh.pop %v4047
      %v4080 = vtanh.pop %v4048
      %v4081 = vadd.f32 %v4049, 1.0
      %v4082 = vadd.f32 %v4050, 1.0
      %v4083 = vadd.f32 %v4051, 1.0
      %v4084 = vadd.f32 %v4052, 1.0
      %v4085 = vadd.f32 %v4053, 1.0
      %v4086 = vadd.f32 %v4054, 1.0
      %v4087 = vadd.f32 %v4055, 1.0
      %v4088 = vadd.f32 %v4056, 1.0
      %v4089 = vadd.f32 %v4057, 1.0
      %v4090 = vadd.f32 %v4058, 1.0
      %v4091 = vadd.f32 %v4059, 1.0
      %v4092 = vadd.f32 %v4060, 1.0
      %v4093 = vadd.f32 %v4061, 1.0
      %v4094 = vadd.f32 %v4062, 1.0
      %v4095 = vadd.f32 %v4063, 1.0
      %v4096 = vadd.f32 %v4064, 1.0
      %v4097 = vadd.f32 %v4065, 1.0
      %v4098 = vadd.f32 %v4066, 1.0
      %v4099 = vadd.f32 %v4067, 1.0
      %v4100 = vadd.f32 %v4068, 1.0
      %v4101 = vadd.f32 %v4069, 1.0
      %v4102 = vadd.f32 %v4070, 1.0
      %v4103 = vadd.f32 %v4071, 1.0
      %v4104 = vadd.f32 %v4072, 1.0
      %v4105 = vadd.f32 %v4073, 1.0
      %v4106 = vadd.f32 %v4074, 1.0
      %v4107 = vadd.f32 %v4075, 1.0
      %v4108 = vadd.f32 %v4076, 1.0
      %v4109 = vadd.f32 %v4077, 1.0
      %v4110 = vadd.f32 %v4078, 1.0
      %v4111 = vadd.f32 %v4079, 1.0
      %v4112 = vadd.f32 %v4080, 1.0
      %v4113 = vmul.f32 %v3857, %v4081
      %v4114 = vmul.f32 %v3858, %v4082
      %v4115 = vmul.f32 %v3859, %v4083
      %v4116 = vmul.f32 %v3860, %v4084
      %v4117 = vmul.f32 %v3861, %v4085
      %v4118 = vmul.f32 %v3862, %v4086
      %v4119 = vmul.f32 %v3863, %v4087
      %v4120 = vmul.f32 %v3864, %v4088
      %v4121 = vmul.f32 %v3865, %v4089
      %v4122 = vmul.f32 %v3866, %v4090
      %v4123 = vmul.f32 %v3867, %v4091
      %v4124 = vmul.f32 %v3868, %v4092
      %v4125 = vmul.f32 %v3869, %v4093
      %v4126 = vmul.f32 %v3870, %v4094
      %v4127 = vmul.f32 %v3871, %v4095
      %v4128 = vmul.f32 %v3872, %v4096
      %v4129 = vmul.f32 %v3873, %v4097
      %v4130 = vmul.f32 %v3874, %v4098
      %v4131 = vmul.f32 %v3875, %v4099
      %v4132 = vmul.f32 %v3876, %v4100
      %v4133 = vmul.f32 %v3877, %v4101
      %v4134 = vmul.f32 %v3878, %v4102
      %v4135 = vmul.f32 %v3879, %v4103
      %v4136 = vmul.f32 %v3880, %v4104
      %v4137 = vmul.f32 %v3881, %v4105
      %v4138 = vmul.f32 %v3882, %v4106
      %v4139 = vmul.f32 %v3883, %v4107
      %v4140 = vmul.f32 %v3884, %v4108
      %v4141 = vmul.f32 %v3885, %v4109
      %v4142 = vmul.f32 %v3886, %v4110
      %v4143 = vmul.f32 %v3887, %v4111
      %v4144 = vmul.f32 %v3888, %v4112
      %v4145 = vpack.c.bf16 %v4115, %v4113
      %v4146 = vpack.c.bf16 %v4116, %v4114
      %v4147 = vpack.c.bf16 %v4119, %v4117
      %v4148 = vpack.c.bf16 %v4120, %v4118
      %v4149 = vpack.c.bf16 %v4123, %v4121
      %v4150 = vpack.c.bf16 %v4124, %v4122
      %v4151 = vpack.c.bf16 %v4127, %v4125
      %v4152 = vpack.c.bf16 %v4128, %v4126
      %v4153 = vpack.c.bf16 %v4131, %v4129
      %v4154 = vpack.c.bf16 %v4132, %v4130
      %v4155 = vpack.c.bf16 %v4135, %v4133
      %v4156 = vpack.c.bf16 %v4136, %v4134
      %v4157 = vpack.c.bf16 %v4139, %v4137
      %v4158 = vpack.c.bf16 %v4140, %v4138
      %v4159 = vpack.c.bf16 %v4143, %v4141
      %v4160 = vpack.c.bf16 %v4144, %v4142
      %4162 = vset.pattern.permute.xlu0 0
      %4163 = vperm.xlu0 %4162, %v682
      %v4164 = vpop.permute.xlu0 %4163
      %4167 = vset.pattern.permute.xlu0 0
      %4168 = vperm.xlu0 %4167, %v683
      %v4169 = vpop.permute.xlu0 %4168
      %4172 = vset.pattern.permute.xlu0 0
      %4173 = vperm.xlu0 %4172, %v684
      %v4174 = vpop.permute.xlu0 %4173
      %4177 = vset.pattern.permute.xlu0 0
      %4178 = vperm.xlu0 %4177, %v685
      %v4179 = vpop.permute.xlu0 %4178
      %4182 = vset.pattern.permute.xlu0 0
      %4183 = vperm.xlu0 %4182, %v686
      %v4184 = vpop.permute.xlu0 %4183
      %4187 = vset.pattern.permute.xlu0 0
      %4188 = vperm.xlu0 %4187, %v687
      %v4189 = vpop.permute.xlu0 %4188
      %4192 = vset.pattern.permute.xlu0 0
      %4193 = vperm.xlu0 %4192, %v688
      %v4194 = vpop.permute.xlu0 %4193
      %4197 = vset.pattern.permute.xlu0 0
      %4198 = vperm.xlu0 %4197, %v689
      %v4199 = vpop.permute.xlu0 %4198
      %4202 = vset.pattern.permute.xlu0 0
      %4203 = vperm.xlu0 %4202, %v690
      %v4204 = vpop.permute.xlu0 %4203
      %4207 = vset.pattern.permute.xlu0 0
      %4208 = vperm.xlu0 %4207, %v691
      %v4209 = vpop.permute.xlu0 %4208
      %4212 = vset.pattern.permute.xlu0 0
      %4213 = vperm.xlu0 %4212, %v692
      %v4214 = vpop.permute.xlu0 %4213
      %4217 = vset.pattern.permute.xlu0 0
      %4218 = vperm.xlu0 %4217, %v693
      %v4219 = vpop.permute.xlu0 %4218
      %4222 = vset.pattern.permute.xlu0 0
      %4223 = vperm.xlu0 %4222, %v694
      %v4224 = vpop.permute.xlu0 %4223
      %4227 = vset.pattern.permute.xlu0 0
      %4228 = vperm.xlu0 %4227, %v695
      %v4229 = vpop.permute.xlu0 %4228
      %4232 = vset.pattern.permute.xlu0 0
      %4233 = vperm.xlu0 %4232, %v696
      %v4234 = vpop.permute.xlu0 %4233
      %4237 = vset.pattern.permute.xlu0 0
      %4238 = vperm.xlu0 %4237, %v697
      %v4239 = vpop.permute.xlu0 %4238
      %v4257 = vunpack.c.l.b16 %v666
      %v4258 = vunpack.c.l.b16 %v667
      %v4259 = vunpack.c.l.b16 %v668
      %v4260 = vunpack.c.l.b16 %v669
      %v4261 = vunpack.c.l.b16 %v670
      %v4262 = vunpack.c.l.b16 %v671
      %v4263 = vunpack.c.l.b16 %v672
      %v4264 = vunpack.c.l.b16 %v673
      %v4265 = vunpack.c.l.b16 %v674
      %v4266 = vunpack.c.l.b16 %v675
      %v4267 = vunpack.c.l.b16 %v676
      %v4268 = vunpack.c.l.b16 %v677
      %v4269 = vunpack.c.l.b16 %v678
      %v4270 = vunpack.c.l.b16 %v679
      %v4271 = vunpack.c.l.b16 %v680
      %v4272 = vunpack.c.l.b16 %v681
      %v4273 = vpack.c.b16 %v4258, %v4257
      %v4274 = vpack.c.b16 %v4260, %v4259
      %v4275 = vpack.c.b16 %v4262, %v4261
      %v4276 = vpack.c.b16 %v4264, %v4263
      %v4277 = vpack.c.b16 %v4266, %v4265
      %v4278 = vpack.c.b16 %v4268, %v4267
      %v4279 = vpack.c.b16 %v4270, %v4269
      %v4280 = vpack.c.b16 %v4272, %v4271
      %4289 = vmatprep.subr.bf16.mxu0 %v4146
      %4290 = vmatpush1.bf16.msra.mxu0 %v4145
      %4291 = vmatprep.subr.bf16.mxu0 %v4148
      %4292 = vmatpush1.bf16.msra.mxu0 %v4147
      %4293 = vmatprep.subr.bf16.mxu0 %v4150
      %4294 = vmatpush1.bf16.msra.mxu0 %v4149
      %4295 = vmatprep.subr.bf16.mxu0 %v4152
      %4296 = vmatpush1.bf16.msra.mxu0 %v4151
      %4297 = vmatprep.subr.bf16.mxu0 %v4154
      %4298 = vmatpush1.bf16.msra.mxu0 %v4153
      %4299 = vmatprep.subr.bf16.mxu0 %v4156
      %4300 = vmatpush1.bf16.msra.mxu0 %v4155
      %4301 = vmatprep.subr.bf16.mxu0 %v4158
      %4302 = vmatpush1.bf16.msra.mxu0 %v4157
      %4303 = vmatprep.subr.bf16.mxu0 %v4160
      %4304 = vmatpush1.bf16.msra.mxu0 %v4159
      %4305 = vmatprep.subr.bf16.mxu0 0
      %4306 = vmatpush1.bf16.msra.mxu0 0
      %4307 = vmatprep.subr.bf16.mxu0 0
      %4308 = vmatpush1.bf16.msra.mxu0 0
      %4309 = vmatprep.subr.bf16.mxu0 0
      %4310 = vmatpush1.bf16.msra.mxu0 0
      %4311 = vmatprep.subr.bf16.mxu0 0
      %4312 = vmatpush1.bf16.msra.mxu0 0
      %4313 = vmatprep.subr.bf16.mxu0 0
      %4314 = vmatpush1.bf16.msra.mxu0 0
      %4315 = vmatprep.subr.bf16.mxu0 0
      %4316 = vmatpush1.bf16.msra.mxu0 0
      %4317 = vmatprep.subr.bf16.mxu0 0
      %4318 = vmatpush1.bf16.msra.mxu0 0
      %4319 = vmatprep.subr.bf16.mxu0 0
      %4320 = vmatpush1.bf16.msra.mxu0 0
      %4321 = vmatprep.mubr.bf16.mxu0 0
      %4322 = vmatmul.mubr.bf16.gmra.mrb[0].mxu0 %v4273
      %v4323 = vpop.f32.mrb[0].mxu0
      %v4324 = vadd.f32 %v4164, %v4323
      %v4325 = vpop.f32.mrb[0].mxu0
      %v4326 = vadd.f32 %v4164, %v4325
      %v4327 = vpop.f32.mrb[0].mxu0
      %v4328 = vadd.f32 %v4169, %v4327
      %v4329 = vpop.f32.mrb[0].mxu0
      %v4330 = vadd.f32 %v4169, %v4329
      %4331 = vmatprep.mubr.bf16.mxu0 0
      %4332 = vmatmul.mubr.bf16.gmra.mrb[0].mxu0 %v4274
      %v4333 = vpop.f32.mrb[0].mxu0
      %v4334 = vadd.f32 %v4174, %v4333
      %v4335 = vpop.f32.mrb[0].mxu0
      %v4336 = vadd.f32 %v4174, %v4335
      %v4337 = vpop.f32.mrb[0].mxu0
      %v4338 = vadd.f32 %v4179, %v4337
      %v4339 = vpop.f32.mrb[0].mxu0
      %v4340 = vadd.f32 %v4179, %v4339
      %4341 = vmatprep.mubr.bf16.mxu0 0
      %4342 = vmatmul.mubr.bf16.gmra.mrb[0].mxu0 %v4275
      %v4343 = vpop.f32.mrb[0].mxu0
      %v4344 = vadd.f32 %v4184, %v4343
      %v4345 = vpop.f32.mrb[0].mxu0
      %v4346 = vadd.f32 %v4184, %v4345
      %v4347 = vpop.f32.mrb[0].mxu0
      %v4348 = vadd.f32 %v4189, %v4347
      %v4349 = vpop.f32.mrb[0].mxu0
      %v4350 = vadd.f32 %v4189, %v4349
      %4351 = vmatprep.mubr.bf16.mxu0 0
      %4352 = vmatmul.mubr.bf16.gmra.mrb[0].mxu0 %v4276
      %v4353 = vpop.f32.mrb[0].mxu0
      %v4354 = vadd.f32 %v4194, %v4353
      %v4355 = vpop.f32.mrb[0].mxu0
      %v4356 = vadd.f32 %v4194, %v4355
      %v4357 = vpop.f32.mrb[0].mxu0
      %v4358 = vadd.f32 %v4199, %v4357
      %v4359 = vpop.f32.mrb[0].mxu0
      %v4360 = vadd.f32 %v4199, %v4359
      %4361 = vmatprep.mubr.bf16.mxu0 0
      %4362 = vmatmul.mubr.bf16.gmra.mrb[0].mxu0 %v4277
      %v4363 = vpop.f32.mrb[0].mxu0
      %v4364 = vadd.f32 %v4204, %v4363
      %v4365 = vpop.f32.mrb[0].mxu0
      %v4366 = vadd.f32 %v4204, %v4365
      %v4367 = vpop.f32.mrb[0].mxu0
      %v4368 = vadd.f32 %v4209, %v4367
      %v4369 = vpop.f32.mrb[0].mxu0
      %v4370 = vadd.f32 %v4209, %v4369
      %4371 = vmatprep.mubr.bf16.mxu0 0
      %4372 = vmatmul.mubr.bf16.gmra.mrb[0].mxu0 %v4278
      %v4373 = vpop.f32.mrb[0].mxu0
      %v4374 = vadd.f32 %v4214, %v4373
      %v4375 = vpop.f32.mrb[0].mxu0
      %v4376 = vadd.f32 %v4214, %v4375
      %v4377 = vpop.f32.mrb[0].mxu0
      %v4378 = vadd.f32 %v4219, %v4377
      %v4379 = vpop.f32.mrb[0].mxu0
      %v4380 = vadd.f32 %v4219, %v4379
      %4381 = vmatprep.mubr.bf16.mxu0 0
      %4382 = vmatmul.mubr.bf16.gmra.mrb[0].mxu0 %v4279
      %v4383 = vpop.f32.mrb[0].mxu0
      %v4384 = vadd.f32 %v4224, %v4383
      %v4385 = vpop.f32.mrb[0].mxu0
      %v4386 = vadd.f32 %v4224, %v4385
      %v4387 = vpop.f32.mrb[0].mxu0
      %v4388 = vadd.f32 %v4229, %v4387
      %v4389 = vpop.f32.mrb[0].mxu0
      %v4390 = vadd.f32 %v4229, %v4389
      %4391 = vmatprep.mubr.bf16.mxu0 0
      %4392 = vmatmul.mubr.bf16.gmra.mrb[0].mxu0 %v4280
      %v4393 = vpop.f32.mrb[0].mxu0
      %v4394 = vadd.f32 %v4234, %v4393
      %v4395 = vpop.f32.mrb[0].mxu0
      %v4396 = vadd.f32 %v4234, %v4395
      %v4397 = vpop.f32.mrb[0].mxu0
      %v4398 = vadd.f32 %v4239, %v4397
      %v4399 = vpop.f32.mrb[0].mxu0
      %v4400 = vadd.f32 %v4239, %v4399
      %4401 = vdwg.mxu0
      %v4402 = vadd.f32 %v4324, %v3156
      %v4403 = vadd.f32 %v4326, %v3157
      %v4404 = vadd.f32 %v4328, %v3158
      %v4405 = vadd.f32 %v4330, %v3159
      %v4406 = vadd.f32 %v4334, %v3160
      %v4407 = vadd.f32 %v4336, %v3161
      %v4408 = vadd.f32 %v4338, %v3162
      %v4409 = vadd.f32 %v4340, %v3163
      %v4410 = vadd.f32 %v4344, %v3164
      %v4411 = vadd.f32 %v4346, %v3165
      %v4412 = vadd.f32 %v4348, %v3166
      %v4413 = vadd.f32 %v4350, %v3167
      %v4414 = vadd.f32 %v4354, %v3168
      %v4415 = vadd.f32 %v4356, %v3169
      %v4416 = vadd.f32 %v4358, %v3170
      %v4417 = vadd.f32 %v4360, %v3171
      %v4418 = vadd.f32 %v4364, %v3172
      %v4419 = vadd.f32 %v4366, %v3173
      %v4420 = vadd.f32 %v4368, %v3174
      %v4421 = vadd.f32 %v4370, %v3175
      %v4422 = vadd.f32 %v4374, %v3176
      %v4423 = vadd.f32 %v4376, %v3177
      %v4424 = vadd.f32 %v4378, %v3178
      %v4425 = vadd.f32 %v4380, %v3179
      %v4426 = vadd.f32 %v4384, %v3180
      %v4427 = vadd.f32 %v4386, %v3181
      %v4428 = vadd.f32 %v4388, %v3182
      %v4429 = vadd.f32 %v4390, %v3183
      %v4430 = vadd.f32 %v4394, %v3184
      %v4431 = vadd.f32 %v4396, %v3185
      %v4432 = vadd.f32 %v4398, %v3186
      %v4433 = vadd.f32 %v4400, %v3187
      %4434 = vst [vmem:[%s440] sm:$0xff] %v4402
      %4435 = vst [vmem:[%s440 + $0x8] sm:$0xff] %v4403
      %4436 = vst [vmem:[%s440 + $0x10] sm:$0xff] %v4404
      %4437 = vst [vmem:[%s440 + $0x18] sm:$0xff] %v4405
      %4438 = vst [vmem:[%s440 + $0x20] sm:$0xff] %v4406
      %4439 = vst [vmem:[%s440 + $0x28] sm:$0xff] %v4407
      %4440 = vst [vmem:[%s440 + $0x30] sm:$0xff] %v4408
      %4441 = vst [vmem:[%s440 + $0x38] sm:$0xff] %v4409
      %4442 = vst [vmem:[%s440 + $0x40] sm:$0xff] %v4410
      %4443 = vst [vmem:[%s440 + $0x48] sm:$0xff] %v4411
      %4444 = vst [vmem:[%s440 + $0x50] sm:$0xff] %v4412
      %4445 = vst [vmem:[%s440 + $0x58] sm:$0xff] %v4413
      %4446 = vst [vmem:[%s440 + $0x60] sm:$0xff] %v4414
      %4447 = vst [vmem:[%s440 + $0x68] sm:$0xff] %v4415
      %4448 = vst [vmem:[%s440 + $0x70] sm:$0xff] %v4416
      %4449 = vst [vmem:[%s440 + $0x78] sm:$0xff] %v4417
      %4450 = vst [vmem:[%s440 + $0x80] sm:$0xff] %v4418
      %4451 = vst [vmem:[%s440 + $0x88] sm:$0xff] %v4419
      %4452 = vst [vmem:[%s440 + $0x90] sm:$0xff] %v4420
      %4453 = vst [vmem:[%s440 + $0x98] sm:$0xff] %v4421
      %4454 = vst [vmem:[%s440 + $0xa0] sm:$0xff] %v4422
      %4455 = vst [vmem:[%s440 + $0xa8] sm:$0xff] %v4423
      %4456 = vst [vmem:[%s440 + $0xb0] sm:$0xff] %v4424
      %4457 = vst [vmem:[%s440 + $0xb8] sm:$0xff] %v4425
      %4458 = vst [vmem:[%s440 + $0xc0] sm:$0xff] %v4426
      %4459 = vst [vmem:[%s440 + $0xc8] sm:$0xff] %v4427
      %4460 = vst [vmem:[%s440 + $0xd0] sm:$0xff] %v4428
      %4461 = vst [vmem:[%s440 + $0xd8] sm:$0xff] %v4429
      %4462 = vst [vmem:[%s440 + $0xe0] sm:$0xff] %v4430
      %4463 = vst [vmem:[%s440 + $0xe8] sm:$0xff] %v4431
      %4464 = vst [vmem:[%s440 + $0xf0] sm:$0xff] %v4432
      %4465 = vst [vmem:[%s440 + $0xf8] sm:$0xff] %v4433
      %p4466 = scmp.lt.s32.totalorder %s24, 1
      %s4467 = scalar_select %p4466, %s24, 1
      %s4468 = smul.addr %s4467, 32
      %s4469 = smul.addr %s4468, 8
      %s4470 = scalar_lea.vmem %s13, %s4469
      // Predicated region
      $region80: #{self_attention.1} parent=71 // pred_check
        %p4471 = pneg %p320
      $region81: #{self_attention.1} parent=71 // pred_check_branch
        %4473 = sbr.rel (%p4471) target = $region83
      $region82: #{self_attention.1} parent=71 // pred_region
        _
      $region83: #{self_attention.1} parent=71 // pred_fallthru
        _
    $region72: #{self_attention.1} parent=5 // pred_fallthru
      _
    %p4474 = scmp.le.s32.totalorder 2, %s19
    // Predicated region
    $region84: #{self_attention.1} parent=5 // pred_check
      %p4475 = pneg %p4474
    $region85: #{self_attention.1} parent=5 // pred_check_branch
      %4477 = sbr.rel (%p4475) target = $region87
    $region86: #{self_attention.1} parent=5 // pred_region
      %s4478 = ssub.s32 %s19, 2
      // Predicated region
      $region88: #{self_attention.1} parent=86 // pred_check
        %p4479 = pneg %p326
      $region89: #{self_attention.1} parent=86 // pred_check_branch
        %4481 = sbr.rel (%p4479) target = $region91
      $region90: #{self_attention.1} parent=86 // pred_region
        %p4482 = scmp.lt.s32.totalorder %s25, 1
        %s4483 = scalar_select %p4482, %s25, 1
        %s4484 = smul.addr %s4483, 32
        %s4485 = smul.addr %s4484, 8
        %s4486 = scalar_lea.vmem %s13, %s4485
      $region91: #{self_attention.1} parent=86 // pred_fallthru
        _
    $region87: #{self_attention.1} parent=5 // pred_fallthru
      _
  $region6: #{self_attention.1} parent=0 // loop_footer
    %s23 = sadd.s32 1, %s19
  $region7: #{self_attention.1} parent=0 // loop_footer_branch
    %18 = sbr.rel target = $region3
  $region8: #{self_attention.1} parent=0 // loop_exit
    _

</llo_original>
